<compile_context>
chip_gen: v5e
topology: v5e:2x2
jax: 0.10.0
libtpu: 0.0.40
codegen_flags: <defaults>
</compile_context>

<pallas_src>
import jax
import jax.numpy as jnp
from jax import lax
from jax.experimental import pallas as pl
from jax.experimental.pallas import tpu as pltpu


_LANE = 128
_NEG_FILL = -1e30     # CE class-axis padding: never wins the row max, exp() underflows to 0
_MiB = 1 << 20


def _round_up(x, m):
    return (x + m - 1) // m * m


def _pad_axis(x, target, axis, value):
    pad = target - x.shape[axis]
    if pad <= 0:
        return x
    widths = [(0, 0)] * x.ndim
    widths[axis] = (0, pad)
    return jnp.pad(x, widths, constant_values=value)


def _vmem_capacity_bytes():
    try:
        return int(pltpu.get_tpu_info().vmem_capacity_bytes)
    except Exception:
        return 64 * _MiB          # conservative fallback (v7x physical VMEM)


# ---------------------------------------------------------------------------
# Fused multi-head loss kernel (all heads, batch-tiled, 2-way core split)
# ---------------------------------------------------------------------------

def _make_fused_kernel(bce_meta, ce_meta, n_true, tile_b, tiles_per_core):
    """bce_meta: ((name, weight), ...);  ce_meta: ((name, weight, c_pad, chunk), ...)."""
    num_bce = len(bce_meta)
    num_ce = len(ce_meta)
    num_heads = num_bce + num_ce
    n_in = (2 if num_bce else 0) + 2 * num_ce
    bce_rows = tile_b // _LANE                       # sublane rows of the lane-packed BCE block

    def kernel(*refs):
        in_refs = refs[:n_in]
        o_ref = refs[n_in]                           # VMEM f32 (8, 128) per-core block
        acc_refs = refs[n_in + 1:]                   # BCE accs then CE accs
        bce_accs = acc_refs[:num_bce]
        ce_accs = acc_refs[num_bce:]

        c = pl.program_id(0)                         # parallel (core-split) axis
        i = pl.program_id(1)                         # reduction (batch-tile) axis
        g = c * tiles_per_core + i                   # global batch-tile index

        @pl.when(i == 0)
        def _init():
            for acc in acc_refs:
                acc[...] = jnp.zeros_like(acc)

        # ------------------ BCE heads: one coalesced lane-packed slab ------------------
        if num_bce:
            bx_ref = in_refs[0]                      # (G, tile_b//128, 128) logits dtype
            bt_ref = in_refs[1]                      # (G, tile_b//128, 128) f32 targets
            row = lax.broadcasted_iota(jnp.int32, (bce_rows, _LANE), 0)
            lane = lax.broadcasted_iota(jnp.int32, (bce_rows, _LANE), 1)
            flat = (g * bce_rows + row) * _LANE + lane
            valid = flat < n_true                    # shared mask for every BCE head
            for h in range(num_bce):                 # static head slices are free
                x = bx_ref[h].astype(jnp.float32)
                t = bt_ref[h]
                # Numerically stable BCE-with-logits (matches torch.nn.BCEWithLogitsLoss).
                per = jnp.maximum(x, 0.0) - x * t + jnp.log1p(jnp.exp(-jnp.abs(x)))
                per = jnp.where(valid, per, 0.0)
                # Fold to a single vreg-shaped (8, 128) partial: pure VPU adds, one store.
                bce_accs[h][...] += per.reshape(bce_rows // 8, 8, _LANE).sum(axis=0)

        # ---------------------------- CE heads (row-chunked) ---------------------------
        base = 2 if num_bce else 0
        for h, (_name, _w, c_pad, chunk) in enumerate(ce_meta):
            x_ref = in_refs[base + 2 * h]            # (tile_b, c_pad) logits dtype
            t_ref = in_refs[base + 2 * h + 1]        # (tile_b, 1) int32
            n_chunks = tile_b // chunk

            def chunk_body(ci, part, x_ref=x_ref, t_ref=t_ref, c_pad=c_pad, chunk=chunk):
                r0 = ci * chunk
                if not isinstance(r0, int):
                    r0 = pl.multiple_of(r0, chunk)
                x = x_ref[pl.ds(r0, chunk), :].astype(jnp.float32)
                tgt = t_ref[pl.ds(r0, chunk), :]                       # (chunk, 1) int32
                row = lax.broadcasted_iota(jnp.int32, (chunk, c_pad), 0)
                col = lax.broadcasted_iota(jnp.int32, (chunk, c_pad), 1)
                row_valid = (g * tile_b + r0 + row) < n_true
                m = jnp.max(x, axis=-1, keepdims=True)
                lse = m + jnp.log(jnp.sum(jnp.exp(x - m), axis=-1, keepdims=True))
                # Single fused select; row-sum == row_valid * (lse - x[tgt]).
                contrib = jnp.where((col == tgt) & row_valid, lse - x, 0.0)
                return part + contrib.reshape(chunk // 8, 8, c_pad).sum(axis=0)

            part = jnp.zeros((8, c_pad), jnp.float32)
            if n_chunks <= 8:                        # short fixed trip count: unroll statically
                for ci in range(n_chunks):
                    part = chunk_body(ci, part)
            else:
                part = lax.fori_loop(0, n_chunks, chunk_body, part)
            ce_accs[h][...] += part                  # one accumulator store per head per tile

        # ---------------------------------- epilogue -----------------------------------
        @pl.when(i == tiles_per_core - 1)
        def _finalize():
            inv_n = jnp.float32(1.0 / n_true)
            row_e = lax.broadcasted_iota(jnp.int32, (8, _LANE), 0)
            lane_e = lax.broadcasted_iota(jnp.int32, (8, _LANE), 1)
            out_block = jnp.zeros((8, _LANE), jnp.float32)
            total = jnp.float32(0.0)
            weights = [w for (_n, w) in bce_meta] + [w for (_n, w, _c, _k) in ce_meta]
            for slot in range(num_heads):
                loss_h = jnp.sum(acc_refs[slot][...]) * inv_n          # single cross-lane reduce
                out_block = jnp.where((row_e == 0) & (lane_e == slot), loss_h, out_block)
                total = total + jnp.float32(weights[slot]) * loss_h
            out_block = jnp.where((row_e == 0) & (lane_e == num_heads), total, out_block)
            o_ref[...] = out_block                   # per-core partial losses (lane-dense)

    return kernel


# ---------------------------------------------------------------------------
# MultiHeadLoss wrapper: lane-dense slabs, adaptive tiling, one fused pallas_call
# ---------------------------------------------------------------------------

class MultiHeadLoss:
    def __init__(self, head_structure, head_weights=None):
        self.head_structure = dict(head_structure)
        self.head_weights = dict(head_weights) if head_weights else {
            h: 1.0 for h in self.head_structure
        }
        # TODO(synk): per-class `loss_weights`, focal-loss variants and the
        # `loss_structure` override of the PyTorch module are not implemented
        # (default loss_structure=None path only).

    def __call__(self, outputs, targets):
        names = list(self.head_structure.keys())
        n = int(outputs[names[0]].shape[0])
        assert len(names) + 1 <= _LANE, "too many heads for one output lane row"

        # -------- split heads --------
        bce_heads, ce_heads = [], []
        for name in names:
            ncls = self.head_structure[name]
            w = float(self.head_weights.get(name, 1.0))
            logits, tgt = outputs[name], targets[name]
            assert logits.shape[0] == n, "all heads must share the batch dimension"
            if ncls == 1:
                assert logits.size == n, "binary head must have one logit per example"
                bce_heads.append((name, w, logits, tgt))
            else:
                ce_heads.append((name, w, logits, tgt))

        # -------- per-row VMEM bytes (for the adaptive tile / vmem budget) --------
        bce_dtype = None
        if bce_heads:
            bce_dtype = jnp.result_type(*[h[2].dtype for h in bce_heads])
            if not jnp.issubdtype(bce_dtype, jnp.floating):
                bce_dtype = jnp.float32
        per_row = 0
        fixed = 0
        if bce_heads:
            per_row += len(bce_heads) * (jnp.dtype(bce_dtype).itemsize + 4)   # logits + f32 targets
            fixed += len(bce_heads) * 8 * _LANE * 4                           # (8,128) accumulators
        ce_pads = []
        for (_nm, _w, logits, _t) in ce_heads:
            c_pad = _round_up(int(logits.shape[1]), _LANE)
            ce_pads.append(c_pad)
            per_row += c_pad * logits.dtype.itemsize                          # logits block
            per_row += 512        # (TILE_B,1) int32 target column: each 8-row group pads to (8,128)
            fixed += 8 * c_pad * 4                                            # (8,c_pad) accumulator
        fixed += 2 * 8 * _LANE * 4                                            # output double buffer
        fixed += 6 * _MiB                                                     # temporaries margin

        # -------- per-generation VMEM budget and adaptive TILE_B --------
        vmem_cap = _vmem_capacity_bytes()                    # 128 MiB v5e/v6e, 64 MiB v7x
        budget = max(vmem_cap // 2, 16 * _MiB)               # double-buffered working-set cap
        min_pad = _round_up(max(n, 1), 1024)
        tile_b = 1024
        for cand in (8192, 4096, 2048, 1024):
            if _round_up(max(n, 1), cand) > min_pad + min_pad // 4:
                continue                                      # too much padded work for this batch
            if 2 * per_row * cand + fixed <= budget:
                tile_b = cand
                break
        working_set = 2 * per_row * tile_b + fixed

        # -------- grid: 2-way core split (v7x megacore) on a leading parallel axis --------
        num_tiles = _round_up(max(n, 1), tile_b) // tile_b
        splits = 2 if num_tiles >= 2 else 1
        num_tiles = _round_up(num_tiles, splits)
        tiles_per_core = num_tiles // splits
        n_pad = num_tiles * tile_b
        tpc = tiles_per_core

        # -------- build kernel inputs / specs --------
        kernel_inputs, in_specs, scratch_shapes = [], [], []
        bytes_accessed = 0
        flops = 0
        transcend = 0

        bce_meta = []
        if bce_heads:
            xs, ts = [], []
            for (name, w, logits, tgt) in bce_heads:
                x_flat = logits.reshape(-1).astype(bce_dtype)
                t_flat = tgt.reshape(-1).astype(jnp.float32)
                xs.append(_pad_axis(x_flat, n_pad, 0, 0).reshape(n_pad // _LANE, _LANE))
                ts.append(_pad_axis(t_flat, n_pad, 0, 0).reshape(n_pad // _LANE, _LANE))
                bce_meta.append((name, w))
                flops += 6 * n_pad
                transcend += 2 * n_pad
            x_slab = jnp.stack(xs)                            # (G, n_pad//128, 128)
            t_slab = jnp.stack(ts)                            # (G, n_pad//128, 128) f32
            g_sz = len(bce_heads)
            blk = (g_sz, tile_b // _LANE, _LANE)
            kernel_inputs += [x_slab, t_slab]
            in_specs += [pl.BlockSpec(blk, lambda c, i: (0, c * tpc + i, 0)),
                         pl.BlockSpec(blk, lambda c, i: (0, c * tpc + i, 0))]
            bytes_accessed += x_slab.size * x_slab.dtype.itemsize + t_slab.size * 4

        ce_meta = []
        for (name, w, logits, tgt), c_pad in zip(ce_heads, ce_pads):
            x_pad = _pad_axis(logits, c_pad, 1, _NEG_FILL)
            x_pad = _pad_axis(x_pad, n_pad, 0, 0.0)
            t_col = _pad_axis(tgt.reshape(-1).astype(jnp.int32), n_pad, 0, 0).reshape(n_pad, 1)
            kernel_inputs += [x_pad, t_col]
            in_specs += [pl.BlockSpec((tile_b, c_pad), lambda c, i: (c * tpc + i, 0)),
                         pl.BlockSpec((tile_b, 1), lambda c, i: (c * tpc + i, 0))]
            # In-kernel row chunk so the f32 temporaries stay ~<= 512 KiB.
            chunk = tile_b
            while chunk > 8 and chunk * c_pad * 4 > (512 << 10):
                chunk //= 2
            ce_meta.append((name, w, c_pad, chunk))
            bytes_accessed += x_pad.size * x_pad.dtype.itemsize + t_col.size * 4
            flops += 6 * n_pad * c_pad
            transcend += n_pad * c_pad + n_pad

        for _ in bce_meta:
            scratch_shapes.append(pltpu.VMEM((8, _LANE), jnp.float32))
        for (_nm, _w, c_pad, _ck) in ce_meta:
            scratch_shapes.append(pltpu.VMEM((8, c_pad), jnp.float32))

        num_heads = len(bce_meta) + len(ce_meta)
        kernel = _make_fused_kernel(tuple(bce_meta), tuple(ce_meta), n, tile_b, tiles_per_core)

        vmem_limit = int(min(max(working_set, 16 * _MiB),
                             max(vmem_cap - 8 * _MiB, 16 * _MiB)))

        out = pl.pallas_call(
            kernel,
            out_shape=jax.ShapeDtypeStruct((splits * 8, _LANE), jnp.float32),
            grid_spec=pltpu.PrefetchScalarGridSpec(
                num_scalar_prefetch=0,
                grid=(splits, tiles_per_core),
                in_specs=in_specs,
                out_specs=pl.BlockSpec((8, _LANE), lambda c, i: (c, 0)),
                scratch_shapes=scratch_shapes,
            ),
            compiler_params=pltpu.CompilerParams(
                # Leading core-split axis is parallel (megacore on v7x); the batch-tile
                # axis is a reduction (output block revisited every step).
                dimension_semantics=("parallel", "arbitrary"),
                vmem_limit_bytes=vmem_limit,
            ),
            cost_estimate=pl.CostEstimate(
                flops=int(flops),
                transcendentals=int(transcend),
                bytes_accessed=int(bytes_accessed + splits * 8 * _LANE * 4),
            ),
        )(*kernel_inputs)

        # Combine the per-core partial losses (row 0 of each core's (8,128) block).
        summed = out.reshape(splits, 8, _LANE)[:, 0, :].sum(axis=0)
        order = [nm for (nm, _w) in bce_meta] + [nm for (nm, _w, _c, _k) in ce_meta]
        losses = {nm: summed[slot] for slot, nm in enumerate(order)}
        total_loss = summed[num_heads]
        return total_loss, losses


# ---------------------------------------------------------------------------
# Demo + correctness checks
# ---------------------------------------------------------------------------

def _ref_bce(x, t):
    x = x.astype(jnp.float32)
    t = t.astype(jnp.float32)
    return jnp.mean(jnp.maximum(x, 0) - x * t + jnp.log1p(jnp.exp(-jnp.abs(x))))


def _ref_ce(x, t):
    x = x.astype(jnp.float32)
    lse = jax.scipy.special.logsumexp(x, axis=-1)
    picked = jnp.take_along_axis(x, t[:, None], axis=-1)[:, 0]
    return jnp.mean(lse - picked)


if __name__ == "__main__":
    key = jax.random.PRNGKey(0)
    k1, k2, k3, k4, k5, k6, k7, k8 = jax.random.split(key, 8)

    # --- small demo consistent with the module (batch=8, classes={1, 4}) ---
    N = 8
    head_structure = {"binary_head": 1, "class_head": 4}
    head_weights = {"binary_head": 1.0, "class_head": 0.5}

    outputs = {
        "binary_head": jax.random.normal(k1, (N, 1), dtype=jnp.float32),
        "class_head": jax.random.normal(k2, (N, 4), dtype=jnp.float32),
    }
    targets = {
        "binary_head": jax.random.bernoulli(k3, 0.5, (N, 1)).astype(jnp.float32),
        "class_head": jax.random.randint(k4, (N,), 0, 4, dtype=jnp.int32),
    }

    loss_fn = MultiHeadLoss(head_structure, head_weights=head_weights)
    total_loss, losses = loss_fn(outputs, targets)
    jax.block_until_ready(total_loss)

    ref_b = _ref_bce(outputs["binary_head"], targets["binary_head"])
    ref_c = _ref_ce(outputs["class_head"], targets["class_head"])
    ref_total = head_weights["binary_head"] * ref_b + head_weights["class_head"] * ref_c
    assert jnp.allclose(losses["binary_head"], ref_b, atol=1e-5), (losses["binary_head"], ref_b)
    assert jnp.allclose(losses["class_head"], ref_c, atol=1e-5), (losses["class_head"], ref_c)
    assert jnp.allclose(total_loss, ref_total, atol=1e-5), (total_loss, ref_total)

    # --- multi-tile / bf16 / non-aligned batch check (masking + core split + pipelining) ---
    N2 = 2500
    hs2 = {"b": 1, "c": 10}
    hw2 = {"b": 2.0, "c": 1.0}
    outputs2 = {
        "b": jax.random.normal(k5, (N2, 1), dtype=jnp.bfloat16),
        "c": jax.random.normal(k6, (N2, 10), dtype=jnp.bfloat16),
    }
    targets2 = {
        "b": jax.random.bernoulli(k7, 0.5, (N2, 1)).astype(jnp.float32),
        "c": jax.random.randint(k8, (N2,), 0, 10, dtype=jnp.int32),
    }
    total2, losses2 = MultiHeadLoss(hs2, head_weights=hw2)(outputs2, targets2)
    jax.block_until_ready(total2)
    ref_b2 = _ref_bce(outputs2["b"], targets2["b"])
    ref_c2 = _ref_ce(outputs2["c"], targets2["c"])
    ref_total2 = hw2["b"] * ref_b2 + hw2["c"] * ref_c2
    assert jnp.allclose(losses2["b"], ref_b2, atol=1e-4), (losses2["b"], ref_b2)
    assert jnp.allclose(losses2["c"], ref_c2, atol=1e-4), (losses2["c"], ref_c2)
    assert jnp.allclose(total2, ref_total2, atol=1e-4), (total2, ref_total2)

    print("KERNEL_OK")
</pallas_src>

<mosaic_0001>
module attributes {stable_mosaic.version = 11 : i64} {
  func.func @kernel(%arg0: i32, %arg1: i32, %arg2: memref<1x8x128xf32, #tpu.memory_space<vmem>>, %arg3: memref<1x8x128xf32, #tpu.memory_space<vmem>>, %arg4: memref<1024x128xf32, #tpu.memory_space<vmem>>, %arg5: memref<1024x1xi32, #tpu.memory_space<vmem>>, %arg6: memref<8x128xf32, #tpu.memory_space<vmem>>, %arg7: memref<8x128xf32, #tpu.memory_space<vmem>>, %arg8: memref<8x128xf32, #tpu.memory_space<vmem>>) attributes {dimension_semantics = [#tpu.dimension_semantics<parallel>, #tpu.dimension_semantics<arbitrary>], iteration_bounds = array<i64: 1, 1>, scalar_prefetch = 0 : i64, scratch_operands = 2 : i64, tpu.core_type = #tpu.core_type<tc>, window_params = [{transform_indices = @transform_0, window_bounds = array<i64: 1, 8, 128>}, {transform_indices = @transform_1, window_bounds = array<i64: 1, 8, 128>}, {transform_indices = @transform_2, window_bounds = array<i64: 1024, 128>}, {transform_indices = @transform_3, window_bounds = array<i64: 1024, 1>}, {transform_indices = @transform_4, window_bounds = array<i64: 8, 128>}]} {
    %c1_i32 = arith.constant 1 : i32
    %0 = arith.muli %arg0, %c1_i32 : i32
    %1 = arith.addi %0, %arg1 : i32
    %c0_i32 = arith.constant 0 : i32
    %2 = arith.cmpi eq, %arg1, %c0_i32 : i32
    %3 = arith.extui %2 : i1 to i32
    %c0_i32_0 = arith.constant 0 : i32
    %4 = arith.cmpi ne, %3, %c0_i32_0 : i32
    scf.if %4 {
      %cst_31 = arith.constant 0.000000e+00 : f32
      %72 = vector.broadcast %cst_31 : f32 to vector<8x128xf32>
      %c0_32 = arith.constant 0 : index
      %c0_33 = arith.constant 0 : index
      %73 = vector.load %arg7[%c0_32, %c0_33] : memref<8x128xf32, #tpu.memory_space<vmem>>, vector<8x128xf32>
      tpu.vector_store %arg7[%c0_32, %c0_33], %72 {strides = array<i32>} : memref<8x128xf32, #tpu.memory_space<vmem>>, vector<8x128xf32>,
      %cst_34 = arith.constant 0.000000e+00 : f32
      %74 = vector.broadcast %cst_34 : f32 to vector<8x128xf32>
      %c0_35 = arith.constant 0 : index
      %c0_36 = arith.constant 0 : index
      %75 = vector.load %arg8[%c0_35, %c0_36] : memref<8x128xf32, #tpu.memory_space<vmem>>, vector<8x128xf32>
      tpu.vector_store %arg8[%c0_35, %c0_36], %74 {strides = array<i32>} : memref<8x128xf32, #tpu.memory_space<vmem>>, vector<8x128xf32>,
    } else {
    }
    %5 = tpu.iota {dimensions = array<i32: 0>} : vector<8x128xi32>
    %6 = tpu.iota {dimensions = array<i32: 1>} : vector<8x128xi32>
    %c8_i32 = arith.constant 8 : i32
    %7 = arith.muli %1, %c8_i32 : i32
    %8 = vector.broadcast %7 : i32 to vector<8x128xi32>
    %9 = arith.addi %8, %5 : vector<8x128xi32>
    %c128_i32 = arith.constant 128 : i32
    %10 = vector.broadcast %c128_i32 : i32 to vector<8x128xi32>
    %11 = arith.muli %9, %10 : vector<8x128xi32>
    %12 = arith.addi %11, %6 : vector<8x128xi32>
    %c8_i32_1 = arith.constant 8 : i32
    %13 = vector.broadcast %c8_i32_1 : i32 to vector<8x128xi32>
    %14 = arith.cmpi slt, %12, %13 : vector<8x128xi32>
    %c0 = arith.constant 0 : index
    %c0_2 = arith.constant 0 : index
    %c0_3 = arith.constant 0 : index
    %15 = vector.load %arg2[%c0, %c0_2, %c0_3] : memref<1x8x128xf32, #tpu.memory_space<vmem>>, vector<1x8x128xf32>
    %16 = vector.shape_cast %15 : vector<1x8x128xf32> to vector<8x128xf32>
    %c0_4 = arith.constant 0 : index
    %c0_5 = arith.constant 0 : index
    %c0_6 = arith.constant 0 : index
    %17 = vector.load %arg3[%c0_4, %c0_5, %c0_6] : memref<1x8x128xf32, #tpu.memory_space<vmem>>, vector<1x8x128xf32>
    %18 = vector.shape_cast %17 : vector<1x8x128xf32> to vector<8x128xf32>
    %cst = arith.constant 0.000000e+00 : f32
    %19 = vector.broadcast %cst : f32 to vector<8x128xf32>
    %20 = arith.maximumf %16, %19 : vector<8x128xf32>
    %21 = arith.mulf %16, %18 : vector<8x128xf32>
    %22 = arith.subf %20, %21 : vector<8x128xf32>
    %23 = math.absf %16 : vector<8x128xf32>
    %cst_7 = arith.constant 0.000000e+00 : f32
    %24 = vector.broadcast %cst_7 : f32 to vector<8x128xf32>
    %25 = arith.subf %24, %23 : vector<8x128xf32>
    %26 = math.exp %25 : vector<8x128xf32>
    %27 = math.log1p %26 : vector<8x128xf32>
    %28 = arith.addf %22, %27 : vector<8x128xf32>
    %cst_8 = arith.constant 0.000000e+00 : f32
    %29 = vector.broadcast %cst_8 : f32 to vector<8x128xf32>
    %30 = arith.select %14, %28, %29 : vector<8x128xi1>, vector<8x128xf32>
    %c0_9 = arith.constant 0 : index
    %c0_10 = arith.constant 0 : index
    %31 = vector.load %arg7[%c0_9, %c0_10] : memref<8x128xf32, #tpu.memory_space<vmem>>, vector<8x128xf32>
    %32 = vector.shape_cast %30 : vector<8x128xf32> to vector<1x8x128xf32>
    %cst_11 = arith.constant dense<0.000000e+00> : vector<8x128xf32>
    %33 = vector.multi_reduction <add>, %32, %cst_11 [0] : vector<1x8x128xf32> to vector<8x128xf32>
    %34 = arith.addf %31, %33 : vector<8x128xf32>
    %c0_12 = arith.constant 0 : index
    %c0_13 = arith.constant 0 : index
    %35 = vector.load %arg7[%c0_12, %c0_13] : memref<8x128xf32, #tpu.memory_space<vmem>>, vector<8x128xf32>
    tpu.vector_store %arg7[%c0_12, %c0_13], %34 {strides = array<i32>} : memref<8x128xf32, #tpu.memory_space<vmem>>, vector<8x128xf32>,
    %cst_14 = arith.constant 0.000000e+00 : f32
    %36 = vector.broadcast %cst_14 : f32 to vector<8x128xf32>
    %c0_15 = arith.constant 0 : index
    %c0_16 = arith.constant 0 : index
    %37 = vector.load %arg4[%c0_15, %c0_16] : memref<1024x128xf32, #tpu.memory_space<vmem>>, vector<1024x128xf32>
    %c0_17 = arith.constant 0 : index
    %c0_18 = arith.constant 0 : index
    %38 = vector.load %arg5[%c0_17, %c0_18] : memref<1024x1xi32, #tpu.memory_space<vmem>>, vector<1024x1xi32>
    %39 = tpu.iota {dimensions = array<i32: 0>} : vector<1024x128xi32>
    %40 = tpu.iota {dimensions = array<i32: 1>} : vector<1024x128xi32>
    %c1024_i32 = arith.constant 1024 : i32
    %41 = arith.muli %1, %c1024_i32 : i32
    %c0_i32_19 = arith.constant 0 : i32
    %42 = arith.addi %41, %c0_i32_19 : i32
    %43 = vector.broadcast %42 : i32 to vector<1024x128xi32>
    %44 = arith.addi %43, %39 : vector<1024x128xi32>
    %c8_i32_20 = arith.constant 8 : i32
    %45 = vector.broadcast %c8_i32_20 : i32 to vector<1024x128xi32>
    %46 = arith.cmpi slt, %44, %45 : vector<1024x128xi32>
    %cst_21 = arith.constant dense<0xFF800000> : vector<1024xf32>
    %47 = vector.multi_reduction <maximumf>, %37, %cst_21 [1] : vector<1024x128xf32> to vector<1024xf32>
    %48 = vector.shape_cast %47 : vector<1024xf32> to vector<1024x1xf32>
    %49 = vector.broadcast %48 : vector<1024x1xf32> to vector<1024x128xf32>
    %50 = arith.subf %37, %49 : vector<1024x128xf32>
    %51 = math.exp %50 : vector<1024x128xf32>
    %cst_22 = arith.constant dense<0.000000e+00> : vector<1024xf32>
    %52 = vector.multi_reduction <add>, %51, %cst_22 [1] : vector<1024x128xf32> to vector<1024xf32>
    %53 = vector.shape_cast %52 : vector<1024xf32> to vector<1024x1xf32>
    %54 = math.log %53 : vector<1024x1xf32>
    %55 = arith.addf %48, %54 : vector<1024x1xf32>
    %56 = vector.broadcast %38 : vector<1024x1xi32> to vector<1024x128xi32>
    %57 = arith.cmpi eq, %40, %56 : vector<1024x128xi32>
    %58 = arith.andi %57, %46 : vector<1024x128xi1>
    %59 = vector.broadcast %55 : vector<1024x1xf32> to vector<1024x128xf32>
    %60 = arith.subf %59, %37 : vector<1024x128xf32>
    %cst_23 = arith.constant 0.000000e+00 : f32
    %61 = vector.broadcast %cst_23 : f32 to vector<1024x128xf32>
    %62 = arith.select %58, %60, %61 : vector<1024x128xi1>, vector<1024x128xf32>
    %63 = vector.shape_cast %62 : vector<1024x128xf32> to vector<128x8x128xf32>
    %cst_24 = arith.constant dense<0.000000e+00> : vector<8x128xf32>
    %64 = vector.multi_reduction <add>, %63, %cst_24 [0] : vector<128x8x128xf32> to vector<8x128xf32>
    %65 = arith.addf %36, %64 : vector<8x128xf32>
    %c0_25 = arith.constant 0 : index
    %c0_26 = arith.constant 0 : index
    %66 = vector.load %arg8[%c0_25, %c0_26] : memref<8x128xf32, #tpu.memory_space<vmem>>, vector<8x128xf32>
    %67 = arith.addf %66, %65 : vector<8x128xf32>
    %c0_27 = arith.constant 0 : index
    %c0_28 = arith.constant 0 : index
    %68 = vector.load %arg8[%c0_27, %c0_28] : memref<8x128xf32, #tpu.memory_space<vmem>>, vector<8x128xf32>
    tpu.vector_store %arg8[%c0_27, %c0_28], %67 {strides = array<i32>} : memref<8x128xf32, #tpu.memory_space<vmem>>, vector<8x128xf32>,
    %c0_i32_29 = arith.constant 0 : i32
    %69 = arith.cmpi eq, %arg1, %c0_i32_29 : i32
    %70 = arith.extui %69 : i1 to i32
    %c0_i32_30 = arith.constant 0 : i32
    %71 = arith.cmpi ne, %70, %c0_i32_30 : i32
    scf.if %71 {
      %72 = tpu.iota {dimensions = array<i32: 0>} : vector<8x128xi32>
      %73 = tpu.iota {dimensions = array<i32: 1>} : vector<8x128xi32>
      %cst_31 = arith.constant 0.000000e+00 : f32
      %74 = vector.broadcast %cst_31 : f32 to vector<8x128xf32>
      %c0_32 = arith.constant 0 : index
      %c0_33 = arith.constant 0 : index
      %75 = vector.load %arg7[%c0_32, %c0_33] : memref<8x128xf32, #tpu.memory_space<vmem>>, vector<8x128xf32>
      %76 = vector.shape_cast %75 : vector<8x128xf32> to vector<1x8x128xf32>
      %cst_34 = arith.constant dense<0.000000e+00> : vector<1xf32>
      %77 = vector.multi_reduction <add>, %76, %cst_34 [1, 2] : vector<1x8x128xf32> to vector<1xf32>
      %78 = vector.shape_cast %77 : vector<1xf32> to vector<1x1x1xf32>
      %79 = vector.extract %78[0, 0, 0] : f32 from vector<1x1x1xf32>
      %cst_35 = arith.constant 1.250000e-01 : f32
      %80 = arith.mulf %79, %cst_35 : f32
      %c0_i32_36 = arith.constant 0 : i32
      %81 = vector.broadcast %c0_i32_36 : i32 to vector<8x128xi32>
      %82 = arith.cmpi eq, %72, %81 : vector<8x128xi32>
      %c0_i32_37 = arith.constant 0 : i32
      %83 = vector.broadcast %c0_i32_37 : i32 to vector<8x128xi32>
      %84 = arith.cmpi eq, %73, %83 : vector<8x128xi32>
      %85 = arith.andi %82, %84 : vector<8x128xi1>
      %86 = vector.broadcast %80 : f32 to vector<8x128xf32>
      %87 = arith.select %85, %86, %74 : vector<8x128xi1>, vector<8x128xf32>
      %cst_38 = arith.constant 1.000000e+00 : f32
      %88 = arith.mulf %cst_38, %80 : f32
      %cst_39 = arith.constant 0.000000e+00 : f32
      %89 = arith.addf %cst_39, %88 : f32
      %c0_40 = arith.constant 0 : index
      %c0_41 = arith.constant 0 : index
      %90 = vector.load %arg8[%c0_40, %c0_41] : memref<8x128xf32, #tpu.memory_space<vmem>>, vector<8x128xf32>
      %91 = vector.shape_cast %90 : vector<8x128xf32> to vector<1x8x128xf32>
      %cst_42 = arith.constant dense<0.000000e+00> : vector<1xf32>
      %92 = vector.multi_reduction <add>, %91, %cst_42 [1, 2] : vector<1x8x128xf32> to vector<1xf32>
      %93 = vector.shape_cast %92 : vector<1xf32> to vector<1x1x1xf32>
      %94 = vector.extract %93[0, 0, 0] : f32 from vector<1x1x1xf32>
      %cst_43 = arith.constant 1.250000e-01 : f32
      %95 = arith.mulf %94, %cst_43 : f32
      %c0_i32_44 = arith.constant 0 : i32
      %96 = vector.broadcast %c0_i32_44 : i32 to vector<8x128xi32>
      %97 = arith.cmpi eq, %72, %96 : vector<8x128xi32>
      %c1_i32_45 = arith.constant 1 : i32
      %98 = vector.broadcast %c1_i32_45 : i32 to vector<8x128xi32>
      %99 = arith.cmpi eq, %73, %98 : vector<8x128xi32>
      %100 = arith.andi %97, %99 : vector<8x128xi1>
      %101 = vector.broadcast %95 : f32 to vector<8x128xf32>
      %102 = arith.select %100, %101, %87 : vector<8x128xi1>, vector<8x128xf32>
      %cst_46 = arith.constant 5.000000e-01 : f32
      %103 = arith.mulf %cst_46, %95 : f32
      %104 = arith.addf %89, %103 : f32
      %c0_i32_47 = arith.constant 0 : i32
      %105 = vector.broadcast %c0_i32_47 : i32 to vector<8x128xi32>
      %106 = arith.cmpi eq, %72, %105 : vector<8x128xi32>
      %c2_i32 = arith.constant 2 : i32
      %107 = vector.broadcast %c2_i32 : i32 to vector<8x128xi32>
      %108 = arith.cmpi eq, %73, %107 : vector<8x128xi32>
      %109 = arith.andi %106, %108 : vector<8x128xi1>
      %110 = vector.broadcast %104 : f32 to vector<8x128xf32>
      %111 = arith.select %109, %110, %102 : vector<8x128xi1>, vector<8x128xf32>
      %c0_48 = arith.constant 0 : index
      %c0_49 = arith.constant 0 : index
      %112 = vector.load %arg6[%c0_48, %c0_49] : memref<8x128xf32, #tpu.memory_space<vmem>>, vector<8x128xf32>
      tpu.vector_store %arg6[%c0_48, %c0_49], %111 {strides = array<i32>} : memref<8x128xf32, #tpu.memory_space<vmem>>, vector<8x128xf32>,
    } else {
    }
    return
  }
  func.func @transform_0(%arg0: i32, %arg1: i32) -> (i32, i32, i32) {
    %c1_i32 = arith.constant 1 : i32
    %0 = arith.muli %arg0, %c1_i32 : i32
    %1 = arith.addi %0, %arg1 : i32
    %c0_i32 = arith.constant 0 : i32
    %c0_i32_0 = arith.constant 0 : i32
    %c0_i32_1 = arith.constant 0 : i32
    return %c0_i32, %1, %c0_i32_0 : i32, i32, i32
  }
  func.func @transform_1(%arg0: i32, %arg1: i32) -> (i32, i32, i32) {
    %c1_i32 = arith.constant 1 : i32
    %0 = arith.muli %arg0, %c1_i32 : i32
    %1 = arith.addi %0, %arg1 : i32
    %c0_i32 = arith.constant 0 : i32
    %c0_i32_0 = arith.constant 0 : i32
    %c0_i32_1 = arith.constant 0 : i32
    return %c0_i32, %1, %c0_i32_0 : i32, i32, i32
  }
  func.func @transform_2(%arg0: i32, %arg1: i32) -> (i32, i32) {
    %c1_i32 = arith.constant 1 : i32
    %0 = arith.muli %arg0, %c1_i32 : i32
    %1 = arith.addi %0, %arg1 : i32
    %c0_i32 = arith.constant 0 : i32
    %c0_i32_0 = arith.constant 0 : i32
    return %1, %c0_i32 : i32, i32
  }
  func.func @transform_3(%arg0: i32, %arg1: i32) -> (i32, i32) {
    %c1_i32 = arith.constant 1 : i32
    %0 = arith.muli %arg0, %c1_i32 : i32
    %1 = arith.addi %0, %arg1 : i32
    %c0_i32 = arith.constant 0 : i32
    %c0_i32_0 = arith.constant 0 : i32
    return %1, %c0_i32 : i32, i32
  }
  func.func @transform_4(%arg0: i32, %arg1: i32) -> (i32, i32) {
    %c0_i32 = arith.constant 0 : i32
    %c0_i32_0 = arith.constant 0 : i32
    return %arg0, %c0_i32 : i32, i32
  }
}

</mosaic_0001>

<llo_original>
// kernel: tpu_custom_call.1
$region0: #{tpu_custom_call.1}
  #allocation0 [shape = 'u32[]', space=smem, size = 0x4, offset = 0x4, fixed_abs, tag = 'smem constant byte address 0x4 - core index']
  #allocation1 [shape = 'u32[72,128]{1,0:T(1,128)}', space=vmem, size = 0x9000, scoped, tag = 'internal scratch']
  #allocation2 [shape = 'f32[8,128]{1,0:T(8,128)}', space=vmem, size = 0x1000, scoped, tag = 'scratch operand']
  #allocation3 [shape = 'f32[8,128]{1,0:T(8,128)}', space=vmem, size = 0x1000, scoped, tag = 'scratch operand']
  %s0 = inlined_call_operand.vmem [shape: f32[1,8,128], index: 0, kind: input, shape index: {}]
  %s1 = inlined_call_operand.hbm [shape: f32[1,8,128], index: 1, kind: input, shape index: {}]
  %s2 = inlined_call_operand.vmem [shape: f32[1024,128], index: 2, kind: input, shape index: {}]
  %s3 = inlined_call_operand.vmem [shape: s32[1024,1], index: 3, kind: input, shape index: {}]
  %s4 = inlined_call_operand.hbm [shape: f32[8,128], index: 4, kind: output, shape index: {}]
  %s5 = sld [smem:[#allocation0]]
  $region38: #{tpu_custom_call.1} parent=0
    _
  %s7 = ssub.s32 1, %s5
  %s8 = scalar_select 0, %s7, %s5
  $region1: #{tpu_custom_call.1} parent=0
    #allocation4 [shape = 'u8[4096]{0}', space=vmem, size = 0x1000, scoped, tag = 'input window, operand 1, single buffered']
    #allocation5 [shape = 's32[1]{0}', space=sflag, size = 0x4, scoped, tag = 'scoped memory for tpu_custom_call.1']
    #allocation6 [shape = 's32[1]{0}', space=sflag, size = 0x4, scoped, tag = 'scoped memory for tpu_custom_call.1']
    #allocation7 [shape = 'u8[4096]{0}', space=vmem, size = 0x1000, scoped, tag = 'output window, operand 0, single buffered']
    %9 = vsyncpa [#allocation5], 0
    %10 = vsyncpa [#allocation6], 0
    // Predicated region
    $region2: #{tpu_custom_call.1} parent=1 // pred_check
      _
    $region3: #{tpu_custom_call.1} parent=1 // pred_check_branch
      %12 = sbr.rel (0) target = $region5
    $region4: #{tpu_custom_call.1} parent=1 // pred_region
      %s13 = sadd.s32 0, 0
      %p14 = scmp.lt.s32.totalorder %s13, 0
      %s15 = scalar_select %p14, %s13, 0
      %s16 = smul.addr %s15, 8
      %s17 = scalar_lea.vmem %s0, %s16
      %s18 = sadd.s32 0, 0
    $region5: #{tpu_custom_call.1} parent=1 // pred_fallthru
      _
    // Predicated region
    $region6: #{tpu_custom_call.1} parent=1 // pred_check
      _
    $region7: #{tpu_custom_call.1} parent=1 // pred_check_branch
      %20 = sbr.rel (0) target = $region9
    $region8: #{tpu_custom_call.1} parent=1 // pred_region
      %s21 = sadd.s32 0, 0
      %23 = vsyncadd [#allocation5], 0
      %s24 = smul.addr %s21, 8
      %s25 = scalar_lea.hbm %s1, %s24
      %s27 = sshll.u32 %s25, 4
      %s28 = int_to_ptr.hbm [resolvable:$true] %s27
      %s29 = sshll.u32 [#allocation4], 4
      %s30 = int_to_ptr.vmem [resolvable:$true] %s29
      %32 = dma.hbm_to_vmem [thread:$0]  %s28, 128, %s30, [#allocation5]
    $region9: #{tpu_custom_call.1} parent=1 // pred_fallthru
      _
    // Predicated region
    $region10: #{tpu_custom_call.1} parent=1 // pred_check
      _
    $region11: #{tpu_custom_call.1} parent=1 // pred_check_branch
      %34 = sbr.rel (0) target = $region13
    $region12: #{tpu_custom_call.1} parent=1 // pred_region
      %s35 = sadd.s32 0, 0
      %s36 = smul.u32 128, %s35
      %p37 = scmp.lt.s32.totalorder %s36, 127
      %s38 = scalar_select %p37, %s36, 127
      %s39 = smul.addr %s38, 8
      %s40 = scalar_lea.vmem %s2, %s39
      %s41 = sadd.s32 0, 0
      %s42 = smul.u32 128, %s41
    $region13: #{tpu_custom_call.1} parent=1 // pred_fallthru
      _
    // Predicated region
    $region14: #{tpu_custom_call.1} parent=1 // pred_check
      _
    $region15: #{tpu_custom_call.1} parent=1 // pred_check_branch
      %44 = sbr.rel (0) target = $region17
    $region16: #{tpu_custom_call.1} parent=1 // pred_region
      %s45 = sadd.s32 0, 0
      %s46 = smul.u32 128, %s45
      %p47 = scmp.lt.s32.totalorder %s46, 127
      %s48 = scalar_select %p47, %s46, 127
      %s49 = smul.addr %s48, 8
      %s50 = scalar_lea.vmem %s3, %s49
      %s51 = sadd.s32 0, 0
      %s52 = smul.u32 128, %s51
    $region17: #{tpu_custom_call.1} parent=1 // pred_fallthru
      _
    // Predicated region
    $region18: #{tpu_custom_call.1} parent=1 // pred_check
      _
    $region19: #{tpu_custom_call.1} parent=1 // pred_check_branch
      %54 = sbr.rel (0) target = $region21
    $region20: #{tpu_custom_call.1} parent=1 // pred_region
      %56 = dma.done [#allocation5], 128
    $region21: #{tpu_custom_call.1} parent=1 // pred_fallthru
      _
    %s57 = sadd.s32 0, 0
    %p58 = scmp.lt.s32.totalorder %s57, 0
    %s59 = scalar_select %p58, %s57, 0
    %s60 = smul.addr %s59, 8
    %s61 = scalar_lea.vmem %s0, %s60
    %s62 = sadd.s32 0, 0
    %s63 = smul.u32 128, %s62
    %p64 = scmp.lt.s32.totalorder %s63, 127
    %s65 = scalar_select %p64, %s63, 127
    %s66 = smul.addr %s65, 8
    %s67 = scalar_lea.vmem %s2, %s66
    %s68 = sadd.s32 0, 0
    %s69 = smul.u32 128, %s68
    %p70 = scmp.lt.s32.totalorder %s69, 127
    %s71 = scalar_select %p70, %s69, 127
    %s72 = smul.addr %s71, 8
    %s73 = scalar_lea.vmem %s3, %s72
    %s74 = sadd.s32 0, 0
    %p75 = scmp.lt.s32.totalorder %s74, 0
    %s76 = scalar_select %p75, %s74, 0
    %s77 = smul.addr %s76, 8
    %s78 = scalar_lea.vmem %s0, %s77
    %s79 = sadd.s32 0, 0
    %s80 = sadd.s32 0, 0
    %s81 = sadd.s32 0, 0
    %s82 = smul.u32 128, %s81
    %p83 = scmp.lt.s32.totalorder %s82, 127
    %s84 = scalar_select %p83, %s82, 127
    %s85 = smul.addr %s84, 8
    %s86 = scalar_lea.vmem %s2, %s85
    %s87 = sadd.s32 0, 0
    %s88 = smul.u32 128, %s87
    %s89 = sadd.s32 0, 0
    %s90 = smul.u32 128, %s89
    %p91 = scmp.lt.s32.totalorder %s90, 127
    %s92 = scalar_select %p91, %s90, 127
    %s93 = smul.addr %s92, 8
    %s94 = scalar_lea.vmem %s3, %s93
    %s95 = sadd.s32 0, 0
    %s96 = smul.u32 128, %s95
    %s97 = sadd.s32 0, 0
    %p98 = scmp.eq.s32.totalorder 0, 0
    // Predicated region
    $region22: #{tpu_custom_call.1} parent=1 // pred_check
      %p99 = pneg %p98
    $region23: #{tpu_custom_call.1} parent=1 // pred_check_branch
      %101 = sbr.rel (%p99) target = $region25
    $region24: #{tpu_custom_call.1} parent=1 // pred_region
      %102 = vst [vmem:[#allocation2] sm:$0xff] 0.0
      %103 = vst [vmem:[#allocation3] sm:$0xff] 0.0
    $region25: #{tpu_custom_call.1} parent=1 // pred_fallthru
      _
    %v104 = vlaneseq
    %v105 = vshrl.u32 %v104, 7
    %v106 = vlaneseq
    %v107 = vand.u32 %v106, 127
    %s108 = smul.u32 %s97, 8
    %v109 = vstv %s108
    %v110 = vadd.s32 %v109, %v105
    %v111 = vmul.u32 %v110, 128
    %v112 = vadd.s32 %v111, %v107
    %vm113 = vcmp.lt.s32.totalorder %v112, 8
    %v114 = vld [vmem:[%s78] sm:$0xff]
    %v115 = vld [vmem:[#allocation4] sm:$0xff]
    %v116 = vmax.f32 %v114, 0.0
    %v117 = vmul.f32 %v114, %v115
    %v118 = vsub.f32 %v116, %v117
    %v119 = vand.u32 2147483647, %v114
    %v120 = vsub.f32 0.0, %v119
    %v121 = vmul.f32 %v120, 1.442695
    %v122 = vpow.pop %v121
    %v123 = vadd.f32 %v122, 1.0
    %v124 = vlog2.pop %v123
    %v125 = vmul.f32 %v124, 0.6931472
    %v126 = vmul.f32 -0.5, %v122
    %v127 = vadd.f32 %v126, 1.0
    %v128 = vmul.f32 %v127, %v122
    %v129 = vand.u32 2147483647, %v122
    %vm130 = vcmp.lt.f32.partialorder %v129, 0.0004427343
    %v131 = vsel %vm130, %v128, %v125
    %v132 = vadd.f32 %v118, %v131
    %v133 = vsel %vm113, %v132, 0.0
    %v134 = vld [vmem:[#allocation2] sm:$0xff]
    %v135 = vadd.f32 %v133, 0.0
    %v136 = vadd.f32 %v134, %v135
    %137 = vst [vmem:[#allocation2] sm:$0xff] %v136
    %v138 = vld [vmem:[%s86] sm:$0xff]
    %v139 = vld [vmem:[%s86 + $0x8] sm:$0xff]
    %v140 = vld [vmem:[%s86 + $0x10] sm:$0xff]
    %v141 = vld [vmem:[%s86 + $0x18] sm:$0xff]
    %v142 = vld [vmem:[%s86 + $0x20] sm:$0xff]
    %v143 = vld [vmem:[%s86 + $0x28] sm:$0xff]
    %v144 = vld [vmem:[%s86 + $0x30] sm:$0xff]
    %v145 = vld [vmem:[%s86 + $0x38] sm:$0xff]
    %v146 = vld [vmem:[%s86 + $0x40] sm:$0xff]
    %v147 = vld [vmem:[%s86 + $0x48] sm:$0xff]
    %v148 = vld [vmem:[%s86 + $0x50] sm:$0xff]
    %v149 = vld [vmem:[%s86 + $0x58] sm:$0xff]
    %v150 = vld [vmem:[%s86 + $0x60] sm:$0xff]
    %v151 = vld [vmem:[%s86 + $0x68] sm:$0xff]
    %v152 = vld [vmem:[%s86 + $0x70] sm:$0xff]
    %v153 = vld [vmem:[%s86 + $0x78] sm:$0xff]
    %v154 = vld [vmem:[%s86 + $0x80] sm:$0xff]
    %v155 = vld [vmem:[%s86 + $0x88] sm:$0xff]
    %v156 = vld [vmem:[%s86 + $0x90] sm:$0xff]
    %v157 = vld [vmem:[%s86 + $0x98] sm:$0xff]
    %v158 = vld [vmem:[%s86 + $0xa0] sm:$0xff]
    %v159 = vld [vmem:[%s86 + $0xa8] sm:$0xff]
    %v160 = vld [vmem:[%s86 + $0xb0] sm:$0xff]
    %v161 = vld [vmem:[%s86 + $0xb8] sm:$0xff]
    %v162 = vld [vmem:[%s86 + $0xc0] sm:$0xff]
    %v163 = vld [vmem:[%s86 + $0xc8] sm:$0xff]
    %v164 = vld [vmem:[%s86 + $0xd0] sm:$0xff]
    %v165 = vld [vmem:[%s86 + $0xd8] sm:$0xff]
    %v166 = vld [vmem:[%s86 + $0xe0] sm:$0xff]
    %v167 = vld [vmem:[%s86 + $0xe8] sm:$0xff]
    %v168 = vld [vmem:[%s86 + $0xf0] sm:$0xff]
    %v169 = vld [vmem:[%s86 + $0xf8] sm:$0xff]
    %v170 = vld [vmem:[%s86 + $0x100] sm:$0xff]
    %v171 = vld [vmem:[%s86 + $0x108] sm:$0xff]
    %v172 = vld [vmem:[%s86 + $0x110] sm:$0xff]
    %v173 = vld [vmem:[%s86 + $0x118] sm:$0xff]
    %v174 = vld [vmem:[%s86 + $0x120] sm:$0xff]
    %v175 = vld [vmem:[%s86 + $0x128] sm:$0xff]
    %v176 = vld [vmem:[%s86 + $0x130] sm:$0xff]
    %v177 = vld [vmem:[%s86 + $0x138] sm:$0xff]
    %v178 = vld [vmem:[%s86 + $0x140] sm:$0xff]
    %v179 = vld [vmem:[%s86 + $0x148] sm:$0xff]
    %v180 = vld [vmem:[%s86 + $0x150] sm:$0xff]
    %v181 = vld [vmem:[%s86 + $0x158] sm:$0xff]
    %v182 = vld [vmem:[%s86 + $0x160] sm:$0xff]
    %v183 = vld [vmem:[%s86 + $0x168] sm:$0xff]
    %v184 = vld [vmem:[%s86 + $0x170] sm:$0xff]
    %v185 = vld [vmem:[%s86 + $0x178] sm:$0xff]
    %v186 = vld [vmem:[%s86 + $0x180] sm:$0xff]
    %v187 = vld [vmem:[%s86 + $0x188] sm:$0xff]
    %v188 = vld [vmem:[%s86 + $0x190] sm:$0xff]
    %v189 = vld [vmem:[%s86 + $0x198] sm:$0xff]
    %v190 = vld [vmem:[%s86 + $0x1a0] sm:$0xff]
    %v191 = vld [vmem:[%s86 + $0x1a8] sm:$0xff]
    %v192 = vld [vmem:[%s86 + $0x1b0] sm:$0xff]
    %v193 = vld [vmem:[%s86 + $0x1b8] sm:$0xff]
    %v194 = vld [vmem:[%s86 + $0x1c0] sm:$0xff]
    %v195 = vld [vmem:[%s86 + $0x1c8] sm:$0xff]
    %v196 = vld [vmem:[%s86 + $0x1d0] sm:$0xff]
    %v197 = vld [vmem:[%s86 + $0x1d8] sm:$0xff]
    %v198 = vld [vmem:[%s86 + $0x1e0] sm:$0xff]
    %v199 = vld [vmem:[%s86 + $0x1e8] sm:$0xff]
    %v200 = vld [vmem:[%s86 + $0x1f0] sm:$0xff]
    %v201 = vld [vmem:[%s86 + $0x1f8] sm:$0xff]
    %v202 = vld [vmem:[%s86 + $0x200] sm:$0xff]
    %v203 = vld [vmem:[%s86 + $0x208] sm:$0xff]
    %v204 = vld [vmem:[%s86 + $0x210] sm:$0xff]
    %v205 = vld [vmem:[%s86 + $0x218] sm:$0xff]
    %v206 = vld [vmem:[%s86 + $0x220] sm:$0xff]
    %v207 = vld [vmem:[%s86 + $0x228] sm:$0xff]
    %v208 = vld [vmem:[%s86 + $0x230] sm:$0xff]
    %v209 = vld [vmem:[%s86 + $0x238] sm:$0xff]
    %v210 = vld [vmem:[%s86 + $0x240] sm:$0xff]
    %v211 = vld [vmem:[%s86 + $0x248] sm:$0xff]
    %v212 = vld [vmem:[%s86 + $0x250] sm:$0xff]
    %v213 = vld [vmem:[%s86 + $0x258] sm:$0xff]
    %v214 = vld [vmem:[%s86 + $0x260] sm:$0xff]
    %v215 = vld [vmem:[%s86 + $0x268] sm:$0xff]
    %v216 = vld [vmem:[%s86 + $0x270] sm:$0xff]
    %v217 = vld [vmem:[%s86 + $0x278] sm:$0xff]
    %v218 = vld [vmem:[%s86 + $0x280] sm:$0xff]
    %v219 = vld [vmem:[%s86 + $0x288] sm:$0xff]
    %v220 = vld [vmem:[%s86 + $0x290] sm:$0xff]
    %v221 = vld [vmem:[%s86 + $0x298] sm:$0xff]
    %v222 = vld [vmem:[%s86 + $0x2a0] sm:$0xff]
    %v223 = vld [vmem:[%s86 + $0x2a8] sm:$0xff]
    %v224 = vld [vmem:[%s86 + $0x2b0] sm:$0xff]
    %v225 = vld [vmem:[%s86 + $0x2b8] sm:$0xff]
    %v226 = vld [vmem:[%s86 + $0x2c0] sm:$0xff]
    %v227 = vld [vmem:[%s86 + $0x2c8] sm:$0xff]
    %v228 = vld [vmem:[%s86 + $0x2d0] sm:$0xff]
    %v229 = vld [vmem:[%s86 + $0x2d8] sm:$0xff]
    %v230 = vld [vmem:[%s86 + $0x2e0] sm:$0xff]
    %v231 = vld [vmem:[%s86 + $0x2e8] sm:$0xff]
    %v232 = vld [vmem:[%s86 + $0x2f0] sm:$0xff]
    %v233 = vld [vmem:[%s86 + $0x2f8] sm:$0xff]
    %v234 = vld [vmem:[%s86 + $0x300] sm:$0xff]
    %v235 = vld [vmem:[%s86 + $0x308] sm:$0xff]
    %v236 = vld [vmem:[%s86 + $0x310] sm:$0xff]
    %v237 = vld [vmem:[%s86 + $0x318] sm:$0xff]
    %v238 = vld [vmem:[%s86 + $0x320] sm:$0xff]
    %v239 = vld [vmem:[%s86 + $0x328] sm:$0xff]
    %v240 = vld [vmem:[%s86 + $0x330] sm:$0xff]
    %v241 = vld [vmem:[%s86 + $0x338] sm:$0xff]
    %v242 = vld [vmem:[%s86 + $0x340] sm:$0xff]
    %v243 = vld [vmem:[%s86 + $0x348] sm:$0xff]
    %v244 = vld [vmem:[%s86 + $0x350] sm:$0xff]
    %v245 = vld [vmem:[%s86 + $0x358] sm:$0xff]
    %v246 = vld [vmem:[%s86 + $0x360] sm:$0xff]
    %v247 = vld [vmem:[%s86 + $0x368] sm:$0xff]
    %v248 = vld [vmem:[%s86 + $0x370] sm:$0xff]
    %v249 = vld [vmem:[%s86 + $0x378] sm:$0xff]
    %v250 = vld [vmem:[%s86 + $0x380] sm:$0xff]
    %v251 = vld [vmem:[%s86 + $0x388] sm:$0xff]
    %v252 = vld [vmem:[%s86 + $0x390] sm:$0xff]
    %v253 = vld [vmem:[%s86 + $0x398] sm:$0xff]
    %v254 = vld [vmem:[%s86 + $0x3a0] sm:$0xff]
    %v255 = vld [vmem:[%s86 + $0x3a8] sm:$0xff]
    %v256 = vld [vmem:[%s86 + $0x3b0] sm:$0xff]
    %v257 = vld [vmem:[%s86 + $0x3b8] sm:$0xff]
    %v258 = vld [vmem:[%s86 + $0x3c0] sm:$0xff]
    %v259 = vld [vmem:[%s86 + $0x3c8] sm:$0xff]
    %v260 = vld [vmem:[%s86 + $0x3d0] sm:$0xff]
    %v261 = vld [vmem:[%s86 + $0x3d8] sm:$0xff]
    %v262 = vld [vmem:[%s86 + $0x3e0] sm:$0xff]
    %v263 = vld [vmem:[%s86 + $0x3e8] sm:$0xff]
    %v264 = vld [vmem:[%s86 + $0x3f0] sm:$0xff]
    %v265 = vld [vmem:[%s86 + $0x3f8] sm:$0xff]
    %v266 = vld [vmem:[%s94] sm:$0xff]
    %v267 = vld [vmem:[%s94 + $0x8] sm:$0xff]
    %v268 = vld [vmem:[%s94 + $0x10] sm:$0xff]
    %v269 = vld [vmem:[%s94 + $0x18] sm:$0xff]
    %v270 = vld [vmem:[%s94 + $0x20] sm:$0xff]
    %v271 = vld [vmem:[%s94 + $0x28] sm:$0xff]
    %v272 = vld [vmem:[%s94 + $0x30] sm:$0xff]
    %v273 = vld [vmem:[%s94 + $0x38] sm:$0xff]
    %v274 = vld [vmem:[%s94 + $0x40] sm:$0xff]
    %v275 = vld [vmem:[%s94 + $0x48] sm:$0xff]
    %v276 = vld [vmem:[%s94 + $0x50] sm:$0xff]
    %v277 = vld [vmem:[%s94 + $0x58] sm:$0xff]
    %v278 = vld [vmem:[%s94 + $0x60] sm:$0xff]
    %v279 = vld [vmem:[%s94 + $0x68] sm:$0xff]
    %v280 = vld [vmem:[%s94 + $0x70] sm:$0xff]
    %v281 = vld [vmem:[%s94 + $0x78] sm:$0xff]
    %v282 = vld [vmem:[%s94 + $0x80] sm:$0xff]
    %v283 = vld [vmem:[%s94 + $0x88] sm:$0xff]
    %v284 = vld [vmem:[%s94 + $0x90] sm:$0xff]
    %v285 = vld [vmem:[%s94 + $0x98] sm:$0xff]
    %v286 = vld [vmem:[%s94 + $0xa0] sm:$0xff]
    %v287 = vld [vmem:[%s94 + $0xa8] sm:$0xff]
    %v288 = vld [vmem:[%s94 + $0xb0] sm:$0xff]
    %v289 = vld [vmem:[%s94 + $0xb8] sm:$0xff]
    %v290 = vld [vmem:[%s94 + $0xc0] sm:$0xff]
    %v291 = vld [vmem:[%s94 + $0xc8] sm:$0xff]
    %v292 = vld [vmem:[%s94 + $0xd0] sm:$0xff]
    %v293 = vld [vmem:[%s94 + $0xd8] sm:$0xff]
    %v294 = vld [vmem:[%s94 + $0xe0] sm:$0xff]
    %v295 = vld [vmem:[%s94 + $0xe8] sm:$0xff]
    %v296 = vld [vmem:[%s94 + $0xf0] sm:$0xff]
    %v297 = vld [vmem:[%s94 + $0xf8] sm:$0xff]
    %v298 = vld [vmem:[%s94 + $0x100] sm:$0xff]
    %v299 = vld [vmem:[%s94 + $0x108] sm:$0xff]
    %v300 = vld [vmem:[%s94 + $0x110] sm:$0xff]
    %v301 = vld [vmem:[%s94 + $0x118] sm:$0xff]
    %v302 = vld [vmem:[%s94 + $0x120] sm:$0xff]
    %v303 = vld [vmem:[%s94 + $0x128] sm:$0xff]
    %v304 = vld [vmem:[%s94 + $0x130] sm:$0xff]
    %v305 = vld [vmem:[%s94 + $0x138] sm:$0xff]
    %v306 = vld [vmem:[%s94 + $0x140] sm:$0xff]
    %v307 = vld [vmem:[%s94 + $0x148] sm:$0xff]
    %v308 = vld [vmem:[%s94 + $0x150] sm:$0xff]
    %v309 = vld [vmem:[%s94 + $0x158] sm:$0xff]
    %v310 = vld [vmem:[%s94 + $0x160] sm:$0xff]
    %v311 = vld [vmem:[%s94 + $0x168] sm:$0xff]
    %v312 = vld [vmem:[%s94 + $0x170] sm:$0xff]
    %v313 = vld [vmem:[%s94 + $0x178] sm:$0xff]
    %v314 = vld [vmem:[%s94 + $0x180] sm:$0xff]
    %v315 = vld [vmem:[%s94 + $0x188] sm:$0xff]
    %v316 = vld [vmem:[%s94 + $0x190] sm:$0xff]
    %v317 = vld [vmem:[%s94 + $0x198] sm:$0xff]
    %v318 = vld [vmem:[%s94 + $0x1a0] sm:$0xff]
    %v319 = vld [vmem:[%s94 + $0x1a8] sm:$0xff]
    %v320 = vld [vmem:[%s94 + $0x1b0] sm:$0xff]
    %v321 = vld [vmem:[%s94 + $0x1b8] sm:$0xff]
    %v322 = vld [vmem:[%s94 + $0x1c0] sm:$0xff]
    %v323 = vld [vmem:[%s94 + $0x1c8] sm:$0xff]
    %v324 = vld [vmem:[%s94 + $0x1d0] sm:$0xff]
    %v325 = vld [vmem:[%s94 + $0x1d8] sm:$0xff]
    %v326 = vld [vmem:[%s94 + $0x1e0] sm:$0xff]
    %v327 = vld [vmem:[%s94 + $0x1e8] sm:$0xff]
    %v328 = vld [vmem:[%s94 + $0x1f0] sm:$0xff]
    %v329 = vld [vmem:[%s94 + $0x1f8] sm:$0xff]
    %v330 = vld [vmem:[%s94 + $0x200] sm:$0xff]
    %v331 = vld [vmem:[%s94 + $0x208] sm:$0xff]
    %v332 = vld [vmem:[%s94 + $0x210] sm:$0xff]
    %v333 = vld [vmem:[%s94 + $0x218] sm:$0xff]
    %v334 = vld [vmem:[%s94 + $0x220] sm:$0xff]
    %v335 = vld [vmem:[%s94 + $0x228] sm:$0xff]
    %v336 = vld [vmem:[%s94 + $0x230] sm:$0xff]
    %v337 = vld [vmem:[%s94 + $0x238] sm:$0xff]
    %v338 = vld [vmem:[%s94 + $0x240] sm:$0xff]
    %v339 = vld [vmem:[%s94 + $0x248] sm:$0xff]
    %v340 = vld [vmem:[%s94 + $0x250] sm:$0xff]
    %v341 = vld [vmem:[%s94 + $0x258] sm:$0xff]
    %v342 = vld [vmem:[%s94 + $0x260] sm:$0xff]
    %v343 = vld [vmem:[%s94 + $0x268] sm:$0xff]
    %v344 = vld [vmem:[%s94 + $0x270] sm:$0xff]
    %v345 = vld [vmem:[%s94 + $0x278] sm:$0xff]
    %v346 = vld [vmem:[%s94 + $0x280] sm:$0xff]
    %v347 = vld [vmem:[%s94 + $0x288] sm:$0xff]
    %v348 = vld [vmem:[%s94 + $0x290] sm:$0xff]
    %v349 = vld [vmem:[%s94 + $0x298] sm:$0xff]
    %v350 = vld [vmem:[%s94 + $0x2a0] sm:$0xff]
    %v351 = vld [vmem:[%s94 + $0x2a8] sm:$0xff]
    %v352 = vld [vmem:[%s94 + $0x2b0] sm:$0xff]
    %v353 = vld [vmem:[%s94 + $0x2b8] sm:$0xff]
    %v354 = vld [vmem:[%s94 + $0x2c0] sm:$0xff]
    %v355 = vld [vmem:[%s94 + $0x2c8] sm:$0xff]
    %v356 = vld [vmem:[%s94 + $0x2d0] sm:$0xff]
    %v357 = vld [vmem:[%s94 + $0x2d8] sm:$0xff]
    %v358 = vld [vmem:[%s94 + $0x2e0] sm:$0xff]
    %v359 = vld [vmem:[%s94 + $0x2e8] sm:$0xff]
    %v360 = vld [vmem:[%s94 + $0x2f0] sm:$0xff]
    %v361 = vld [vmem:[%s94 + $0x2f8] sm:$0xff]
    %v362 = vld [vmem:[%s94 + $0x300] sm:$0xff]
    %v363 = vld [vmem:[%s94 + $0x308] sm:$0xff]
    %v364 = vld [vmem:[%s94 + $0x310] sm:$0xff]
    %v365 = vld [vmem:[%s94 + $0x318] sm:$0xff]
    %v366 = vld [vmem:[%s94 + $0x320] sm:$0xff]
    %v367 = vld [vmem:[%s94 + $0x328] sm:$0xff]
    %v368 = vld [vmem:[%s94 + $0x330] sm:$0xff]
    %v369 = vld [vmem:[%s94 + $0x338] sm:$0xff]
    %v370 = vld [vmem:[%s94 + $0x340] sm:$0xff]
    %v371 = vld [vmem:[%s94 + $0x348] sm:$0xff]
    %v372 = vld [vmem:[%s94 + $0x350] sm:$0xff]
    %v373 = vld [vmem:[%s94 + $0x358] sm:$0xff]
    %v374 = vld [vmem:[%s94 + $0x360] sm:$0xff]
    %v375 = vld [vmem:[%s94 + $0x368] sm:$0xff]
    %v376 = vld [vmem:[%s94 + $0x370] sm:$0xff]
    %v377 = vld [vmem:[%s94 + $0x378] sm:$0xff]
    %v378 = vld [vmem:[%s94 + $0x380] sm:$0xff]
    %v379 = vld [vmem:[%s94 + $0x388] sm:$0xff]
    %v380 = vld [vmem:[%s94 + $0x390] sm:$0xff]
    %v381 = vld [vmem:[%s94 + $0x398] sm:$0xff]
    %v382 = vld [vmem:[%s94 + $0x3a0] sm:$0xff]
    %v383 = vld [vmem:[%s94 + $0x3a8] sm:$0xff]
    %v384 = vld [vmem:[%s94 + $0x3b0] sm:$0xff]
    %v385 = vld [vmem:[%s94 + $0x3b8] sm:$0xff]
    %v386 = vld [vmem:[%s94 + $0x3c0] sm:$0xff]
    %v387 = vld [vmem:[%s94 + $0x3c8] sm:$0xff]
    %v388 = vld [vmem:[%s94 + $0x3d0] sm:$0xff]
    %v389 = vld [vmem:[%s94 + $0x3d8] sm:$0xff]
    %v390 = vld [vmem:[%s94 + $0x3e0] sm:$0xff]
    %v391 = vld [vmem:[%s94 + $0x3e8] sm:$0xff]
    %v392 = vld [vmem:[%s94 + $0x3f0] sm:$0xff]
    %v393 = vld [vmem:[%s94 + $0x3f8] sm:$0xff]
    %v394 = vadd.s32 %v105, 8
    %v395 = vadd.s32 %v105, 16
    %v396 = vadd.s32 %v105, 24
    %v397 = vadd.s32 %v105, 32
    %v398 = vadd.s32 %v105, 40
    %v399 = vadd.s32 %v105, 48
    %v400 = vadd.s32 %v105, 56
    %v401 = vadd.s32 %v105, 64
    %v402 = vadd.s32 %v105, 72
    %v403 = vadd.s32 %v105, 80
    %v404 = vadd.s32 %v105, 88
    %v405 = vadd.s32 %v105, 96
    %v406 = vadd.s32 %v105, 104
    %v407 = vadd.s32 %v105, 112
    %v408 = vadd.s32 %v105, 120
    %v409 = vadd.s32 %v105, 128
    %v410 = vadd.s32 %v105, 136
    %v411 = vadd.s32 %v105, 144
    %v412 = vadd.s32 %v105, 152
    %v413 = vadd.s32 %v105, 160
    %v414 = vadd.s32 %v105, 168
    %v415 = vadd.s32 %v105, 176
    %v416 = vadd.s32 %v105, 184
    %v417 = vadd.s32 %v105, 192
    %v418 = vadd.s32 %v105, 200
    %v419 = vadd.s32 %v105, 208
    %v420 = vadd.s32 %v105, 216
    %v421 = vadd.s32 %v105, 224
    %v422 = vadd.s32 %v105, 232
    %v423 = vadd.s32 %v105, 240
    %v424 = vadd.s32 %v105, 248
    %v425 = vadd.s32 %v105, 256
    %v426 = vadd.s32 %v105, 264
    %v427 = vadd.s32 %v105, 272
    %v428 = vadd.s32 %v105, 280
    %v429 = vadd.s32 %v105, 288
    %v430 = vadd.s32 %v105, 296
    %v431 = vadd.s32 %v105, 304
    %v432 = vadd.s32 %v105, 312
    %v433 = vadd.s32 %v105, 320
    %v434 = vadd.s32 %v105, 328
    %v435 = vadd.s32 %v105, 336
    %v436 = vadd.s32 %v105, 344
    %v437 = vadd.s32 %v105, 352
    %v438 = vadd.s32 %v105, 360
    %v439 = vadd.s32 %v105, 368
    %v440 = vadd.s32 %v105, 376
    %v441 = vadd.s32 %v105, 384
    %v442 = vadd.s32 %v105, 392
    %v443 = vadd.s32 %v105, 400
    %v444 = vadd.s32 %v105, 408
    %v445 = vadd.s32 %v105, 416
    %v446 = vadd.s32 %v105, 424
    %v447 = vadd.s32 %v105, 432
    %v448 = vadd.s32 %v105, 440
    %v449 = vadd.s32 %v105, 448
    %v450 = vadd.s32 %v105, 456
    %v451 = vadd.s32 %v105, 464
    %v452 = vadd.s32 %v105, 472
    %v453 = vadd.s32 %v105, 480
    %v454 = vadd.s32 %v105, 488
    %v455 = vadd.s32 %v105, 496
    %v456 = vadd.s32 %v105, 504
    %v457 = vadd.s32 %v105, 512
    %v458 = vadd.s32 %v105, 520
    %v459 = vadd.s32 %v105, 528
    %v460 = vadd.s32 %v105, 536
    %v461 = vadd.s32 %v105, 544
    %v462 = vadd.s32 %v105, 552
    %v463 = vadd.s32 %v105, 560
    %v464 = vadd.s32 %v105, 568
    %v465 = vadd.s32 %v105, 576
    %v466 = vadd.s32 %v105, 584
    %v467 = vadd.s32 %v105, 592
    %v468 = vadd.s32 %v105, 600
    %v469 = vadd.s32 %v105, 608
    %v470 = vadd.s32 %v105, 616
    %v471 = vadd.s32 %v105, 624
    %v472 = vadd.s32 %v105, 632
    %v473 = vadd.s32 %v105, 640
    %v474 = vadd.s32 %v105, 648
    %v475 = vadd.s32 %v105, 656
    %v476 = vadd.s32 %v105, 664
    %v477 = vadd.s32 %v105, 672
    %v478 = vadd.s32 %v105, 680
    %v479 = vadd.s32 %v105, 688
    %v480 = vadd.s32 %v105, 696
    %v481 = vadd.s32 %v105, 704
    %v482 = vadd.s32 %v105, 712
    %v483 = vadd.s32 %v105, 720
    %v484 = vadd.s32 %v105, 728
    %v485 = vadd.s32 %v105, 736
    %v486 = vadd.s32 %v105, 744
    %v487 = vadd.s32 %v105, 752
    %v488 = vadd.s32 %v105, 760
    %v489 = vadd.s32 %v105, 768
    %v490 = vadd.s32 %v105, 776
    %v491 = vadd.s32 %v105, 784
    %v492 = vadd.s32 %v105, 792
    %v493 = vadd.s32 %v105, 800
    %v494 = vadd.s32 %v105, 808
    %v495 = vadd.s32 %v105, 816
    %v496 = vadd.s32 %v105, 824
    %v497 = vadd.s32 %v105, 832
    %v498 = vadd.s32 %v105, 840
    %v499 = vadd.s32 %v105, 848
    %v500 = vadd.s32 %v105, 856
    %v501 = vadd.s32 %v105, 864
    %v502 = vadd.s32 %v105, 872
    %v503 = vadd.s32 %v105, 880
    %v504 = vadd.s32 %v105, 888
    %v505 = vadd.s32 %v105, 896
    %v506 = vadd.s32 %v105, 904
    %v507 = vadd.s32 %v105, 912
    %v508 = vadd.s32 %v105, 920
    %v509 = vadd.s32 %v105, 928
    %v510 = vadd.s32 %v105, 936
    %v511 = vadd.s32 %v105, 944
    %v512 = vadd.s32 %v105, 952
    %v513 = vadd.s32 %v105, 960
    %v514 = vadd.s32 %v105, 968
    %v515 = vadd.s32 %v105, 976
    %v516 = vadd.s32 %v105, 984
    %v517 = vadd.s32 %v105, 992
    %v518 = vadd.s32 %v105, 1000
    %v519 = vadd.s32 %v105, 1008
    %v520 = vadd.s32 %v105, 1016
    %s521 = smul.u32 %s97, 1024
    %v522 = vstv %s521
    %v523 = vadd.s32 %v522, %v105
    %v524 = vadd.s32 %v522, %v394
    %v525 = vadd.s32 %v522, %v395
    %v526 = vadd.s32 %v522, %v396
    %v527 = vadd.s32 %v522, %v397
    %v528 = vadd.s32 %v522, %v398
    %v529 = vadd.s32 %v522, %v399
    %v530 = vadd.s32 %v522, %v400
    %v531 = vadd.s32 %v522, %v401
    %v532 = vadd.s32 %v522, %v402
    %v533 = vadd.s32 %v522, %v403
    %v534 = vadd.s32 %v522, %v404
    %v535 = vadd.s32 %v522, %v405
    %v536 = vadd.s32 %v522, %v406
    %v537 = vadd.s32 %v522, %v407
    %v538 = vadd.s32 %v522, %v408
    %v539 = vadd.s32 %v522, %v409
    %v540 = vadd.s32 %v522, %v410
    %v541 = vadd.s32 %v522, %v411
    %v542 = vadd.s32 %v522, %v412
    %v543 = vadd.s32 %v522, %v413
    %v544 = vadd.s32 %v522, %v414
    %v545 = vadd.s32 %v522, %v415
    %v546 = vadd.s32 %v522, %v416
    %v547 = vadd.s32 %v522, %v417
    %v548 = vadd.s32 %v522, %v418
    %v549 = vadd.s32 %v522, %v419
    %v550 = vadd.s32 %v522, %v420
    %v551 = vadd.s32 %v522, %v421
    %v552 = vadd.s32 %v522, %v422
    %v553 = vadd.s32 %v522, %v423
    %v554 = vadd.s32 %v522, %v424
    %v555 = vadd.s32 %v522, %v425
    %v556 = vadd.s32 %v522, %v426
    %v557 = vadd.s32 %v522, %v427
    %v558 = vadd.s32 %v522, %v428
    %v559 = vadd.s32 %v522, %v429
    %v560 = vadd.s32 %v522, %v430
    %v561 = vadd.s32 %v522, %v431
    %v562 = vadd.s32 %v522, %v432
    %v563 = vadd.s32 %v522, %v433
    %v564 = vadd.s32 %v522, %v434
    %v565 = vadd.s32 %v522, %v435
    %v566 = vadd.s32 %v522, %v436
    %v567 = vadd.s32 %v522, %v437
    %v568 = vadd.s32 %v522, %v438
    %v569 = vadd.s32 %v522, %v439
    %v570 = vadd.s32 %v522, %v440
    %v571 = vadd.s32 %v522, %v441
    %v572 = vadd.s32 %v522, %v442
    %v573 = vadd.s32 %v522, %v443
    %v574 = vadd.s32 %v522, %v444
    %v575 = vadd.s32 %v522, %v445
    %v576 = vadd.s32 %v522, %v446
    %v577 = vadd.s32 %v522, %v447
    %v578 = vadd.s32 %v522, %v448
    %v579 = vadd.s32 %v522, %v449
    %v580 = vadd.s32 %v522, %v450
    %v581 = vadd.s32 %v522, %v451
    %v582 = vadd.s32 %v522, %v452
    %v583 = vadd.s32 %v522, %v453
    %v584 = vadd.s32 %v522, %v454
    %v585 = vadd.s32 %v522, %v455
    %v586 = vadd.s32 %v522, %v456
    %v587 = vadd.s32 %v522, %v457
    %v588 = vadd.s32 %v522, %v458
    %v589 = vadd.s32 %v522, %v459
    %v590 = vadd.s32 %v522, %v460
    %v591 = vadd.s32 %v522, %v461
    %v592 = vadd.s32 %v522, %v462
    %v593 = vadd.s32 %v522, %v463
    %v594 = vadd.s32 %v522, %v464
    %v595 = vadd.s32 %v522, %v465
    %v596 = vadd.s32 %v522, %v466
    %v597 = vadd.s32 %v522, %v467
    %v598 = vadd.s32 %v522, %v468
    %v599 = vadd.s32 %v522, %v469
    %v600 = vadd.s32 %v522, %v470
    %v601 = vadd.s32 %v522, %v471
    %v602 = vadd.s32 %v522, %v472
    %v603 = vadd.s32 %v522, %v473
    %v604 = vadd.s32 %v522, %v474
    %v605 = vadd.s32 %v522, %v475
    %v606 = vadd.s32 %v522, %v476
    %v607 = vadd.s32 %v522, %v477
    %v608 = vadd.s32 %v522, %v478
    %v609 = vadd.s32 %v522, %v479
    %v610 = vadd.s32 %v522, %v480
    %v611 = vadd.s32 %v522, %v481
    %v612 = vadd.s32 %v522, %v482
    %v613 = vadd.s32 %v522, %v483
    %v614 = vadd.s32 %v522, %v484
    %v615 = vadd.s32 %v522, %v485
    %v616 = vadd.s32 %v522, %v486
    %v617 = vadd.s32 %v522, %v487
    %v618 = vadd.s32 %v522, %v488
    %v619 = vadd.s32 %v522, %v489
    %v620 = vadd.s32 %v522, %v490
    %v621 = vadd.s32 %v522, %v491
    %v622 = vadd.s32 %v522, %v492
    %v623 = vadd.s32 %v522, %v493
    %v624 = vadd.s32 %v522, %v494
    %v625 = vadd.s32 %v522, %v495
    %v626 = vadd.s32 %v522, %v496
    %v627 = vadd.s32 %v522, %v497
    %v628 = vadd.s32 %v522, %v498
    %v629 = vadd.s32 %v522, %v499
    %v630 = vadd.s32 %v522, %v500
    %v631 = vadd.s32 %v522, %v501
    %v632 = vadd.s32 %v522, %v502
    %v633 = vadd.s32 %v522, %v503
    %v634 = vadd.s32 %v522, %v504
    %v635 = vadd.s32 %v522, %v505
    %v636 = vadd.s32 %v522, %v506
    %v637 = vadd.s32 %v522, %v507
    %v638 = vadd.s32 %v522, %v508
    %v639 = vadd.s32 %v522, %v509
    %v640 = vadd.s32 %v522, %v510
    %v641 = vadd.s32 %v522, %v511
    %v642 = vadd.s32 %v522, %v512
    %v643 = vadd.s32 %v522, %v513
    %v644 = vadd.s32 %v522, %v514
    %v645 = vadd.s32 %v522, %v515
    %v646 = vadd.s32 %v522, %v516
    %v647 = vadd.s32 %v522, %v517
    %v648 = vadd.s32 %v522, %v518
    %v649 = vadd.s32 %v522, %v519
    %v650 = vadd.s32 %v522, %v520
    %vm651 = vcmp.lt.s32.totalorder %v523, 8
    %vm652 = vcmp.lt.s32.totalorder %v524, 8
    %vm653 = vcmp.lt.s32.totalorder %v525, 8
    %vm654 = vcmp.lt.s32.totalorder %v526, 8
    %vm655 = vcmp.lt.s32.totalorder %v527, 8
    %vm656 = vcmp.lt.s32.totalorder %v528, 8
    %vm657 = vcmp.lt.s32.totalorder %v529, 8
    %vm658 = vcmp.lt.s32.totalorder %v530, 8
    %vm659 = vcmp.lt.s32.totalorder %v531, 8
    %vm660 = vcmp.lt.s32.totalorder %v532, 8
    %vm661 = vcmp.lt.s32.totalorder %v533, 8
    %vm662 = vcmp.lt.s32.totalorder %v534, 8
    %vm663 = vcmp.lt.s32.totalorder %v535, 8
    %vm664 = vcmp.lt.s32.totalorder %v536, 8
    %vm665 = vcmp.lt.s32.totalorder %v537, 8
    %vm666 = vcmp.lt.s32.totalorder %v538, 8
    %vm667 = vcmp.lt.s32.totalorder %v539, 8
    %vm668 = vcmp.lt.s32.totalorder %v540, 8
    %vm669 = vcmp.lt.s32.totalorder %v541, 8
    %vm670 = vcmp.lt.s32.totalorder %v542, 8
    %vm671 = vcmp.lt.s32.totalorder %v543, 8
    %vm672 = vcmp.lt.s32.totalorder %v544, 8
    %vm673 = vcmp.lt.s32.totalorder %v545, 8
    %vm674 = vcmp.lt.s32.totalorder %v546, 8
    %vm675 = vcmp.lt.s32.totalorder %v547, 8
    %vm676 = vcmp.lt.s32.totalorder %v548, 8
    %vm677 = vcmp.lt.s32.totalorder %v549, 8
    %vm678 = vcmp.lt.s32.totalorder %v550, 8
    %vm679 = vcmp.lt.s32.totalorder %v551, 8
    %vm680 = vcmp.lt.s32.totalorder %v552, 8
    %vm681 = vcmp.lt.s32.totalorder %v553, 8
    %vm682 = vcmp.lt.s32.totalorder %v554, 8
    %vm683 = vcmp.lt.s32.totalorder %v555, 8
    %vm684 = vcmp.lt.s32.totalorder %v556, 8
    %vm685 = vcmp.lt.s32.totalorder %v557, 8
    %vm686 = vcmp.lt.s32.totalorder %v558, 8
    %vm687 = vcmp.lt.s32.totalorder %v559, 8
    %vm688 = vcmp.lt.s32.totalorder %v560, 8
    %vm689 = vcmp.lt.s32.totalorder %v561, 8
    %vm690 = vcmp.lt.s32.totalorder %v562, 8
    %vm691 = vcmp.lt.s32.totalorder %v563, 8
    %vm692 = vcmp.lt.s32.totalorder %v564, 8
    %vm693 = vcmp.lt.s32.totalorder %v565, 8
    %vm694 = vcmp.lt.s32.totalorder %v566, 8
    %vm695 = vcmp.lt.s32.totalorder %v567, 8
    %vm696 = vcmp.lt.s32.totalorder %v568, 8
    %vm697 = vcmp.lt.s32.totalorder %v569, 8
    %vm698 = vcmp.lt.s32.totalorder %v570, 8
    %vm699 = vcmp.lt.s32.totalorder %v571, 8
    %vm700 = vcmp.lt.s32.totalorder %v572, 8
    %vm701 = vcmp.lt.s32.totalorder %v573, 8
    %vm702 = vcmp.lt.s32.totalorder %v574, 8
    %vm703 = vcmp.lt.s32.totalorder %v575, 8
    %vm704 = vcmp.lt.s32.totalorder %v576, 8
    %vm705 = vcmp.lt.s32.totalorder %v577, 8
    %vm706 = vcmp.lt.s32.totalorder %v578, 8
    %vm707 = vcmp.lt.s32.totalorder %v579, 8
    %vm708 = vcmp.lt.s32.totalorder %v580, 8
    %vm709 = vcmp.lt.s32.totalorder %v581, 8
    %vm710 = vcmp.lt.s32.totalorder %v582, 8
    %vm711 = vcmp.lt.s32.totalorder %v583, 8
    %vm712 = vcmp.lt.s32.totalorder %v584, 8
    %vm713 = vcmp.lt.s32.totalorder %v585, 8
    %vm714 = vcmp.lt.s32.totalorder %v586, 8
    %vm715 = vcmp.lt.s32.totalorder %v587, 8
    %vm716 = vcmp.lt.s32.totalorder %v588, 8
    %vm717 = vcmp.lt.s32.totalorder %v589, 8
    %vm718 = vcmp.lt.s32.totalorder %v590, 8
    %vm719 = vcmp.lt.s32.totalorder %v591, 8
    %vm720 = vcmp.lt.s32.totalorder %v592, 8
    %vm721 = vcmp.lt.s32.totalorder %v593, 8
    %vm722 = vcmp.lt.s32.totalorder %v594, 8
    %vm723 = vcmp.lt.s32.totalorder %v595, 8
    %vm724 = vcmp.lt.s32.totalorder %v596, 8
    %vm725 = vcmp.lt.s32.totalorder %v597, 8
    %vm726 = vcmp.lt.s32.totalorder %v598, 8
    %vm727 = vcmp.lt.s32.totalorder %v599, 8
    %vm728 = vcmp.lt.s32.totalorder %v600, 8
    %vm729 = vcmp.lt.s32.totalorder %v601, 8
    %vm730 = vcmp.lt.s32.totalorder %v602, 8
    %vm731 = vcmp.lt.s32.totalorder %v603, 8
    %vm732 = vcmp.lt.s32.totalorder %v604, 8
    %vm733 = vcmp.lt.s32.totalorder %v605, 8
    %vm734 = vcmp.lt.s32.totalorder %v606, 8
    %vm735 = vcmp.lt.s32.totalorder %v607, 8
    %vm736 = vcmp.lt.s32.totalorder %v608, 8
    %vm737 = vcmp.lt.s32.totalorder %v609, 8
    %vm738 = vcmp.lt.s32.totalorder %v610, 8
    %vm739 = vcmp.lt.s32.totalorder %v611, 8
    %vm740 = vcmp.lt.s32.totalorder %v612, 8
    %vm741 = vcmp.lt.s32.totalorder %v613, 8
    %vm742 = vcmp.lt.s32.totalorder %v614, 8
    %vm743 = vcmp.lt.s32.totalorder %v615, 8
    %vm744 = vcmp.lt.s32.totalorder %v616, 8
    %vm745 = vcmp.lt.s32.totalorder %v617, 8
    %vm746 = vcmp.lt.s32.totalorder %v618, 8
    %vm747 = vcmp.lt.s32.totalorder %v619, 8
    %vm748 = vcmp.lt.s32.totalorder %v620, 8
    %vm749 = vcmp.lt.s32.totalorder %v621, 8
    %vm750 = vcmp.lt.s32.totalorder %v622, 8
    %vm751 = vcmp.lt.s32.totalorder %v623, 8
    %vm752 = vcmp.lt.s32.totalorder %v624, 8
    %vm753 = vcmp.lt.s32.totalorder %v625, 8
    %vm754 = vcmp.lt.s32.totalorder %v626, 8
    %vm755 = vcmp.lt.s32.totalorder %v627, 8
    %vm756 = vcmp.lt.s32.totalorder %v628, 8
    %vm757 = vcmp.lt.s32.totalorder %v629, 8
    %vm758 = vcmp.lt.s32.totalorder %v630, 8
    %vm759 = vcmp.lt.s32.totalorder %v631, 8
    %vm760 = vcmp.lt.s32.totalorder %v632, 8
    %vm761 = vcmp.lt.s32.totalorder %v633, 8
    %vm762 = vcmp.lt.s32.totalorder %v634, 8
    %vm763 = vcmp.lt.s32.totalorder %v635, 8
    %vm764 = vcmp.lt.s32.totalorder %v636, 8
    %vm765 = vcmp.lt.s32.totalorder %v637, 8
    %vm766 = vcmp.lt.s32.totalorder %v638, 8
    %vm767 = vcmp.lt.s32.totalorder %v639, 8
    %vm768 = vcmp.lt.s32.totalorder %v640, 8
    %vm769 = vcmp.lt.s32.totalorder %v641, 8
    %vm770 = vcmp.lt.s32.totalorder %v642, 8
    %vm771 = vcmp.lt.s32.totalorder %v643, 8
    %vm772 = vcmp.lt.s32.totalorder %v644, 8
    %vm773 = vcmp.lt.s32.totalorder %v645, 8
    %vm774 = vcmp.lt.s32.totalorder %v646, 8
    %vm775 = vcmp.lt.s32.totalorder %v647, 8
    %vm776 = vcmp.lt.s32.totalorder %v648, 8
    %vm777 = vcmp.lt.s32.totalorder %v649, 8
    %vm778 = vcmp.lt.s32.totalorder %v650, 8
    %779 = vmax.xlane.f32.xlu0 %v138
    %v780 = vpop.xlane.xlu0 %779
    %781 = vmax.xlane.f32.xlu0 %v139
    %v782 = vpop.xlane.xlu0 %781
    %783 = vmax.xlane.f32.xlu0 %v140
    %v784 = vpop.xlane.xlu0 %783
    %785 = vmax.xlane.f32.xlu0 %v141
    %v786 = vpop.xlane.xlu0 %785
    %787 = vmax.xlane.f32.xlu0 %v142
    %v788 = vpop.xlane.xlu0 %787
    %789 = vmax.xlane.f32.xlu0 %v143
    %v790 = vpop.xlane.xlu0 %789
    %791 = vmax.xlane.f32.xlu0 %v144
    %v792 = vpop.xlane.xlu0 %791
    %793 = vmax.xlane.f32.xlu0 %v145
    %v794 = vpop.xlane.xlu0 %793
    %795 = vmax.xlane.f32.xlu0 %v146
    %v796 = vpop.xlane.xlu0 %795
    %797 = vmax.xlane.f32.xlu0 %v147
    %v798 = vpop.xlane.xlu0 %797
    %799 = vmax.xlane.f32.xlu0 %v148
    %v800 = vpop.xlane.xlu0 %799
    %801 = vmax.xlane.f32.xlu0 %v149
    %v802 = vpop.xlane.xlu0 %801
    %803 = vmax.xlane.f32.xlu0 %v150
    %v804 = vpop.xlane.xlu0 %803
    %805 = vmax.xlane.f32.xlu0 %v151
    %v806 = vpop.xlane.xlu0 %805
    %807 = vmax.xlane.f32.xlu0 %v152
    %v808 = vpop.xlane.xlu0 %807
    %809 = vmax.xlane.f32.xlu0 %v153
    %v810 = vpop.xlane.xlu0 %809
    %811 = vmax.xlane.f32.xlu0 %v154
    %v812 = vpop.xlane.xlu0 %811
    %813 = vmax.xlane.f32.xlu0 %v155
    %v814 = vpop.xlane.xlu0 %813
    %815 = vmax.xlane.f32.xlu0 %v156
    %v816 = vpop.xlane.xlu0 %815
    %817 = vmax.xlane.f32.xlu0 %v157
    %v818 = vpop.xlane.xlu0 %817
    %819 = vmax.xlane.f32.xlu0 %v158
    %v820 = vpop.xlane.xlu0 %819
    %821 = vmax.xlane.f32.xlu0 %v159
    %v822 = vpop.xlane.xlu0 %821
    %823 = vmax.xlane.f32.xlu0 %v160
    %v824 = vpop.xlane.xlu0 %823
    %825 = vmax.xlane.f32.xlu0 %v161
    %v826 = vpop.xlane.xlu0 %825
    %827 = vmax.xlane.f32.xlu0 %v162
    %v828 = vpop.xlane.xlu0 %827
    %829 = vmax.xlane.f32.xlu0 %v163
    %v830 = vpop.xlane.xlu0 %829
    %831 = vmax.xlane.f32.xlu0 %v164
    %v832 = vpop.xlane.xlu0 %831
    %833 = vmax.xlane.f32.xlu0 %v165
    %v834 = vpop.xlane.xlu0 %833
    %835 = vmax.xlane.f32.xlu0 %v166
    %v836 = vpop.xlane.xlu0 %835
    %837 = vmax.xlane.f32.xlu0 %v167
    %v838 = vpop.xlane.xlu0 %837
    %839 = vmax.xlane.f32.xlu0 %v168
    %v840 = vpop.xlane.xlu0 %839
    %841 = vmax.xlane.f32.xlu0 %v169
    %v842 = vpop.xlane.xlu0 %841
    %843 = vmax.xlane.f32.xlu0 %v170
    %v844 = vpop.xlane.xlu0 %843
    %845 = vmax.xlane.f32.xlu0 %v171
    %v846 = vpop.xlane.xlu0 %845
    %847 = vmax.xlane.f32.xlu0 %v172
    %v848 = vpop.xlane.xlu0 %847
    %849 = vmax.xlane.f32.xlu0 %v173
    %v850 = vpop.xlane.xlu0 %849
    %851 = vmax.xlane.f32.xlu0 %v174
    %v852 = vpop.xlane.xlu0 %851
    %853 = vmax.xlane.f32.xlu0 %v175
    %v854 = vpop.xlane.xlu0 %853
    %855 = vmax.xlane.f32.xlu0 %v176
    %v856 = vpop.xlane.xlu0 %855
    %857 = vmax.xlane.f32.xlu0 %v177
    %v858 = vpop.xlane.xlu0 %857
    %859 = vmax.xlane.f32.xlu0 %v178
    %v860 = vpop.xlane.xlu0 %859
    %861 = vmax.xlane.f32.xlu0 %v179
    %v862 = vpop.xlane.xlu0 %861
    %863 = vmax.xlane.f32.xlu0 %v180
    %v864 = vpop.xlane.xlu0 %863
    %865 = vmax.xlane.f32.xlu0 %v181
    %v866 = vpop.xlane.xlu0 %865
    %867 = vmax.xlane.f32.xlu0 %v182
    %v868 = vpop.xlane.xlu0 %867
    %869 = vmax.xlane.f32.xlu0 %v183
    %v870 = vpop.xlane.xlu0 %869
    %871 = vmax.xlane.f32.xlu0 %v184
    %v872 = vpop.xlane.xlu0 %871
    %873 = vmax.xlane.f32.xlu0 %v185
    %v874 = vpop.xlane.xlu0 %873
    %875 = vmax.xlane.f32.xlu0 %v186
    %v876 = vpop.xlane.xlu0 %875
    %877 = vmax.xlane.f32.xlu0 %v187
    %v878 = vpop.xlane.xlu0 %877
    %879 = vmax.xlane.f32.xlu0 %v188
    %v880 = vpop.xlane.xlu0 %879
    %881 = vmax.xlane.f32.xlu0 %v189
    %v882 = vpop.xlane.xlu0 %881
    %883 = vmax.xlane.f32.xlu0 %v190
    %v884 = vpop.xlane.xlu0 %883
    %885 = vmax.xlane.f32.xlu0 %v191
    %v886 = vpop.xlane.xlu0 %885
    %887 = vmax.xlane.f32.xlu0 %v192
    %v888 = vpop.xlane.xlu0 %887
    %889 = vmax.xlane.f32.xlu0 %v193
    %v890 = vpop.xlane.xlu0 %889
    %891 = vmax.xlane.f32.xlu0 %v194
    %v892 = vpop.xlane.xlu0 %891
    %893 = vmax.xlane.f32.xlu0 %v195
    %v894 = vpop.xlane.xlu0 %893
    %895 = vmax.xlane.f32.xlu0 %v196
    %v896 = vpop.xlane.xlu0 %895
    %897 = vmax.xlane.f32.xlu0 %v197
    %v898 = vpop.xlane.xlu0 %897
    %899 = vmax.xlane.f32.xlu0 %v198
    %v900 = vpop.xlane.xlu0 %899
    %901 = vmax.xlane.f32.xlu0 %v199
    %v902 = vpop.xlane.xlu0 %901
    %903 = vmax.xlane.f32.xlu0 %v200
    %v904 = vpop.xlane.xlu0 %903
    %905 = vmax.xlane.f32.xlu0 %v201
    %v906 = vpop.xlane.xlu0 %905
    %907 = vmax.xlane.f32.xlu0 %v202
    %v908 = vpop.xlane.xlu0 %907
    %909 = vmax.xlane.f32.xlu0 %v203
    %v910 = vpop.xlane.xlu0 %909
    %911 = vmax.xlane.f32.xlu0 %v204
    %v912 = vpop.xlane.xlu0 %911
    %913 = vmax.xlane.f32.xlu0 %v205
    %v914 = vpop.xlane.xlu0 %913
    %915 = vmax.xlane.f32.xlu0 %v206
    %v916 = vpop.xlane.xlu0 %915
    %917 = vmax.xlane.f32.xlu0 %v207
    %v918 = vpop.xlane.xlu0 %917
    %919 = vmax.xlane.f32.xlu0 %v208
    %v920 = vpop.xlane.xlu0 %919
    %921 = vmax.xlane.f32.xlu0 %v209
    %v922 = vpop.xlane.xlu0 %921
    %923 = vmax.xlane.f32.xlu0 %v210
    %v924 = vpop.xlane.xlu0 %923
    %925 = vmax.xlane.f32.xlu0 %v211
    %v926 = vpop.xlane.xlu0 %925
    %927 = vmax.xlane.f32.xlu0 %v212
    %v928 = vpop.xlane.xlu0 %927
    %929 = vmax.xlane.f32.xlu0 %v213
    %v930 = vpop.xlane.xlu0 %929
    %931 = vmax.xlane.f32.xlu0 %v214
    %v932 = vpop.xlane.xlu0 %931
    %933 = vmax.xlane.f32.xlu0 %v215
    %v934 = vpop.xlane.xlu0 %933
    %935 = vmax.xlane.f32.xlu0 %v216
    %v936 = vpop.xlane.xlu0 %935
    %937 = vmax.xlane.f32.xlu0 %v217
    %v938 = vpop.xlane.xlu0 %937
    %939 = vmax.xlane.f32.xlu0 %v218
    %v940 = vpop.xlane.xlu0 %939
    %941 = vmax.xlane.f32.xlu0 %v219
    %v942 = vpop.xlane.xlu0 %941
    %943 = vmax.xlane.f32.xlu0 %v220
    %v944 = vpop.xlane.xlu0 %943
    %945 = vmax.xlane.f32.xlu0 %v221
    %v946 = vpop.xlane.xlu0 %945
    %947 = vmax.xlane.f32.xlu0 %v222
    %v948 = vpop.xlane.xlu0 %947
    %949 = vmax.xlane.f32.xlu0 %v223
    %v950 = vpop.xlane.xlu0 %949
    %951 = vmax.xlane.f32.xlu0 %v224
    %v952 = vpop.xlane.xlu0 %951
    %953 = vmax.xlane.f32.xlu0 %v225
    %v954 = vpop.xlane.xlu0 %953
    %955 = vmax.xlane.f32.xlu0 %v226
    %v956 = vpop.xlane.xlu0 %955
    %957 = vmax.xlane.f32.xlu0 %v227
    %v958 = vpop.xlane.xlu0 %957
    %959 = vmax.xlane.f32.xlu0 %v228
    %v960 = vpop.xlane.xlu0 %959
    %961 = vmax.xlane.f32.xlu0 %v229
    %v962 = vpop.xlane.xlu0 %961
    %963 = vmax.xlane.f32.xlu0 %v230
    %v964 = vpop.xlane.xlu0 %963
    %965 = vmax.xlane.f32.xlu0 %v231
    %v966 = vpop.xlane.xlu0 %965
    %967 = vmax.xlane.f32.xlu0 %v232
    %v968 = vpop.xlane.xlu0 %967
    %969 = vmax.xlane.f32.xlu0 %v233
    %v970 = vpop.xlane.xlu0 %969
    %971 = vmax.xlane.f32.xlu0 %v234
    %v972 = vpop.xlane.xlu0 %971
    %973 = vmax.xlane.f32.xlu0 %v235
    %v974 = vpop.xlane.xlu0 %973
    %975 = vmax.xlane.f32.xlu0 %v236
    %v976 = vpop.xlane.xlu0 %975
    %977 = vmax.xlane.f32.xlu0 %v237
    %v978 = vpop.xlane.xlu0 %977
    %979 = vmax.xlane.f32.xlu0 %v238
    %v980 = vpop.xlane.xlu0 %979
    %981 = vmax.xlane.f32.xlu0 %v239
    %v982 = vpop.xlane.xlu0 %981
    %983 = vmax.xlane.f32.xlu0 %v240
    %v984 = vpop.xlane.xlu0 %983
    %985 = vmax.xlane.f32.xlu0 %v241
    %v986 = vpop.xlane.xlu0 %985
    %987 = vmax.xlane.f32.xlu0 %v242
    %v988 = vpop.xlane.xlu0 %987
    %989 = vmax.xlane.f32.xlu0 %v243
    %v990 = vpop.xlane.xlu0 %989
    %991 = vmax.xlane.f32.xlu0 %v244
    %v992 = vpop.xlane.xlu0 %991
    %993 = vmax.xlane.f32.xlu0 %v245
    %v994 = vpop.xlane.xlu0 %993
    %995 = vmax.xlane.f32.xlu0 %v246
    %v996 = vpop.xlane.xlu0 %995
    %997 = vmax.xlane.f32.xlu0 %v247
    %v998 = vpop.xlane.xlu0 %997
    %999 = vmax.xlane.f32.xlu0 %v248
    %v1000 = vpop.xlane.xlu0 %999
    %1001 = vmax.xlane.f32.xlu0 %v249
    %v1002 = vpop.xlane.xlu0 %1001
    %1003 = vmax.xlane.f32.xlu0 %v250
    %v1004 = vpop.xlane.xlu0 %1003
    %1005 = vmax.xlane.f32.xlu0 %v251
    %v1006 = vpop.xlane.xlu0 %1005
    %1007 = vmax.xlane.f32.xlu0 %v252
    %v1008 = vpop.xlane.xlu0 %1007
    %1009 = vmax.xlane.f32.xlu0 %v253
    %v1010 = vpop.xlane.xlu0 %1009
    %1011 = vmax.xlane.f32.xlu0 %v254
    %v1012 = vpop.xlane.xlu0 %1011
    %1013 = vmax.xlane.f32.xlu0 %v255
    %v1014 = vpop.xlane.xlu0 %1013
    %1015 = vmax.xlane.f32.xlu0 %v256
    %v1016 = vpop.xlane.xlu0 %1015
    %1017 = vmax.xlane.f32.xlu0 %v257
    %v1018 = vpop.xlane.xlu0 %1017
    %1019 = vmax.xlane.f32.xlu0 %v258
    %v1020 = vpop.xlane.xlu0 %1019
    %1021 = vmax.xlane.f32.xlu0 %v259
    %v1022 = vpop.xlane.xlu0 %1021
    %1023 = vmax.xlane.f32.xlu0 %v260
    %v1024 = vpop.xlane.xlu0 %1023
    %1025 = vmax.xlane.f32.xlu0 %v261
    %v1026 = vpop.xlane.xlu0 %1025
    %1027 = vmax.xlane.f32.xlu0 %v262
    %v1028 = vpop.xlane.xlu0 %1027
    %1029 = vmax.xlane.f32.xlu0 %v263
    %v1030 = vpop.xlane.xlu0 %1029
    %1031 = vmax.xlane.f32.xlu0 %v264
    %v1032 = vpop.xlane.xlu0 %1031
    %1033 = vmax.xlane.f32.xlu0 %v265
    %v1034 = vpop.xlane.xlu0 %1033
    %v1035 = vsub.f32 %v138, %v780
    %v1036 = vsub.f32 %v139, %v782
    %v1037 = vsub.f32 %v140, %v784
    %v1038 = vsub.f32 %v141, %v786
    %v1039 = vsub.f32 %v142, %v788
    %v1040 = vsub.f32 %v143, %v790
    %v1041 = vsub.f32 %v144, %v792
    %v1042 = vsub.f32 %v145, %v794
    %v1043 = vsub.f32 %v146, %v796
    %v1044 = vsub.f32 %v147, %v798
    %v1045 = vsub.f32 %v148, %v800
    %v1046 = vsub.f32 %v149, %v802
    %v1047 = vsub.f32 %v150, %v804
    %v1048 = vsub.f32 %v151, %v806
    %v1049 = vsub.f32 %v152, %v808
    %v1050 = vsub.f32 %v153, %v810
    %v1051 = vsub.f32 %v154, %v812
    %v1052 = vsub.f32 %v155, %v814
    %v1053 = vsub.f32 %v156, %v816
    %v1054 = vsub.f32 %v157, %v818
    %v1055 = vsub.f32 %v158, %v820
    %v1056 = vsub.f32 %v159, %v822
    %v1057 = vsub.f32 %v160, %v824
    %v1058 = vsub.f32 %v161, %v826
    %v1059 = vsub.f32 %v162, %v828
    %v1060 = vsub.f32 %v163, %v830
    %v1061 = vsub.f32 %v164, %v832
    %v1062 = vsub.f32 %v165, %v834
    %v1063 = vsub.f32 %v166, %v836
    %v1064 = vsub.f32 %v167, %v838
    %v1065 = vsub.f32 %v168, %v840
    %v1066 = vsub.f32 %v169, %v842
    %v1067 = vsub.f32 %v170, %v844
    %v1068 = vsub.f32 %v171, %v846
    %v1069 = vsub.f32 %v172, %v848
    %v1070 = vsub.f32 %v173, %v850
    %v1071 = vsub.f32 %v174, %v852
    %v1072 = vsub.f32 %v175, %v854
    %v1073 = vsub.f32 %v176, %v856
    %v1074 = vsub.f32 %v177, %v858
    %v1075 = vsub.f32 %v178, %v860
    %v1076 = vsub.f32 %v179, %v862
    %v1077 = vsub.f32 %v180, %v864
    %v1078 = vsub.f32 %v181, %v866
    %v1079 = vsub.f32 %v182, %v868
    %v1080 = vsub.f32 %v183, %v870
    %v1081 = vsub.f32 %v184, %v872
    %v1082 = vsub.f32 %v185, %v874
    %v1083 = vsub.f32 %v186, %v876
    %v1084 = vsub.f32 %v187, %v878
    %v1085 = vsub.f32 %v188, %v880
    %v1086 = vsub.f32 %v189, %v882
    %v1087 = vsub.f32 %v190, %v884
    %v1088 = vsub.f32 %v191, %v886
    %v1089 = vsub.f32 %v192, %v888
    %v1090 = vsub.f32 %v193, %v890
    %v1091 = vsub.f32 %v194, %v892
    %v1092 = vsub.f32 %v195, %v894
    %v1093 = vsub.f32 %v196, %v896
    %v1094 = vsub.f32 %v197, %v898
    %v1095 = vsub.f32 %v198, %v900
    %v1096 = vsub.f32 %v199, %v902
    %v1097 = vsub.f32 %v200, %v904
    %v1098 = vsub.f32 %v201, %v906
    %v1099 = vsub.f32 %v202, %v908
    %v1100 = vsub.f32 %v203, %v910
    %v1101 = vsub.f32 %v204, %v912
    %v1102 = vsub.f32 %v205, %v914
    %v1103 = vsub.f32 %v206, %v916
    %v1104 = vsub.f32 %v207, %v918
    %v1105 = vsub.f32 %v208, %v920
    %v1106 = vsub.f32 %v209, %v922
    %v1107 = vsub.f32 %v210, %v924
    %v1108 = vsub.f32 %v211, %v926
    %v1109 = vsub.f32 %v212, %v928
    %v1110 = vsub.f32 %v213, %v930
    %v1111 = vsub.f32 %v214, %v932
    %v1112 = vsub.f32 %v215, %v934
    %v1113 = vsub.f32 %v216, %v936
    %v1114 = vsub.f32 %v217, %v938
    %v1115 = vsub.f32 %v218, %v940
    %v1116 = vsub.f32 %v219, %v942
    %v1117 = vsub.f32 %v220, %v944
    %v1118 = vsub.f32 %v221, %v946
    %v1119 = vsub.f32 %v222, %v948
    %v1120 = vsub.f32 %v223, %v950
    %v1121 = vsub.f32 %v224, %v952
    %v1122 = vsub.f32 %v225, %v954
    %v1123 = vsub.f32 %v226, %v956
    %v1124 = vsub.f32 %v227, %v958
    %v1125 = vsub.f32 %v228, %v960
    %v1126 = vsub.f32 %v229, %v962
    %v1127 = vsub.f32 %v230, %v964
    %v1128 = vsub.f32 %v231, %v966
    %v1129 = vsub.f32 %v232, %v968
    %v1130 = vsub.f32 %v233, %v970
    %v1131 = vsub.f32 %v234, %v972
    %v1132 = vsub.f32 %v235, %v974
    %v1133 = vsub.f32 %v236, %v976
    %v1134 = vsub.f32 %v237, %v978
    %v1135 = vsub.f32 %v238, %v980
    %v1136 = vsub.f32 %v239, %v982
    %v1137 = vsub.f32 %v240, %v984
    %v1138 = vsub.f32 %v241, %v986
    %v1139 = vsub.f32 %v242, %v988
    %v1140 = vsub.f32 %v243, %v990
    %v1141 = vsub.f32 %v244, %v992
    %v1142 = vsub.f32 %v245, %v994
    %v1143 = vsub.f32 %v246, %v996
    %v1144 = vsub.f32 %v247, %v998
    %v1145 = vsub.f32 %v248, %v1000
    %v1146 = vsub.f32 %v249, %v1002
    %v1147 = vsub.f32 %v250, %v1004
    %v1148 = vsub.f32 %v251, %v1006
    %v1149 = vsub.f32 %v252, %v1008
    %v1150 = vsub.f32 %v253, %v1010
    %v1151 = vsub.f32 %v254, %v1012
    %v1152 = vsub.f32 %v255, %v1014
    %v1153 = vsub.f32 %v256, %v1016
    %v1154 = vsub.f32 %v257, %v1018
    %v1155 = vsub.f32 %v258, %v1020
    %v1156 = vsub.f32 %v259, %v1022
    %v1157 = vsub.f32 %v260, %v1024
    %v1158 = vsub.f32 %v261, %v1026
    %v1159 = vsub.f32 %v262, %v1028
    %v1160 = vsub.f32 %v263, %v1030
    %v1161 = vsub.f32 %v264, %v1032
    %v1162 = vsub.f32 %v265, %v1034
    %v1163 = vmul.f32 %v1035, 1.442695
    %v1164 = vpow.pop %v1163
    %v1165 = vmul.f32 %v1036, 1.442695
    %v1166 = vpow.pop %v1165
    %v1167 = vmul.f32 %v1037, 1.442695
    %v1168 = vpow.pop %v1167
    %v1169 = vmul.f32 %v1038, 1.442695
    %v1170 = vpow.pop %v1169
    %v1171 = vmul.f32 %v1039, 1.442695
    %v1172 = vpow.pop %v1171
    %v1173 = vmul.f32 %v1040, 1.442695
    %v1174 = vpow.pop %v1173
    %v1175 = vmul.f32 %v1041, 1.442695
    %v1176 = vpow.pop %v1175
    %v1177 = vmul.f32 %v1042, 1.442695
    %v1178 = vpow.pop %v1177
    %v1179 = vmul.f32 %v1043, 1.442695
    %v1180 = vpow.pop %v1179
    %v1181 = vmul.f32 %v1044, 1.442695
    %v1182 = vpow.pop %v1181
    %v1183 = vmul.f32 %v1045, 1.442695
    %v1184 = vpow.pop %v1183
    %v1185 = vmul.f32 %v1046, 1.442695
    %v1186 = vpow.pop %v1185
    %v1187 = vmul.f32 %v1047, 1.442695
    %v1188 = vpow.pop %v1187
    %v1189 = vmul.f32 %v1048, 1.442695
    %v1190 = vpow.pop %v1189
    %v1191 = vmul.f32 %v1049, 1.442695
    %v1192 = vpow.pop %v1191
    %v1193 = vmul.f32 %v1050, 1.442695
    %v1194 = vpow.pop %v1193
    %v1195 = vmul.f32 %v1051, 1.442695
    %v1196 = vpow.pop %v1195
    %v1197 = vmul.f32 %v1052, 1.442695
    %v1198 = vpow.pop %v1197
    %v1199 = vmul.f32 %v1053, 1.442695
    %v1200 = vpow.pop %v1199
    %v1201 = vmul.f32 %v1054, 1.442695
    %v1202 = vpow.pop %v1201
    %v1203 = vmul.f32 %v1055, 1.442695
    %v1204 = vpow.pop %v1203
    %v1205 = vmul.f32 %v1056, 1.442695
    %v1206 = vpow.pop %v1205
    %v1207 = vmul.f32 %v1057, 1.442695
    %v1208 = vpow.pop %v1207
    %v1209 = vmul.f32 %v1058, 1.442695
    %v1210 = vpow.pop %v1209
    %v1211 = vmul.f32 %v1059, 1.442695
    %v1212 = vpow.pop %v1211
    %v1213 = vmul.f32 %v1060, 1.442695
    %v1214 = vpow.pop %v1213
    %v1215 = vmul.f32 %v1061, 1.442695
    %v1216 = vpow.pop %v1215
    %v1217 = vmul.f32 %v1062, 1.442695
    %v1218 = vpow.pop %v1217
    %v1219 = vmul.f32 %v1063, 1.442695
    %v1220 = vpow.pop %v1219
    %v1221 = vmul.f32 %v1064, 1.442695
    %v1222 = vpow.pop %v1221
    %v1223 = vmul.f32 %v1065, 1.442695
    %v1224 = vpow.pop %v1223
    %v1225 = vmul.f32 %v1066, 1.442695
    %v1226 = vpow.pop %v1225
    %v1227 = vmul.f32 %v1067, 1.442695
    %v1228 = vpow.pop %v1227
    %v1229 = vmul.f32 %v1068, 1.442695
    %v1230 = vpow.pop %v1229
    %v1231 = vmul.f32 %v1069, 1.442695
    %v1232 = vpow.pop %v1231
    %v1233 = vmul.f32 %v1070, 1.442695
    %v1234 = vpow.pop %v1233
    %v1235 = vmul.f32 %v1071, 1.442695
    %v1236 = vpow.pop %v1235
    %v1237 = vmul.f32 %v1072, 1.442695
    %v1238 = vpow.pop %v1237
    %v1239 = vmul.f32 %v1073, 1.442695
    %v1240 = vpow.pop %v1239
    %v1241 = vmul.f32 %v1074, 1.442695
    %v1242 = vpow.pop %v1241
    %v1243 = vmul.f32 %v1075, 1.442695
    %v1244 = vpow.pop %v1243
    %v1245 = vmul.f32 %v1076, 1.442695
    %v1246 = vpow.pop %v1245
    %v1247 = vmul.f32 %v1077, 1.442695
    %v1248 = vpow.pop %v1247
    %v1249 = vmul.f32 %v1078, 1.442695
    %v1250 = vpow.pop %v1249
    %v1251 = vmul.f32 %v1079, 1.442695
    %v1252 = vpow.pop %v1251
    %v1253 = vmul.f32 %v1080, 1.442695
    %v1254 = vpow.pop %v1253
    %v1255 = vmul.f32 %v1081, 1.442695
    %v1256 = vpow.pop %v1255
    %v1257 = vmul.f32 %v1082, 1.442695
    %v1258 = vpow.pop %v1257
    %v1259 = vmul.f32 %v1083, 1.442695
    %v1260 = vpow.pop %v1259
    %v1261 = vmul.f32 %v1084, 1.442695
    %v1262 = vpow.pop %v1261
    %v1263 = vmul.f32 %v1085, 1.442695
    %v1264 = vpow.pop %v1263
    %v1265 = vmul.f32 %v1086, 1.442695
    %v1266 = vpow.pop %v1265
    %v1267 = vmul.f32 %v1087, 1.442695
    %v1268 = vpow.pop %v1267
    %v1269 = vmul.f32 %v1088, 1.442695
    %v1270 = vpow.pop %v1269
    %v1271 = vmul.f32 %v1089, 1.442695
    %v1272 = vpow.pop %v1271
    %v1273 = vmul.f32 %v1090, 1.442695
    %v1274 = vpow.pop %v1273
    %v1275 = vmul.f32 %v1091, 1.442695
    %v1276 = vpow.pop %v1275
    %v1277 = vmul.f32 %v1092, 1.442695
    %v1278 = vpow.pop %v1277
    %v1279 = vmul.f32 %v1093, 1.442695
    %v1280 = vpow.pop %v1279
    %v1281 = vmul.f32 %v1094, 1.442695
    %v1282 = vpow.pop %v1281
    %v1283 = vmul.f32 %v1095, 1.442695
    %v1284 = vpow.pop %v1283
    %v1285 = vmul.f32 %v1096, 1.442695
    %v1286 = vpow.pop %v1285
    %v1287 = vmul.f32 %v1097, 1.442695
    %v1288 = vpow.pop %v1287
    %v1289 = vmul.f32 %v1098, 1.442695
    %v1290 = vpow.pop %v1289
    %v1291 = vmul.f32 %v1099, 1.442695
    %v1292 = vpow.pop %v1291
    %v1293 = vmul.f32 %v1100, 1.442695
    %v1294 = vpow.pop %v1293
    %v1295 = vmul.f32 %v1101, 1.442695
    %v1296 = vpow.pop %v1295
    %v1297 = vmul.f32 %v1102, 1.442695
    %v1298 = vpow.pop %v1297
    %v1299 = vmul.f32 %v1103, 1.442695
    %v1300 = vpow.pop %v1299
    %v1301 = vmul.f32 %v1104, 1.442695
    %v1302 = vpow.pop %v1301
    %v1303 = vmul.f32 %v1105, 1.442695
    %v1304 = vpow.pop %v1303
    %v1305 = vmul.f32 %v1106, 1.442695
    %v1306 = vpow.pop %v1305
    %v1307 = vmul.f32 %v1107, 1.442695
    %v1308 = vpow.pop %v1307
    %v1309 = vmul.f32 %v1108, 1.442695
    %v1310 = vpow.pop %v1309
    %v1311 = vmul.f32 %v1109, 1.442695
    %v1312 = vpow.pop %v1311
    %v1313 = vmul.f32 %v1110, 1.442695
    %v1314 = vpow.pop %v1313
    %v1315 = vmul.f32 %v1111, 1.442695
    %v1316 = vpow.pop %v1315
    %v1317 = vmul.f32 %v1112, 1.442695
    %v1318 = vpow.pop %v1317
    %v1319 = vmul.f32 %v1113, 1.442695
    %v1320 = vpow.pop %v1319
    %v1321 = vmul.f32 %v1114, 1.442695
    %v1322 = vpow.pop %v1321
    %v1323 = vmul.f32 %v1115, 1.442695
    %v1324 = vpow.pop %v1323
    %v1325 = vmul.f32 %v1116, 1.442695
    %v1326 = vpow.pop %v1325
    %v1327 = vmul.f32 %v1117, 1.442695
    %v1328 = vpow.pop %v1327
    %v1329 = vmul.f32 %v1118, 1.442695
    %v1330 = vpow.pop %v1329
    %v1331 = vmul.f32 %v1119, 1.442695
    %v1332 = vpow.pop %v1331
    %v1333 = vmul.f32 %v1120, 1.442695
    %v1334 = vpow.pop %v1333
    %v1335 = vmul.f32 %v1121, 1.442695
    %v1336 = vpow.pop %v1335
    %v1337 = vmul.f32 %v1122, 1.442695
    %v1338 = vpow.pop %v1337
    %v1339 = vmul.f32 %v1123, 1.442695
    %v1340 = vpow.pop %v1339
    %v1341 = vmul.f32 %v1124, 1.442695
    %v1342 = vpow.pop %v1341
    %v1343 = vmul.f32 %v1125, 1.442695
    %v1344 = vpow.pop %v1343
    %v1345 = vmul.f32 %v1126, 1.442695
    %v1346 = vpow.pop %v1345
    %v1347 = vmul.f32 %v1127, 1.442695
    %v1348 = vpow.pop %v1347
    %v1349 = vmul.f32 %v1128, 1.442695
    %v1350 = vpow.pop %v1349
    %v1351 = vmul.f32 %v1129, 1.442695
    %v1352 = vpow.pop %v1351
    %v1353 = vmul.f32 %v1130, 1.442695
    %v1354 = vpow.pop %v1353
    %v1355 = vmul.f32 %v1131, 1.442695
    %v1356 = vpow.pop %v1355
    %v1357 = vmul.f32 %v1132, 1.442695
    %v1358 = vpow.pop %v1357
    %v1359 = vmul.f32 %v1133, 1.442695
    %v1360 = vpow.pop %v1359
    %v1361 = vmul.f32 %v1134, 1.442695
    %v1362 = vpow.pop %v1361
    %v1363 = vmul.f32 %v1135, 1.442695
    %v1364 = vpow.pop %v1363
    %v1365 = vmul.f32 %v1136, 1.442695
    %v1366 = vpow.pop %v1365
    %v1367 = vmul.f32 %v1137, 1.442695
    %v1368 = vpow.pop %v1367
    %v1369 = vmul.f32 %v1138, 1.442695
    %v1370 = vpow.pop %v1369
    %v1371 = vmul.f32 %v1139, 1.442695
    %v1372 = vpow.pop %v1371
    %v1373 = vmul.f32 %v1140, 1.442695
    %v1374 = vpow.pop %v1373
    %v1375 = vmul.f32 %v1141, 1.442695
    %v1376 = vpow.pop %v1375
    %v1377 = vmul.f32 %v1142, 1.442695
    %v1378 = vpow.pop %v1377
    %v1379 = vmul.f32 %v1143, 1.442695
    %v1380 = vpow.pop %v1379
    %v1381 = vmul.f32 %v1144, 1.442695
    %v1382 = vpow.pop %v1381
    %v1383 = vmul.f32 %v1145, 1.442695
    %v1384 = vpow.pop %v1383
    %v1385 = vmul.f32 %v1146, 1.442695
    %v1386 = vpow.pop %v1385
    %v1387 = vmul.f32 %v1147, 1.442695
    %v1388 = vpow.pop %v1387
    %v1389 = vmul.f32 %v1148, 1.442695
    %v1390 = vpow.pop %v1389
    %v1391 = vmul.f32 %v1149, 1.442695
    %v1392 = vpow.pop %v1391
    %v1393 = vmul.f32 %v1150, 1.442695
    %v1394 = vpow.pop %v1393
    %v1395 = vmul.f32 %v1151, 1.442695
    %v1396 = vpow.pop %v1395
    %v1397 = vmul.f32 %v1152, 1.442695
    %v1398 = vpow.pop %v1397
    %v1399 = vmul.f32 %v1153, 1.442695
    %v1400 = vpow.pop %v1399
    %v1401 = vmul.f32 %v1154, 1.442695
    %v1402 = vpow.pop %v1401
    %v1403 = vmul.f32 %v1155, 1.442695
    %v1404 = vpow.pop %v1403
    %v1405 = vmul.f32 %v1156, 1.442695
    %v1406 = vpow.pop %v1405
    %v1407 = vmul.f32 %v1157, 1.442695
    %v1408 = vpow.pop %v1407
    %v1409 = vmul.f32 %v1158, 1.442695
    %v1410 = vpow.pop %v1409
    %v1411 = vmul.f32 %v1159, 1.442695
    %v1412 = vpow.pop %v1411
    %v1413 = vmul.f32 %v1160, 1.442695
    %v1414 = vpow.pop %v1413
    %v1415 = vmul.f32 %v1161, 1.442695
    %v1416 = vpow.pop %v1415
    %v1417 = vmul.f32 %v1162, 1.442695
    %v1418 = vpow.pop %v1417
    %1419 = vadd.xlane.f32.xlu0 %v1164
    %v1420 = vpop.xlane.xlu0 %1419
    %1421 = vadd.xlane.f32.xlu0 %v1166
    %v1422 = vpop.xlane.xlu0 %1421
    %1423 = vadd.xlane.f32.xlu0 %v1168
    %v1424 = vpop.xlane.xlu0 %1423
    %1425 = vadd.xlane.f32.xlu0 %v1170
    %v1426 = vpop.xlane.xlu0 %1425
    %1427 = vadd.xlane.f32.xlu0 %v1172
    %v1428 = vpop.xlane.xlu0 %1427
    %1429 = vadd.xlane.f32.xlu0 %v1174
    %v1430 = vpop.xlane.xlu0 %1429
    %1431 = vadd.xlane.f32.xlu0 %v1176
    %v1432 = vpop.xlane.xlu0 %1431
    %1433 = vadd.xlane.f32.xlu0 %v1178
    %v1434 = vpop.xlane.xlu0 %1433
    %1435 = vadd.xlane.f32.xlu0 %v1180
    %v1436 = vpop.xlane.xlu0 %1435
    %1437 = vadd.xlane.f32.xlu0 %v1182
    %v1438 = vpop.xlane.xlu0 %1437
    %1439 = vadd.xlane.f32.xlu0 %v1184
    %v1440 = vpop.xlane.xlu0 %1439
    %1441 = vadd.xlane.f32.xlu0 %v1186
    %v1442 = vpop.xlane.xlu0 %1441
    %1443 = vadd.xlane.f32.xlu0 %v1188
    %v1444 = vpop.xlane.xlu0 %1443
    %1445 = vadd.xlane.f32.xlu0 %v1190
    %v1446 = vpop.xlane.xlu0 %1445
    %1447 = vadd.xlane.f32.xlu0 %v1192
    %v1448 = vpop.xlane.xlu0 %1447
    %1449 = vadd.xlane.f32.xlu0 %v1194
    %v1450 = vpop.xlane.xlu0 %1449
    %1451 = vadd.xlane.f32.xlu0 %v1196
    %v1452 = vpop.xlane.xlu0 %1451
    %1453 = vadd.xlane.f32.xlu0 %v1198
    %v1454 = vpop.xlane.xlu0 %1453
    %1455 = vadd.xlane.f32.xlu0 %v1200
    %v1456 = vpop.xlane.xlu0 %1455
    %1457 = vadd.xlane.f32.xlu0 %v1202
    %v1458 = vpop.xlane.xlu0 %1457
    %1459 = vadd.xlane.f32.xlu0 %v1204
    %v1460 = vpop.xlane.xlu0 %1459
    %1461 = vadd.xlane.f32.xlu0 %v1206
    %v1462 = vpop.xlane.xlu0 %1461
    %1463 = vadd.xlane.f32.xlu0 %v1208
    %v1464 = vpop.xlane.xlu0 %1463
    %1465 = vadd.xlane.f32.xlu0 %v1210
    %v1466 = vpop.xlane.xlu0 %1465
    %1467 = vadd.xlane.f32.xlu0 %v1212
    %v1468 = vpop.xlane.xlu0 %1467
    %1469 = vadd.xlane.f32.xlu0 %v1214
    %v1470 = vpop.xlane.xlu0 %1469
    %1471 = vadd.xlane.f32.xlu0 %v1216
    %v1472 = vpop.xlane.xlu0 %1471
    %1473 = vadd.xlane.f32.xlu0 %v1218
    %v1474 = vpop.xlane.xlu0 %1473
    %1475 = vadd.xlane.f32.xlu0 %v1220
    %v1476 = vpop.xlane.xlu0 %1475
    %1477 = vadd.xlane.f32.xlu0 %v1222
    %v1478 = vpop.xlane.xlu0 %1477
    %1479 = vadd.xlane.f32.xlu0 %v1224
    %v1480 = vpop.xlane.xlu0 %1479
    %1481 = vadd.xlane.f32.xlu0 %v1226
    %v1482 = vpop.xlane.xlu0 %1481
    %1483 = vadd.xlane.f32.xlu0 %v1228
    %v1484 = vpop.xlane.xlu0 %1483
    %1485 = vadd.xlane.f32.xlu0 %v1230
    %v1486 = vpop.xlane.xlu0 %1485
    %1487 = vadd.xlane.f32.xlu0 %v1232
    %v1488 = vpop.xlane.xlu0 %1487
    %1489 = vadd.xlane.f32.xlu0 %v1234
    %v1490 = vpop.xlane.xlu0 %1489
    %1491 = vadd.xlane.f32.xlu0 %v1236
    %v1492 = vpop.xlane.xlu0 %1491
    %1493 = vadd.xlane.f32.xlu0 %v1238
    %v1494 = vpop.xlane.xlu0 %1493
    %1495 = vadd.xlane.f32.xlu0 %v1240
    %v1496 = vpop.xlane.xlu0 %1495
    %1497 = vadd.xlane.f32.xlu0 %v1242
    %v1498 = vpop.xlane.xlu0 %1497
    %1499 = vadd.xlane.f32.xlu0 %v1244
    %v1500 = vpop.xlane.xlu0 %1499
    %1501 = vadd.xlane.f32.xlu0 %v1246
    %v1502 = vpop.xlane.xlu0 %1501
    %1503 = vadd.xlane.f32.xlu0 %v1248
    %v1504 = vpop.xlane.xlu0 %1503
    %1505 = vadd.xlane.f32.xlu0 %v1250
    %v1506 = vpop.xlane.xlu0 %1505
    %1507 = vadd.xlane.f32.xlu0 %v1252
    %v1508 = vpop.xlane.xlu0 %1507
    %1509 = vadd.xlane.f32.xlu0 %v1254
    %v1510 = vpop.xlane.xlu0 %1509
    %1511 = vadd.xlane.f32.xlu0 %v1256
    %v1512 = vpop.xlane.xlu0 %1511
    %1513 = vadd.xlane.f32.xlu0 %v1258
    %v1514 = vpop.xlane.xlu0 %1513
    %1515 = vadd.xlane.f32.xlu0 %v1260
    %v1516 = vpop.xlane.xlu0 %1515
    %1517 = vadd.xlane.f32.xlu0 %v1262
    %v1518 = vpop.xlane.xlu0 %1517
    %1519 = vadd.xlane.f32.xlu0 %v1264
    %v1520 = vpop.xlane.xlu0 %1519
    %1521 = vadd.xlane.f32.xlu0 %v1266
    %v1522 = vpop.xlane.xlu0 %1521
    %1523 = vadd.xlane.f32.xlu0 %v1268
    %v1524 = vpop.xlane.xlu0 %1523
    %1525 = vadd.xlane.f32.xlu0 %v1270
    %v1526 = vpop.xlane.xlu0 %1525
    %1527 = vadd.xlane.f32.xlu0 %v1272
    %v1528 = vpop.xlane.xlu0 %1527
    %1529 = vadd.xlane.f32.xlu0 %v1274
    %v1530 = vpop.xlane.xlu0 %1529
    %1531 = vadd.xlane.f32.xlu0 %v1276
    %v1532 = vpop.xlane.xlu0 %1531
    %1533 = vadd.xlane.f32.xlu0 %v1278
    %v1534 = vpop.xlane.xlu0 %1533
    %1535 = vadd.xlane.f32.xlu0 %v1280
    %v1536 = vpop.xlane.xlu0 %1535
    %1537 = vadd.xlane.f32.xlu0 %v1282
    %v1538 = vpop.xlane.xlu0 %1537
    %1539 = vadd.xlane.f32.xlu0 %v1284
    %v1540 = vpop.xlane.xlu0 %1539
    %1541 = vadd.xlane.f32.xlu0 %v1286
    %v1542 = vpop.xlane.xlu0 %1541
    %1543 = vadd.xlane.f32.xlu0 %v1288
    %v1544 = vpop.xlane.xlu0 %1543
    %1545 = vadd.xlane.f32.xlu0 %v1290
    %v1546 = vpop.xlane.xlu0 %1545
    %1547 = vadd.xlane.f32.xlu0 %v1292
    %v1548 = vpop.xlane.xlu0 %1547
    %1549 = vadd.xlane.f32.xlu0 %v1294
    %v1550 = vpop.xlane.xlu0 %1549
    %1551 = vadd.xlane.f32.xlu0 %v1296
    %v1552 = vpop.xlane.xlu0 %1551
    %1553 = vadd.xlane.f32.xlu0 %v1298
    %v1554 = vpop.xlane.xlu0 %1553
    %1555 = vadd.xlane.f32.xlu0 %v1300
    %v1556 = vpop.xlane.xlu0 %1555
    %1557 = vadd.xlane.f32.xlu0 %v1302
    %v1558 = vpop.xlane.xlu0 %1557
    %1559 = vadd.xlane.f32.xlu0 %v1304
    %v1560 = vpop.xlane.xlu0 %1559
    %1561 = vadd.xlane.f32.xlu0 %v1306
    %v1562 = vpop.xlane.xlu0 %1561
    %1563 = vadd.xlane.f32.xlu0 %v1308
    %v1564 = vpop.xlane.xlu0 %1563
    %1565 = vadd.xlane.f32.xlu0 %v1310
    %v1566 = vpop.xlane.xlu0 %1565
    %1567 = vadd.xlane.f32.xlu0 %v1312
    %v1568 = vpop.xlane.xlu0 %1567
    %1569 = vadd.xlane.f32.xlu0 %v1314
    %v1570 = vpop.xlane.xlu0 %1569
    %1571 = vadd.xlane.f32.xlu0 %v1316
    %v1572 = vpop.xlane.xlu0 %1571
    %1573 = vadd.xlane.f32.xlu0 %v1318
    %v1574 = vpop.xlane.xlu0 %1573
    %1575 = vadd.xlane.f32.xlu0 %v1320
    %v1576 = vpop.xlane.xlu0 %1575
    %1577 = vadd.xlane.f32.xlu0 %v1322
    %v1578 = vpop.xlane.xlu0 %1577
    %1579 = vadd.xlane.f32.xlu0 %v1324
    %v1580 = vpop.xlane.xlu0 %1579
    %1581 = vadd.xlane.f32.xlu0 %v1326
    %v1582 = vpop.xlane.xlu0 %1581
    %1583 = vadd.xlane.f32.xlu0 %v1328
    %v1584 = vpop.xlane.xlu0 %1583
    %1585 = vadd.xlane.f32.xlu0 %v1330
    %v1586 = vpop.xlane.xlu0 %1585
    %1587 = vadd.xlane.f32.xlu0 %v1332
    %v1588 = vpop.xlane.xlu0 %1587
    %1589 = vadd.xlane.f32.xlu0 %v1334
    %v1590 = vpop.xlane.xlu0 %1589
    %1591 = vadd.xlane.f32.xlu0 %v1336
    %v1592 = vpop.xlane.xlu0 %1591
    %1593 = vadd.xlane.f32.xlu0 %v1338
    %v1594 = vpop.xlane.xlu0 %1593
    %1595 = vadd.xlane.f32.xlu0 %v1340
    %v1596 = vpop.xlane.xlu0 %1595
    %1597 = vadd.xlane.f32.xlu0 %v1342
    %v1598 = vpop.xlane.xlu0 %1597
    %1599 = vadd.xlane.f32.xlu0 %v1344
    %v1600 = vpop.xlane.xlu0 %1599
    %1601 = vadd.xlane.f32.xlu0 %v1346
    %v1602 = vpop.xlane.xlu0 %1601
    %1603 = vadd.xlane.f32.xlu0 %v1348
    %v1604 = vpop.xlane.xlu0 %1603
    %1605 = vadd.xlane.f32.xlu0 %v1350
    %v1606 = vpop.xlane.xlu0 %1605
    %1607 = vadd.xlane.f32.xlu0 %v1352
    %v1608 = vpop.xlane.xlu0 %1607
    %1609 = vadd.xlane.f32.xlu0 %v1354
    %v1610 = vpop.xlane.xlu0 %1609
    %1611 = vadd.xlane.f32.xlu0 %v1356
    %v1612 = vpop.xlane.xlu0 %1611
    %1613 = vadd.xlane.f32.xlu0 %v1358
    %v1614 = vpop.xlane.xlu0 %1613
    %1615 = vadd.xlane.f32.xlu0 %v1360
    %v1616 = vpop.xlane.xlu0 %1615
    %1617 = vadd.xlane.f32.xlu0 %v1362
    %v1618 = vpop.xlane.xlu0 %1617
    %1619 = vadd.xlane.f32.xlu0 %v1364
    %v1620 = vpop.xlane.xlu0 %1619
    %1621 = vadd.xlane.f32.xlu0 %v1366
    %v1622 = vpop.xlane.xlu0 %1621
    %1623 = vadd.xlane.f32.xlu0 %v1368
    %v1624 = vpop.xlane.xlu0 %1623
    %1625 = vadd.xlane.f32.xlu0 %v1370
    %v1626 = vpop.xlane.xlu0 %1625
    %1627 = vadd.xlane.f32.xlu0 %v1372
    %v1628 = vpop.xlane.xlu0 %1627
    %1629 = vadd.xlane.f32.xlu0 %v1374
    %v1630 = vpop.xlane.xlu0 %1629
    %1631 = vadd.xlane.f32.xlu0 %v1376
    %v1632 = vpop.xlane.xlu0 %1631
    %1633 = vadd.xlane.f32.xlu0 %v1378
    %v1634 = vpop.xlane.xlu0 %1633
    %1635 = vadd.xlane.f32.xlu0 %v1380
    %v1636 = vpop.xlane.xlu0 %1635
    %1637 = vadd.xlane.f32.xlu0 %v1382
    %v1638 = vpop.xlane.xlu0 %1637
    %1639 = vadd.xlane.f32.xlu0 %v1384
    %v1640 = vpop.xlane.xlu0 %1639
    %1641 = vadd.xlane.f32.xlu0 %v1386
    %v1642 = vpop.xlane.xlu0 %1641
    %1643 = vadd.xlane.f32.xlu0 %v1388
    %v1644 = vpop.xlane.xlu0 %1643
    %1645 = vadd.xlane.f32.xlu0 %v1390
    %v1646 = vpop.xlane.xlu0 %1645
    %1647 = vadd.xlane.f32.xlu0 %v1392
    %v1648 = vpop.xlane.xlu0 %1647
    %1649 = vadd.xlane.f32.xlu0 %v1394
    %v1650 = vpop.xlane.xlu0 %1649
    %1651 = vadd.xlane.f32.xlu0 %v1396
    %v1652 = vpop.xlane.xlu0 %1651
    %1653 = vadd.xlane.f32.xlu0 %v1398
    %v1654 = vpop.xlane.xlu0 %1653
    %1655 = vadd.xlane.f32.xlu0 %v1400
    %v1656 = vpop.xlane.xlu0 %1655
    %1657 = vadd.xlane.f32.xlu0 %v1402
    %v1658 = vpop.xlane.xlu0 %1657
    %1659 = vadd.xlane.f32.xlu0 %v1404
    %v1660 = vpop.xlane.xlu0 %1659
    %1661 = vadd.xlane.f32.xlu0 %v1406
    %v1662 = vpop.xlane.xlu0 %1661
    %1663 = vadd.xlane.f32.xlu0 %v1408
    %v1664 = vpop.xlane.xlu0 %1663
    %1665 = vadd.xlane.f32.xlu0 %v1410
    %v1666 = vpop.xlane.xlu0 %1665
    %1667 = vadd.xlane.f32.xlu0 %v1412
    %v1668 = vpop.xlane.xlu0 %1667
    %1669 = vadd.xlane.f32.xlu0 %v1414
    %v1670 = vpop.xlane.xlu0 %1669
    %1671 = vadd.xlane.f32.xlu0 %v1416
    %v1672 = vpop.xlane.xlu0 %1671
    %1673 = vadd.xlane.f32.xlu0 %v1418
    %v1674 = vpop.xlane.xlu0 %1673
    %v1675 = vlog2.pop %v1420
    %v1676 = vmul.f32 %v1675, 0.6931472
    %v1677 = vlog2.pop %v1422
    %v1678 = vmul.f32 %v1677, 0.6931472
    %v1679 = vlog2.pop %v1424
    %v1680 = vmul.f32 %v1679, 0.6931472
    %v1681 = vlog2.pop %v1426
    %v1682 = vmul.f32 %v1681, 0.6931472
    %v1683 = vlog2.pop %v1428
    %v1684 = vmul.f32 %v1683, 0.6931472
    %v1685 = vlog2.pop %v1430
    %v1686 = vmul.f32 %v1685, 0.6931472
    %v1687 = vlog2.pop %v1432
    %v1688 = vmul.f32 %v1687, 0.6931472
    %v1689 = vlog2.pop %v1434
    %v1690 = vmul.f32 %v1689, 0.6931472
    %v1691 = vlog2.pop %v1436
    %v1692 = vmul.f32 %v1691, 0.6931472
    %v1693 = vlog2.pop %v1438
    %v1694 = vmul.f32 %v1693, 0.6931472
    %v1695 = vlog2.pop %v1440
    %v1696 = vmul.f32 %v1695, 0.6931472
    %v1697 = vlog2.pop %v1442
    %v1698 = vmul.f32 %v1697, 0.6931472
    %v1699 = vlog2.pop %v1444
    %v1700 = vmul.f32 %v1699, 0.6931472
    %v1701 = vlog2.pop %v1446
    %v1702 = vmul.f32 %v1701, 0.6931472
    %v1703 = vlog2.pop %v1448
    %v1704 = vmul.f32 %v1703, 0.6931472
    %v1705 = vlog2.pop %v1450
    %v1706 = vmul.f32 %v1705, 0.6931472
    %v1707 = vlog2.pop %v1452
    %v1708 = vmul.f32 %v1707, 0.6931472
    %v1709 = vlog2.pop %v1454
    %v1710 = vmul.f32 %v1709, 0.6931472
    %v1711 = vlog2.pop %v1456
    %v1712 = vmul.f32 %v1711, 0.6931472
    %v1713 = vlog2.pop %v1458
    %v1714 = vmul.f32 %v1713, 0.6931472
    %v1715 = vlog2.pop %v1460
    %v1716 = vmul.f32 %v1715, 0.6931472
    %v1717 = vlog2.pop %v1462
    %v1718 = vmul.f32 %v1717, 0.6931472
    %v1719 = vlog2.pop %v1464
    %v1720 = vmul.f32 %v1719, 0.6931472
    %v1721 = vlog2.pop %v1466
    %v1722 = vmul.f32 %v1721, 0.6931472
    %v1723 = vlog2.pop %v1468
    %v1724 = vmul.f32 %v1723, 0.6931472
    %v1725 = vlog2.pop %v1470
    %v1726 = vmul.f32 %v1725, 0.6931472
    %v1727 = vlog2.pop %v1472
    %v1728 = vmul.f32 %v1727, 0.6931472
    %v1729 = vlog2.pop %v1474
    %v1730 = vmul.f32 %v1729, 0.6931472
    %v1731 = vlog2.pop %v1476
    %v1732 = vmul.f32 %v1731, 0.6931472
    %v1733 = vlog2.pop %v1478
    %v1734 = vmul.f32 %v1733, 0.6931472
    %v1735 = vlog2.pop %v1480
    %v1736 = vmul.f32 %v1735, 0.6931472
    %v1737 = vlog2.pop %v1482
    %v1738 = vmul.f32 %v1737, 0.6931472
    %v1739 = vlog2.pop %v1484
    %v1740 = vmul.f32 %v1739, 0.6931472
    %v1741 = vlog2.pop %v1486
    %v1742 = vmul.f32 %v1741, 0.6931472
    %v1743 = vlog2.pop %v1488
    %v1744 = vmul.f32 %v1743, 0.6931472
    %v1745 = vlog2.pop %v1490
    %v1746 = vmul.f32 %v1745, 0.6931472
    %v1747 = vlog2.pop %v1492
    %v1748 = vmul.f32 %v1747, 0.6931472
    %v1749 = vlog2.pop %v1494
    %v1750 = vmul.f32 %v1749, 0.6931472
    %v1751 = vlog2.pop %v1496
    %v1752 = vmul.f32 %v1751, 0.6931472
    %v1753 = vlog2.pop %v1498
    %v1754 = vmul.f32 %v1753, 0.6931472
    %v1755 = vlog2.pop %v1500
    %v1756 = vmul.f32 %v1755, 0.6931472
    %v1757 = vlog2.pop %v1502
    %v1758 = vmul.f32 %v1757, 0.6931472
    %v1759 = vlog2.pop %v1504
    %v1760 = vmul.f32 %v1759, 0.6931472
    %v1761 = vlog2.pop %v1506
    %v1762 = vmul.f32 %v1761, 0.6931472
    %v1763 = vlog2.pop %v1508
    %v1764 = vmul.f32 %v1763, 0.6931472
    %v1765 = vlog2.pop %v1510
    %v1766 = vmul.f32 %v1765, 0.6931472
    %v1767 = vlog2.pop %v1512
    %v1768 = vmul.f32 %v1767, 0.6931472
    %v1769 = vlog2.pop %v1514
    %v1770 = vmul.f32 %v1769, 0.6931472
    %v1771 = vlog2.pop %v1516
    %v1772 = vmul.f32 %v1771, 0.6931472
    %v1773 = vlog2.pop %v1518
    %v1774 = vmul.f32 %v1773, 0.6931472
    %v1775 = vlog2.pop %v1520
    %v1776 = vmul.f32 %v1775, 0.6931472
    %v1777 = vlog2.pop %v1522
    %v1778 = vmul.f32 %v1777, 0.6931472
    %v1779 = vlog2.pop %v1524
    %v1780 = vmul.f32 %v1779, 0.6931472
    %v1781 = vlog2.pop %v1526
    %v1782 = vmul.f32 %v1781, 0.6931472
    %v1783 = vlog2.pop %v1528
    %v1784 = vmul.f32 %v1783, 0.6931472
    %v1785 = vlog2.pop %v1530
    %v1786 = vmul.f32 %v1785, 0.6931472
    %v1787 = vlog2.pop %v1532
    %v1788 = vmul.f32 %v1787, 0.6931472
    %v1789 = vlog2.pop %v1534
    %v1790 = vmul.f32 %v1789, 0.6931472
    %v1791 = vlog2.pop %v1536
    %v1792 = vmul.f32 %v1791, 0.6931472
    %v1793 = vlog2.pop %v1538
    %v1794 = vmul.f32 %v1793, 0.6931472
    %v1795 = vlog2.pop %v1540
    %v1796 = vmul.f32 %v1795, 0.6931472
    %v1797 = vlog2.pop %v1542
    %v1798 = vmul.f32 %v1797, 0.6931472
    %v1799 = vlog2.pop %v1544
    %v1800 = vmul.f32 %v1799, 0.6931472
    %v1801 = vlog2.pop %v1546
    %v1802 = vmul.f32 %v1801, 0.6931472
    %v1803 = vlog2.pop %v1548
    %v1804 = vmul.f32 %v1803, 0.6931472
    %v1805 = vlog2.pop %v1550
    %v1806 = vmul.f32 %v1805, 0.6931472
    %v1807 = vlog2.pop %v1552
    %v1808 = vmul.f32 %v1807, 0.6931472
    %v1809 = vlog2.pop %v1554
    %v1810 = vmul.f32 %v1809, 0.6931472
    %v1811 = vlog2.pop %v1556
    %v1812 = vmul.f32 %v1811, 0.6931472
    %v1813 = vlog2.pop %v1558
    %v1814 = vmul.f32 %v1813, 0.6931472
    %v1815 = vlog2.pop %v1560
    %v1816 = vmul.f32 %v1815, 0.6931472
    %v1817 = vlog2.pop %v1562
    %v1818 = vmul.f32 %v1817, 0.6931472
    %v1819 = vlog2.pop %v1564
    %v1820 = vmul.f32 %v1819, 0.6931472
    %v1821 = vlog2.pop %v1566
    %v1822 = vmul.f32 %v1821, 0.6931472
    %v1823 = vlog2.pop %v1568
    %v1824 = vmul.f32 %v1823, 0.6931472
    %v1825 = vlog2.pop %v1570
    %v1826 = vmul.f32 %v1825, 0.6931472
    %v1827 = vlog2.pop %v1572
    %v1828 = vmul.f32 %v1827, 0.6931472
    %v1829 = vlog2.pop %v1574
    %v1830 = vmul.f32 %v1829, 0.6931472
    %v1831 = vlog2.pop %v1576
    %v1832 = vmul.f32 %v1831, 0.6931472
    %v1833 = vlog2.pop %v1578
    %v1834 = vmul.f32 %v1833, 0.6931472
    %v1835 = vlog2.pop %v1580
    %v1836 = vmul.f32 %v1835, 0.6931472
    %v1837 = vlog2.pop %v1582
    %v1838 = vmul.f32 %v1837, 0.6931472
    %v1839 = vlog2.pop %v1584
    %v1840 = vmul.f32 %v1839, 0.6931472
    %v1841 = vlog2.pop %v1586
    %v1842 = vmul.f32 %v1841, 0.6931472
    %v1843 = vlog2.pop %v1588
    %v1844 = vmul.f32 %v1843, 0.6931472
    %v1845 = vlog2.pop %v1590
    %v1846 = vmul.f32 %v1845, 0.6931472
    %v1847 = vlog2.pop %v1592
    %v1848 = vmul.f32 %v1847, 0.6931472
    %v1849 = vlog2.pop %v1594
    %v1850 = vmul.f32 %v1849, 0.6931472
    %v1851 = vlog2.pop %v1596
    %v1852 = vmul.f32 %v1851, 0.6931472
    %v1853 = vlog2.pop %v1598
    %v1854 = vmul.f32 %v1853, 0.6931472
    %v1855 = vlog2.pop %v1600
    %v1856 = vmul.f32 %v1855, 0.6931472
    %v1857 = vlog2.pop %v1602
    %v1858 = vmul.f32 %v1857, 0.6931472
    %v1859 = vlog2.pop %v1604
    %v1860 = vmul.f32 %v1859, 0.6931472
    %v1861 = vlog2.pop %v1606
    %v1862 = vmul.f32 %v1861, 0.6931472
    %v1863 = vlog2.pop %v1608
    %v1864 = vmul.f32 %v1863, 0.6931472
    %v1865 = vlog2.pop %v1610
    %v1866 = vmul.f32 %v1865, 0.6931472
    %v1867 = vlog2.pop %v1612
    %v1868 = vmul.f32 %v1867, 0.6931472
    %v1869 = vlog2.pop %v1614
    %v1870 = vmul.f32 %v1869, 0.6931472
    %v1871 = vlog2.pop %v1616
    %v1872 = vmul.f32 %v1871, 0.6931472
    %v1873 = vlog2.pop %v1618
    %v1874 = vmul.f32 %v1873, 0.6931472
    %v1875 = vlog2.pop %v1620
    %v1876 = vmul.f32 %v1875, 0.6931472
    %v1877 = vlog2.pop %v1622
    %v1878 = vmul.f32 %v1877, 0.6931472
    %v1879 = vlog2.pop %v1624
    %v1880 = vmul.f32 %v1879, 0.6931472
    %v1881 = vlog2.pop %v1626
    %v1882 = vmul.f32 %v1881, 0.6931472
    %v1883 = vlog2.pop %v1628
    %v1884 = vmul.f32 %v1883, 0.6931472
    %v1885 = vlog2.pop %v1630
    %v1886 = vmul.f32 %v1885, 0.6931472
    %v1887 = vlog2.pop %v1632
    %v1888 = vmul.f32 %v1887, 0.6931472
    %v1889 = vlog2.pop %v1634
    %v1890 = vmul.f32 %v1889, 0.6931472
    %v1891 = vlog2.pop %v1636
    %v1892 = vmul.f32 %v1891, 0.6931472
    %v1893 = vlog2.pop %v1638
    %v1894 = vmul.f32 %v1893, 0.6931472
    %v1895 = vlog2.pop %v1640
    %v1896 = vmul.f32 %v1895, 0.6931472
    %v1897 = vlog2.pop %v1642
    %v1898 = vmul.f32 %v1897, 0.6931472
    %v1899 = vlog2.pop %v1644
    %v1900 = vmul.f32 %v1899, 0.6931472
    %v1901 = vlog2.pop %v1646
    %v1902 = vmul.f32 %v1901, 0.6931472
    %v1903 = vlog2.pop %v1648
    %v1904 = vmul.f32 %v1903, 0.6931472
    %v1905 = vlog2.pop %v1650
    %v1906 = vmul.f32 %v1905, 0.6931472
    %v1907 = vlog2.pop %v1652
    %v1908 = vmul.f32 %v1907, 0.6931472
    %v1909 = vlog2.pop %v1654
    %v1910 = vmul.f32 %v1909, 0.6931472
    %v1911 = vlog2.pop %v1656
    %v1912 = vmul.f32 %v1911, 0.6931472
    %v1913 = vlog2.pop %v1658
    %v1914 = vmul.f32 %v1913, 0.6931472
    %v1915 = vlog2.pop %v1660
    %v1916 = vmul.f32 %v1915, 0.6931472
    %v1917 = vlog2.pop %v1662
    %v1918 = vmul.f32 %v1917, 0.6931472
    %v1919 = vlog2.pop %v1664
    %v1920 = vmul.f32 %v1919, 0.6931472
    %v1921 = vlog2.pop %v1666
    %v1922 = vmul.f32 %v1921, 0.6931472
    %v1923 = vlog2.pop %v1668
    %v1924 = vmul.f32 %v1923, 0.6931472
    %v1925 = vlog2.pop %v1670
    %v1926 = vmul.f32 %v1925, 0.6931472
    %v1927 = vlog2.pop %v1672
    %v1928 = vmul.f32 %v1927, 0.6931472
    %v1929 = vlog2.pop %v1674
    %v1930 = vmul.f32 %v1929, 0.6931472
    %v1931 = vadd.f32 %v780, %v1676
    %v1932 = vadd.f32 %v782, %v1678
    %v1933 = vadd.f32 %v784, %v1680
    %v1934 = vadd.f32 %v786, %v1682
    %v1935 = vadd.f32 %v788, %v1684
    %v1936 = vadd.f32 %v790, %v1686
    %v1937 = vadd.f32 %v792, %v1688
    %v1938 = vadd.f32 %v794, %v1690
    %v1939 = vadd.f32 %v796, %v1692
    %v1940 = vadd.f32 %v798, %v1694
    %v1941 = vadd.f32 %v800, %v1696
    %v1942 = vadd.f32 %v802, %v1698
    %v1943 = vadd.f32 %v804, %v1700
    %v1944 = vadd.f32 %v806, %v1702
    %v1945 = vadd.f32 %v808, %v1704
    %v1946 = vadd.f32 %v810, %v1706
    %v1947 = vadd.f32 %v812, %v1708
    %v1948 = vadd.f32 %v814, %v1710
    %v1949 = vadd.f32 %v816, %v1712
    %v1950 = vadd.f32 %v818, %v1714
    %v1951 = vadd.f32 %v820, %v1716
    %v1952 = vadd.f32 %v822, %v1718
    %v1953 = vadd.f32 %v824, %v1720
    %v1954 = vadd.f32 %v826, %v1722
    %v1955 = vadd.f32 %v828, %v1724
    %v1956 = vadd.f32 %v830, %v1726
    %v1957 = vadd.f32 %v832, %v1728
    %v1958 = vadd.f32 %v834, %v1730
    %v1959 = vadd.f32 %v836, %v1732
    %v1960 = vadd.f32 %v838, %v1734
    %v1961 = vadd.f32 %v840, %v1736
    %v1962 = vadd.f32 %v842, %v1738
    %v1963 = vadd.f32 %v844, %v1740
    %v1964 = vadd.f32 %v846, %v1742
    %v1965 = vadd.f32 %v848, %v1744
    %v1966 = vadd.f32 %v850, %v1746
    %v1967 = vadd.f32 %v852, %v1748
    %v1968 = vadd.f32 %v854, %v1750
    %v1969 = vadd.f32 %v856, %v1752
    %v1970 = vadd.f32 %v858, %v1754
    %v1971 = vadd.f32 %v860, %v1756
    %v1972 = vadd.f32 %v862, %v1758
    %v1973 = vadd.f32 %v864, %v1760
    %v1974 = vadd.f32 %v866, %v1762
    %v1975 = vadd.f32 %v868, %v1764
    %v1976 = vadd.f32 %v870, %v1766
    %v1977 = vadd.f32 %v872, %v1768
    %v1978 = vadd.f32 %v874, %v1770
    %v1979 = vadd.f32 %v876, %v1772
    %v1980 = vadd.f32 %v878, %v1774
    %v1981 = vadd.f32 %v880, %v1776
    %v1982 = vadd.f32 %v882, %v1778
    %v1983 = vadd.f32 %v884, %v1780
    %v1984 = vadd.f32 %v886, %v1782
    %v1985 = vadd.f32 %v888, %v1784
    %v1986 = vadd.f32 %v890, %v1786
    %v1987 = vadd.f32 %v892, %v1788
    %v1988 = vadd.f32 %v894, %v1790
    %v1989 = vadd.f32 %v896, %v1792
    %v1990 = vadd.f32 %v898, %v1794
    %v1991 = vadd.f32 %v900, %v1796
    %v1992 = vadd.f32 %v902, %v1798
    %v1993 = vadd.f32 %v904, %v1800
    %v1994 = vadd.f32 %v906, %v1802
    %v1995 = vadd.f32 %v908, %v1804
    %v1996 = vadd.f32 %v910, %v1806
    %v1997 = vadd.f32 %v912, %v1808
    %v1998 = vadd.f32 %v914, %v1810
    %v1999 = vadd.f32 %v916, %v1812
    %v2000 = vadd.f32 %v918, %v1814
    %v2001 = vadd.f32 %v920, %v1816
    %v2002 = vadd.f32 %v922, %v1818
    %v2003 = vadd.f32 %v924, %v1820
    %v2004 = vadd.f32 %v926, %v1822
    %v2005 = vadd.f32 %v928, %v1824
    %v2006 = vadd.f32 %v930, %v1826
    %v2007 = vadd.f32 %v932, %v1828
    %v2008 = vadd.f32 %v934, %v1830
    %v2009 = vadd.f32 %v936, %v1832
    %v2010 = vadd.f32 %v938, %v1834
    %v2011 = vadd.f32 %v940, %v1836
    %v2012 = vadd.f32 %v942, %v1838
    %v2013 = vadd.f32 %v944, %v1840
    %v2014 = vadd.f32 %v946, %v1842
    %v2015 = vadd.f32 %v948, %v1844
    %v2016 = vadd.f32 %v950, %v1846
    %v2017 = vadd.f32 %v952, %v1848
    %v2018 = vadd.f32 %v954, %v1850
    %v2019 = vadd.f32 %v956, %v1852
    %v2020 = vadd.f32 %v958, %v1854
    %v2021 = vadd.f32 %v960, %v1856
    %v2022 = vadd.f32 %v962, %v1858
    %v2023 = vadd.f32 %v964, %v1860
    %v2024 = vadd.f32 %v966, %v1862
    %v2025 = vadd.f32 %v968, %v1864
    %v2026 = vadd.f32 %v970, %v1866
    %v2027 = vadd.f32 %v972, %v1868
    %v2028 = vadd.f32 %v974, %v1870
    %v2029 = vadd.f32 %v976, %v1872
    %v2030 = vadd.f32 %v978, %v1874
    %v2031 = vadd.f32 %v980, %v1876
    %v2032 = vadd.f32 %v982, %v1878
    %v2033 = vadd.f32 %v984, %v1880
    %v2034 = vadd.f32 %v986, %v1882
    %v2035 = vadd.f32 %v988, %v1884
    %v2036 = vadd.f32 %v990, %v1886
    %v2037 = vadd.f32 %v992, %v1888
    %v2038 = vadd.f32 %v994, %v1890
    %v2039 = vadd.f32 %v996, %v1892
    %v2040 = vadd.f32 %v998, %v1894
    %v2041 = vadd.f32 %v1000, %v1896
    %v2042 = vadd.f32 %v1002, %v1898
    %v2043 = vadd.f32 %v1004, %v1900
    %v2044 = vadd.f32 %v1006, %v1902
    %v2045 = vadd.f32 %v1008, %v1904
    %v2046 = vadd.f32 %v1010, %v1906
    %v2047 = vadd.f32 %v1012, %v1908
    %v2048 = vadd.f32 %v1014, %v1910
    %v2049 = vadd.f32 %v1016, %v1912
    %v2050 = vadd.f32 %v1018, %v1914
    %v2051 = vadd.f32 %v1020, %v1916
    %v2052 = vadd.f32 %v1022, %v1918
    %v2053 = vadd.f32 %v1024, %v1920
    %v2054 = vadd.f32 %v1026, %v1922
    %v2055 = vadd.f32 %v1028, %v1924
    %v2056 = vadd.f32 %v1030, %v1926
    %v2057 = vadd.f32 %v1032, %v1928
    %v2058 = vadd.f32 %v1034, %v1930
    %2059 = vset.pattern.permute.xlu0 0
    %2060 = vperm.xlu0 %2059, %v266
    %v2061 = vpop.permute.xlu0 %2060
    %2062 = vset.pattern.permute.xlu0 0
    %2063 = vperm.xlu0 %2062, %v267
    %v2064 = vpop.permute.xlu0 %2063
    %2065 = vset.pattern.permute.xlu0 0
    %2066 = vperm.xlu0 %2065, %v268
    %v2067 = vpop.permute.xlu0 %2066
    %2068 = vset.pattern.permute.xlu0 0
    %2069 = vperm.xlu0 %2068, %v269
    %v2070 = vpop.permute.xlu0 %2069
    %2071 = vset.pattern.permute.xlu0 0
    %2072 = vperm.xlu0 %2071, %v270
    %v2073 = vpop.permute.xlu0 %2072
    %2074 = vset.pattern.permute.xlu0 0
    %2075 = vperm.xlu0 %2074, %v271
    %v2076 = vpop.permute.xlu0 %2075
    %2077 = vset.pattern.permute.xlu0 0
    %2078 = vperm.xlu0 %2077, %v272
    %v2079 = vpop.permute.xlu0 %2078
    %2080 = vset.pattern.permute.xlu0 0
    %2081 = vperm.xlu0 %2080, %v273
    %v2082 = vpop.permute.xlu0 %2081
    %2083 = vset.pattern.permute.xlu0 0
    %2084 = vperm.xlu0 %2083, %v274
    %v2085 = vpop.permute.xlu0 %2084
    %2086 = vset.pattern.permute.xlu0 0
    %2087 = vperm.xlu0 %2086, %v275
    %v2088 = vpop.permute.xlu0 %2087
    %2089 = vset.pattern.permute.xlu0 0
    %2090 = vperm.xlu0 %2089, %v276
    %v2091 = vpop.permute.xlu0 %2090
    %2092 = vset.pattern.permute.xlu0 0
    %2093 = vperm.xlu0 %2092, %v277
    %v2094 = vpop.permute.xlu0 %2093
    %2095 = vset.pattern.permute.xlu0 0
    %2096 = vperm.xlu0 %2095, %v278
    %v2097 = vpop.permute.xlu0 %2096
    %2098 = vset.pattern.permute.xlu0 0
    %2099 = vperm.xlu0 %2098, %v279
    %v2100 = vpop.permute.xlu0 %2099
    %2101 = vset.pattern.permute.xlu0 0
    %2102 = vperm.xlu0 %2101, %v280
    %v2103 = vpop.permute.xlu0 %2102
    %2104 = vset.pattern.permute.xlu0 0
    %2105 = vperm.xlu0 %2104, %v281
    %v2106 = vpop.permute.xlu0 %2105
    %2107 = vset.pattern.permute.xlu0 0
    %2108 = vperm.xlu0 %2107, %v282
    %v2109 = vpop.permute.xlu0 %2108
    %2110 = vset.pattern.permute.xlu0 0
    %2111 = vperm.xlu0 %2110, %v283
    %v2112 = vpop.permute.xlu0 %2111
    %2113 = vset.pattern.permute.xlu0 0
    %2114 = vperm.xlu0 %2113, %v284
    %v2115 = vpop.permute.xlu0 %2114
    %2116 = vset.pattern.permute.xlu0 0
    %2117 = vperm.xlu0 %2116, %v285
    %v2118 = vpop.permute.xlu0 %2117
    %2119 = vset.pattern.permute.xlu0 0
    %2120 = vperm.xlu0 %2119, %v286
    %v2121 = vpop.permute.xlu0 %2120
    %2122 = vset.pattern.permute.xlu0 0
    %2123 = vperm.xlu0 %2122, %v287
    %v2124 = vpop.permute.xlu0 %2123
    %2125 = vset.pattern.permute.xlu0 0
    %2126 = vperm.xlu0 %2125, %v288
    %v2127 = vpop.permute.xlu0 %2126
    %2128 = vset.pattern.permute.xlu0 0
    %2129 = vperm.xlu0 %2128, %v289
    %v2130 = vpop.permute.xlu0 %2129
    %2131 = vset.pattern.permute.xlu0 0
    %2132 = vperm.xlu0 %2131, %v290
    %v2133 = vpop.permute.xlu0 %2132
    %2134 = vset.pattern.permute.xlu0 0
    %2135 = vperm.xlu0 %2134, %v291
    %v2136 = vpop.permute.xlu0 %2135
    %2137 = vset.pattern.permute.xlu0 0
    %2138 = vperm.xlu0 %2137, %v292
    %v2139 = vpop.permute.xlu0 %2138
    %2140 = vset.pattern.permute.xlu0 0
    %2141 = vperm.xlu0 %2140, %v293
    %v2142 = vpop.permute.xlu0 %2141
    %2143 = vset.pattern.permute.xlu0 0
    %2144 = vperm.xlu0 %2143, %v294
    %v2145 = vpop.permute.xlu0 %2144
    %2146 = vset.pattern.permute.xlu0 0
    %2147 = vperm.xlu0 %2146, %v295
    %v2148 = vpop.permute.xlu0 %2147
    %2149 = vset.pattern.permute.xlu0 0
    %2150 = vperm.xlu0 %2149, %v296
    %v2151 = vpop.permute.xlu0 %2150
    %2152 = vset.pattern.permute.xlu0 0
    %2153 = vperm.xlu0 %2152, %v297
    %v2154 = vpop.permute.xlu0 %2153
    %2155 = vset.pattern.permute.xlu0 0
    %2156 = vperm.xlu0 %2155, %v298
    %v2157 = vpop.permute.xlu0 %2156
    %2158 = vset.pattern.permute.xlu0 0
    %2159 = vperm.xlu0 %2158, %v299
    %v2160 = vpop.permute.xlu0 %2159
    %2161 = vset.pattern.permute.xlu0 0
    %2162 = vperm.xlu0 %2161, %v300
    %v2163 = vpop.permute.xlu0 %2162
    %2164 = vset.pattern.permute.xlu0 0
    %2165 = vperm.xlu0 %2164, %v301
    %v2166 = vpop.permute.xlu0 %2165
    %2167 = vset.pattern.permute.xlu0 0
    %2168 = vperm.xlu0 %2167, %v302
    %v2169 = vpop.permute.xlu0 %2168
    %2170 = vset.pattern.permute.xlu0 0
    %2171 = vperm.xlu0 %2170, %v303
    %v2172 = vpop.permute.xlu0 %2171
    %2173 = vset.pattern.permute.xlu0 0
    %2174 = vperm.xlu0 %2173, %v304
    %v2175 = vpop.permute.xlu0 %2174
    %2176 = vset.pattern.permute.xlu0 0
    %2177 = vperm.xlu0 %2176, %v305
    %v2178 = vpop.permute.xlu0 %2177
    %2179 = vset.pattern.permute.xlu0 0
    %2180 = vperm.xlu0 %2179, %v306
    %v2181 = vpop.permute.xlu0 %2180
    %2182 = vset.pattern.permute.xlu0 0
    %2183 = vperm.xlu0 %2182, %v307
    %v2184 = vpop.permute.xlu0 %2183
    %2185 = vset.pattern.permute.xlu0 0
    %2186 = vperm.xlu0 %2185, %v308
    %v2187 = vpop.permute.xlu0 %2186
    %2188 = vset.pattern.permute.xlu0 0
    %2189 = vperm.xlu0 %2188, %v309
    %v2190 = vpop.permute.xlu0 %2189
    %2191 = vset.pattern.permute.xlu0 0
    %2192 = vperm.xlu0 %2191, %v310
    %v2193 = vpop.permute.xlu0 %2192
    %2194 = vset.pattern.permute.xlu0 0
    %2195 = vperm.xlu0 %2194, %v311
    %v2196 = vpop.permute.xlu0 %2195
    %2197 = vset.pattern.permute.xlu0 0
    %2198 = vperm.xlu0 %2197, %v312
    %v2199 = vpop.permute.xlu0 %2198
    %2200 = vset.pattern.permute.xlu0 0
    %2201 = vperm.xlu0 %2200, %v313
    %v2202 = vpop.permute.xlu0 %2201
    %2203 = vset.pattern.permute.xlu0 0
    %2204 = vperm.xlu0 %2203, %v314
    %v2205 = vpop.permute.xlu0 %2204
    %2206 = vset.pattern.permute.xlu0 0
    %2207 = vperm.xlu0 %2206, %v315
    %v2208 = vpop.permute.xlu0 %2207
    %2209 = vset.pattern.permute.xlu0 0
    %2210 = vperm.xlu0 %2209, %v316
    %v2211 = vpop.permute.xlu0 %2210
    %2212 = vset.pattern.permute.xlu0 0
    %2213 = vperm.xlu0 %2212, %v317
    %v2214 = vpop.permute.xlu0 %2213
    %2215 = vset.pattern.permute.xlu0 0
    %2216 = vperm.xlu0 %2215, %v318
    %v2217 = vpop.permute.xlu0 %2216
    %2218 = vset.pattern.permute.xlu0 0
    %2219 = vperm.xlu0 %2218, %v319
    %v2220 = vpop.permute.xlu0 %2219
    %2221 = vset.pattern.permute.xlu0 0
    %2222 = vperm.xlu0 %2221, %v320
    %v2223 = vpop.permute.xlu0 %2222
    %2224 = vset.pattern.permute.xlu0 0
    %2225 = vperm.xlu0 %2224, %v321
    %v2226 = vpop.permute.xlu0 %2225
    %2227 = vset.pattern.permute.xlu0 0
    %2228 = vperm.xlu0 %2227, %v322
    %v2229 = vpop.permute.xlu0 %2228
    %2230 = vset.pattern.permute.xlu0 0
    %2231 = vperm.xlu0 %2230, %v323
    %v2232 = vpop.permute.xlu0 %2231
    %2233 = vset.pattern.permute.xlu0 0
    %2234 = vperm.xlu0 %2233, %v324
    %v2235 = vpop.permute.xlu0 %2234
    %2236 = vset.pattern.permute.xlu0 0
    %2237 = vperm.xlu0 %2236, %v325
    %v2238 = vpop.permute.xlu0 %2237
    %2239 = vset.pattern.permute.xlu0 0
    %2240 = vperm.xlu0 %2239, %v326
    %v2241 = vpop.permute.xlu0 %2240
    %2242 = vset.pattern.permute.xlu0 0
    %2243 = vperm.xlu0 %2242, %v327
    %v2244 = vpop.permute.xlu0 %2243
    %2245 = vset.pattern.permute.xlu0 0
    %2246 = vperm.xlu0 %2245, %v328
    %v2247 = vpop.permute.xlu0 %2246
    %2248 = vset.pattern.permute.xlu0 0
    %2249 = vperm.xlu0 %2248, %v329
    %v2250 = vpop.permute.xlu0 %2249
    %2251 = vset.pattern.permute.xlu0 0
    %2252 = vperm.xlu0 %2251, %v330
    %v2253 = vpop.permute.xlu0 %2252
    %2254 = vset.pattern.permute.xlu0 0
    %2255 = vperm.xlu0 %2254, %v331
    %v2256 = vpop.permute.xlu0 %2255
    %2257 = vset.pattern.permute.xlu0 0
    %2258 = vperm.xlu0 %2257, %v332
    %v2259 = vpop.permute.xlu0 %2258
    %2260 = vset.pattern.permute.xlu0 0
    %2261 = vperm.xlu0 %2260, %v333
    %v2262 = vpop.permute.xlu0 %2261
    %2263 = vset.pattern.permute.xlu0 0
    %2264 = vperm.xlu0 %2263, %v334
    %v2265 = vpop.permute.xlu0 %2264
    %2266 = vset.pattern.permute.xlu0 0
    %2267 = vperm.xlu0 %2266, %v335
    %v2268 = vpop.permute.xlu0 %2267
    %2269 = vset.pattern.permute.xlu0 0
    %2270 = vperm.xlu0 %2269, %v336
    %v2271 = vpop.permute.xlu0 %2270
    %2272 = vset.pattern.permute.xlu0 0
    %2273 = vperm.xlu0 %2272, %v337
    %v2274 = vpop.permute.xlu0 %2273
    %2275 = vset.pattern.permute.xlu0 0
    %2276 = vperm.xlu0 %2275, %v338
    %v2277 = vpop.permute.xlu0 %2276
    %2278 = vset.pattern.permute.xlu0 0
    %2279 = vperm.xlu0 %2278, %v339
    %v2280 = vpop.permute.xlu0 %2279
    %2281 = vset.pattern.permute.xlu0 0
    %2282 = vperm.xlu0 %2281, %v340
    %v2283 = vpop.permute.xlu0 %2282
    %2284 = vset.pattern.permute.xlu0 0
    %2285 = vperm.xlu0 %2284, %v341
    %v2286 = vpop.permute.xlu0 %2285
    %2287 = vset.pattern.permute.xlu0 0
    %2288 = vperm.xlu0 %2287, %v342
    %v2289 = vpop.permute.xlu0 %2288
    %2290 = vset.pattern.permute.xlu0 0
    %2291 = vperm.xlu0 %2290, %v343
    %v2292 = vpop.permute.xlu0 %2291
    %2293 = vset.pattern.permute.xlu0 0
    %2294 = vperm.xlu0 %2293, %v344
    %v2295 = vpop.permute.xlu0 %2294
    %2296 = vset.pattern.permute.xlu0 0
    %2297 = vperm.xlu0 %2296, %v345
    %v2298 = vpop.permute.xlu0 %2297
    %2299 = vset.pattern.permute.xlu0 0
    %2300 = vperm.xlu0 %2299, %v346
    %v2301 = vpop.permute.xlu0 %2300
    %2302 = vset.pattern.permute.xlu0 0
    %2303 = vperm.xlu0 %2302, %v347
    %v2304 = vpop.permute.xlu0 %2303
    %2305 = vset.pattern.permute.xlu0 0
    %2306 = vperm.xlu0 %2305, %v348
    %v2307 = vpop.permute.xlu0 %2306
    %2308 = vset.pattern.permute.xlu0 0
    %2309 = vperm.xlu0 %2308, %v349
    %v2310 = vpop.permute.xlu0 %2309
    %2311 = vset.pattern.permute.xlu0 0
    %2312 = vperm.xlu0 %2311, %v350
    %v2313 = vpop.permute.xlu0 %2312
    %2314 = vset.pattern.permute.xlu0 0
    %2315 = vperm.xlu0 %2314, %v351
    %v2316 = vpop.permute.xlu0 %2315
    %2317 = vset.pattern.permute.xlu0 0
    %2318 = vperm.xlu0 %2317, %v352
    %v2319 = vpop.permute.xlu0 %2318
    %2320 = vset.pattern.permute.xlu0 0
    %2321 = vperm.xlu0 %2320, %v353
    %v2322 = vpop.permute.xlu0 %2321
    %2323 = vset.pattern.permute.xlu0 0
    %2324 = vperm.xlu0 %2323, %v354
    %v2325 = vpop.permute.xlu0 %2324
    %2326 = vset.pattern.permute.xlu0 0
    %2327 = vperm.xlu0 %2326, %v355
    %v2328 = vpop.permute.xlu0 %2327
    %2329 = vset.pattern.permute.xlu0 0
    %2330 = vperm.xlu0 %2329, %v356
    %v2331 = vpop.permute.xlu0 %2330
    %2332 = vset.pattern.permute.xlu0 0
    %2333 = vperm.xlu0 %2332, %v357
    %v2334 = vpop.permute.xlu0 %2333
    %2335 = vset.pattern.permute.xlu0 0
    %2336 = vperm.xlu0 %2335, %v358
    %v2337 = vpop.permute.xlu0 %2336
    %2338 = vset.pattern.permute.xlu0 0
    %2339 = vperm.xlu0 %2338, %v359
    %v2340 = vpop.permute.xlu0 %2339
    %2341 = vset.pattern.permute.xlu0 0
    %2342 = vperm.xlu0 %2341, %v360
    %v2343 = vpop.permute.xlu0 %2342
    %2344 = vset.pattern.permute.xlu0 0
    %2345 = vperm.xlu0 %2344, %v361
    %v2346 = vpop.permute.xlu0 %2345
    %2347 = vset.pattern.permute.xlu0 0
    %2348 = vperm.xlu0 %2347, %v362
    %v2349 = vpop.permute.xlu0 %2348
    %2350 = vset.pattern.permute.xlu0 0
    %2351 = vperm.xlu0 %2350, %v363
    %v2352 = vpop.permute.xlu0 %2351
    %2353 = vset.pattern.permute.xlu0 0
    %2354 = vperm.xlu0 %2353, %v364
    %v2355 = vpop.permute.xlu0 %2354
    %2356 = vset.pattern.permute.xlu0 0
    %2357 = vperm.xlu0 %2356, %v365
    %v2358 = vpop.permute.xlu0 %2357
    %2359 = vset.pattern.permute.xlu0 0
    %2360 = vperm.xlu0 %2359, %v366
    %v2361 = vpop.permute.xlu0 %2360
    %2362 = vset.pattern.permute.xlu0 0
    %2363 = vperm.xlu0 %2362, %v367
    %v2364 = vpop.permute.xlu0 %2363
    %2365 = vset.pattern.permute.xlu0 0
    %2366 = vperm.xlu0 %2365, %v368
    %v2367 = vpop.permute.xlu0 %2366
    %2368 = vset.pattern.permute.xlu0 0
    %2369 = vperm.xlu0 %2368, %v369
    %v2370 = vpop.permute.xlu0 %2369
    %2371 = vset.pattern.permute.xlu0 0
    %2372 = vperm.xlu0 %2371, %v370
    %v2373 = vpop.permute.xlu0 %2372
    %2374 = vset.pattern.permute.xlu0 0
    %2375 = vperm.xlu0 %2374, %v371
    %v2376 = vpop.permute.xlu0 %2375
    %2377 = vset.pattern.permute.xlu0 0
    %2378 = vperm.xlu0 %2377, %v372
    %v2379 = vpop.permute.xlu0 %2378
    %2380 = vset.pattern.permute.xlu0 0
    %2381 = vperm.xlu0 %2380, %v373
    %v2382 = vpop.permute.xlu0 %2381
    %2383 = vset.pattern.permute.xlu0 0
    %2384 = vperm.xlu0 %2383, %v374
    %v2385 = vpop.permute.xlu0 %2384
    %2386 = vset.pattern.permute.xlu0 0
    %2387 = vperm.xlu0 %2386, %v375
    %v2388 = vpop.permute.xlu0 %2387
    %2389 = vset.pattern.permute.xlu0 0
    %2390 = vperm.xlu0 %2389, %v376
    %v2391 = vpop.permute.xlu0 %2390
    %2392 = vset.pattern.permute.xlu0 0
    %2393 = vperm.xlu0 %2392, %v377
    %v2394 = vpop.permute.xlu0 %2393
    %2395 = vset.pattern.permute.xlu0 0
    %2396 = vperm.xlu0 %2395, %v378
    %v2397 = vpop.permute.xlu0 %2396
    %2398 = vset.pattern.permute.xlu0 0
    %2399 = vperm.xlu0 %2398, %v379
    %v2400 = vpop.permute.xlu0 %2399
    %2401 = vset.pattern.permute.xlu0 0
    %2402 = vperm.xlu0 %2401, %v380
    %v2403 = vpop.permute.xlu0 %2402
    %2404 = vset.pattern.permute.xlu0 0
    %2405 = vperm.xlu0 %2404, %v381
    %v2406 = vpop.permute.xlu0 %2405
    %2407 = vset.pattern.permute.xlu0 0
    %2408 = vperm.xlu0 %2407, %v382
    %v2409 = vpop.permute.xlu0 %2408
    %2410 = vset.pattern.permute.xlu0 0
    %2411 = vperm.xlu0 %2410, %v383
    %v2412 = vpop.permute.xlu0 %2411
    %2413 = vset.pattern.permute.xlu0 0
    %2414 = vperm.xlu0 %2413, %v384
    %v2415 = vpop.permute.xlu0 %2414
    %2416 = vset.pattern.permute.xlu0 0
    %2417 = vperm.xlu0 %2416, %v385
    %v2418 = vpop.permute.xlu0 %2417
    %2419 = vset.pattern.permute.xlu0 0
    %2420 = vperm.xlu0 %2419, %v386
    %v2421 = vpop.permute.xlu0 %2420
    %2422 = vset.pattern.permute.xlu0 0
    %2423 = vperm.xlu0 %2422, %v387
    %v2424 = vpop.permute.xlu0 %2423
    %2425 = vset.pattern.permute.xlu0 0
    %2426 = vperm.xlu0 %2425, %v388
    %v2427 = vpop.permute.xlu0 %2426
    %2428 = vset.pattern.permute.xlu0 0
    %2429 = vperm.xlu0 %2428, %v389
    %v2430 = vpop.permute.xlu0 %2429
    %2431 = vset.pattern.permute.xlu0 0
    %2432 = vperm.xlu0 %2431, %v390
    %v2433 = vpop.permute.xlu0 %2432
    %2434 = vset.pattern.permute.xlu0 0
    %2435 = vperm.xlu0 %2434, %v391
    %v2436 = vpop.permute.xlu0 %2435
    %2437 = vset.pattern.permute.xlu0 0
    %2438 = vperm.xlu0 %2437, %v392
    %v2439 = vpop.permute.xlu0 %2438
    %2440 = vset.pattern.permute.xlu0 0
    %2441 = vperm.xlu0 %2440, %v393
    %v2442 = vpop.permute.xlu0 %2441
    %vm2443 = vcmp.eq.s32.totalorder %v107, %v2061
    %vm2444 = vcmp.eq.s32.totalorder %v107, %v2064
    %vm2445 = vcmp.eq.s32.totalorder %v107, %v2067
    %vm2446 = vcmp.eq.s32.totalorder %v107, %v2070
    %vm2447 = vcmp.eq.s32.totalorder %v107, %v2073
    %vm2448 = vcmp.eq.s32.totalorder %v107, %v2076
    %vm2449 = vcmp.eq.s32.totalorder %v107, %v2079
    %vm2450 = vcmp.eq.s32.totalorder %v107, %v2082
    %vm2451 = vcmp.eq.s32.totalorder %v107, %v2085
    %vm2452 = vcmp.eq.s32.totalorder %v107, %v2088
    %vm2453 = vcmp.eq.s32.totalorder %v107, %v2091
    %vm2454 = vcmp.eq.s32.totalorder %v107, %v2094
    %vm2455 = vcmp.eq.s32.totalorder %v107, %v2097
    %vm2456 = vcmp.eq.s32.totalorder %v107, %v2100
    %vm2457 = vcmp.eq.s32.totalorder %v107, %v2103
    %vm2458 = vcmp.eq.s32.totalorder %v107, %v2106
    %vm2459 = vcmp.eq.s32.totalorder %v107, %v2109
    %vm2460 = vcmp.eq.s32.totalorder %v107, %v2112
    %vm2461 = vcmp.eq.s32.totalorder %v107, %v2115
    %vm2462 = vcmp.eq.s32.totalorder %v107, %v2118
    %vm2463 = vcmp.eq.s32.totalorder %v107, %v2121
    %vm2464 = vcmp.eq.s32.totalorder %v107, %v2124
    %vm2465 = vcmp.eq.s32.totalorder %v107, %v2127
    %vm2466 = vcmp.eq.s32.totalorder %v107, %v2130
    %vm2467 = vcmp.eq.s32.totalorder %v107, %v2133
    %vm2468 = vcmp.eq.s32.totalorder %v107, %v2136
    %vm2469 = vcmp.eq.s32.totalorder %v107, %v2139
    %vm2470 = vcmp.eq.s32.totalorder %v107, %v2142
    %vm2471 = vcmp.eq.s32.totalorder %v107, %v2145
    %vm2472 = vcmp.eq.s32.totalorder %v107, %v2148
    %vm2473 = vcmp.eq.s32.totalorder %v107, %v2151
    %vm2474 = vcmp.eq.s32.totalorder %v107, %v2154
    %vm2475 = vcmp.eq.s32.totalorder %v107, %v2157
    %vm2476 = vcmp.eq.s32.totalorder %v107, %v2160
    %vm2477 = vcmp.eq.s32.totalorder %v107, %v2163
    %vm2478 = vcmp.eq.s32.totalorder %v107, %v2166
    %vm2479 = vcmp.eq.s32.totalorder %v107, %v2169
    %vm2480 = vcmp.eq.s32.totalorder %v107, %v2172
    %vm2481 = vcmp.eq.s32.totalorder %v107, %v2175
    %vm2482 = vcmp.eq.s32.totalorder %v107, %v2178
    %vm2483 = vcmp.eq.s32.totalorder %v107, %v2181
    %vm2484 = vcmp.eq.s32.totalorder %v107, %v2184
    %vm2485 = vcmp.eq.s32.totalorder %v107, %v2187
    %vm2486 = vcmp.eq.s32.totalorder %v107, %v2190
    %vm2487 = vcmp.eq.s32.totalorder %v107, %v2193
    %vm2488 = vcmp.eq.s32.totalorder %v107, %v2196
    %vm2489 = vcmp.eq.s32.totalorder %v107, %v2199
    %vm2490 = vcmp.eq.s32.totalorder %v107, %v2202
    %vm2491 = vcmp.eq.s32.totalorder %v107, %v2205
    %vm2492 = vcmp.eq.s32.totalorder %v107, %v2208
    %vm2493 = vcmp.eq.s32.totalorder %v107, %v2211
    %vm2494 = vcmp.eq.s32.totalorder %v107, %v2214
    %vm2495 = vcmp.eq.s32.totalorder %v107, %v2217
    %vm2496 = vcmp.eq.s32.totalorder %v107, %v2220
    %vm2497 = vcmp.eq.s32.totalorder %v107, %v2223
    %vm2498 = vcmp.eq.s32.totalorder %v107, %v2226
    %vm2499 = vcmp.eq.s32.totalorder %v107, %v2229
    %vm2500 = vcmp.eq.s32.totalorder %v107, %v2232
    %vm2501 = vcmp.eq.s32.totalorder %v107, %v2235
    %vm2502 = vcmp.eq.s32.totalorder %v107, %v2238
    %vm2503 = vcmp.eq.s32.totalorder %v107, %v2241
    %vm2504 = vcmp.eq.s32.totalorder %v107, %v2244
    %vm2505 = vcmp.eq.s32.totalorder %v107, %v2247
    %vm2506 = vcmp.eq.s32.totalorder %v107, %v2250
    %vm2507 = vcmp.eq.s32.totalorder %v107, %v2253
    %vm2508 = vcmp.eq.s32.totalorder %v107, %v2256
    %vm2509 = vcmp.eq.s32.totalorder %v107, %v2259
    %vm2510 = vcmp.eq.s32.totalorder %v107, %v2262
    %vm2511 = vcmp.eq.s32.totalorder %v107, %v2265
    %vm2512 = vcmp.eq.s32.totalorder %v107, %v2268
    %vm2513 = vcmp.eq.s32.totalorder %v107, %v2271
    %vm2514 = vcmp.eq.s32.totalorder %v107, %v2274
    %vm2515 = vcmp.eq.s32.totalorder %v107, %v2277
    %vm2516 = vcmp.eq.s32.totalorder %v107, %v2280
    %vm2517 = vcmp.eq.s32.totalorder %v107, %v2283
    %vm2518 = vcmp.eq.s32.totalorder %v107, %v2286
    %vm2519 = vcmp.eq.s32.totalorder %v107, %v2289
    %vm2520 = vcmp.eq.s32.totalorder %v107, %v2292
    %vm2521 = vcmp.eq.s32.totalorder %v107, %v2295
    %vm2522 = vcmp.eq.s32.totalorder %v107, %v2298
    %vm2523 = vcmp.eq.s32.totalorder %v107, %v2301
    %vm2524 = vcmp.eq.s32.totalorder %v107, %v2304
    %vm2525 = vcmp.eq.s32.totalorder %v107, %v2307
    %vm2526 = vcmp.eq.s32.totalorder %v107, %v2310
    %vm2527 = vcmp.eq.s32.totalorder %v107, %v2313
    %vm2528 = vcmp.eq.s32.totalorder %v107, %v2316
    %vm2529 = vcmp.eq.s32.totalorder %v107, %v2319
    %vm2530 = vcmp.eq.s32.totalorder %v107, %v2322
    %vm2531 = vcmp.eq.s32.totalorder %v107, %v2325
    %vm2532 = vcmp.eq.s32.totalorder %v107, %v2328
    %vm2533 = vcmp.eq.s32.totalorder %v107, %v2331
    %vm2534 = vcmp.eq.s32.totalorder %v107, %v2334
    %vm2535 = vcmp.eq.s32.totalorder %v107, %v2337
    %vm2536 = vcmp.eq.s32.totalorder %v107, %v2340
    %vm2537 = vcmp.eq.s32.totalorder %v107, %v2343
    %vm2538 = vcmp.eq.s32.totalorder %v107, %v2346
    %vm2539 = vcmp.eq.s32.totalorder %v107, %v2349
    %vm2540 = vcmp.eq.s32.totalorder %v107, %v2352
    %vm2541 = vcmp.eq.s32.totalorder %v107, %v2355
    %vm2542 = vcmp.eq.s32.totalorder %v107, %v2358
    %vm2543 = vcmp.eq.s32.totalorder %v107, %v2361
    %vm2544 = vcmp.eq.s32.totalorder %v107, %v2364
    %vm2545 = vcmp.eq.s32.totalorder %v107, %v2367
    %vm2546 = vcmp.eq.s32.totalorder %v107, %v2370
    %vm2547 = vcmp.eq.s32.totalorder %v107, %v2373
    %vm2548 = vcmp.eq.s32.totalorder %v107, %v2376
    %vm2549 = vcmp.eq.s32.totalorder %v107, %v2379
    %vm2550 = vcmp.eq.s32.totalorder %v107, %v2382
    %vm2551 = vcmp.eq.s32.totalorder %v107, %v2385
    %vm2552 = vcmp.eq.s32.totalorder %v107, %v2388
    %vm2553 = vcmp.eq.s32.totalorder %v107, %v2391
    %vm2554 = vcmp.eq.s32.totalorder %v107, %v2394
    %vm2555 = vcmp.eq.s32.totalorder %v107, %v2397
    %vm2556 = vcmp.eq.s32.totalorder %v107, %v2400
    %vm2557 = vcmp.eq.s32.totalorder %v107, %v2403
    %vm2558 = vcmp.eq.s32.totalorder %v107, %v2406
    %vm2559 = vcmp.eq.s32.totalorder %v107, %v2409
    %vm2560 = vcmp.eq.s32.totalorder %v107, %v2412
    %vm2561 = vcmp.eq.s32.totalorder %v107, %v2415
    %vm2562 = vcmp.eq.s32.totalorder %v107, %v2418
    %vm2563 = vcmp.eq.s32.totalorder %v107, %v2421
    %vm2564 = vcmp.eq.s32.totalorder %v107, %v2424
    %vm2565 = vcmp.eq.s32.totalorder %v107, %v2427
    %vm2566 = vcmp.eq.s32.totalorder %v107, %v2430
    %vm2567 = vcmp.eq.s32.totalorder %v107, %v2433
    %vm2568 = vcmp.eq.s32.totalorder %v107, %v2436
    %vm2569 = vcmp.eq.s32.totalorder %v107, %v2439
    %vm2570 = vcmp.eq.s32.totalorder %v107, %v2442
    %vm2571 = vmand %vm2443, %vm651
    %vm2572 = vmand %vm2444, %vm652
    %vm2573 = vmand %vm2445, %vm653
    %vm2574 = vmand %vm2446, %vm654
    %vm2575 = vmand %vm2447, %vm655
    %vm2576 = vmand %vm2448, %vm656
    %vm2577 = vmand %vm2449, %vm657
    %vm2578 = vmand %vm2450, %vm658
    %vm2579 = vmand %vm2451, %vm659
    %vm2580 = vmand %vm2452, %vm660
    %vm2581 = vmand %vm2453, %vm661
    %vm2582 = vmand %vm2454, %vm662
    %vm2583 = vmand %vm2455, %vm663
    %vm2584 = vmand %vm2456, %vm664
    %vm2585 = vmand %vm2457, %vm665
    %vm2586 = vmand %vm2458, %vm666
    %vm2587 = vmand %vm2459, %vm667
    %vm2588 = vmand %vm2460, %vm668
    %vm2589 = vmand %vm2461, %vm669
    %vm2590 = vmand %vm2462, %vm670
    %vm2591 = vmand %vm2463, %vm671
    %vm2592 = vmand %vm2464, %vm672
    %vm2593 = vmand %vm2465, %vm673
    %vm2594 = vmand %vm2466, %vm674
    %vm2595 = vmand %vm2467, %vm675
    %vm2596 = vmand %vm2468, %vm676
    %vm2597 = vmand %vm2469, %vm677
    %vm2598 = vmand %vm2470, %vm678
    %vm2599 = vmand %vm2471, %vm679
    %vm2600 = vmand %vm2472, %vm680
    %vm2601 = vmand %vm2473, %vm681
    %vm2602 = vmand %vm2474, %vm682
    %vm2603 = vmand %vm2475, %vm683
    %vm2604 = vmand %vm2476, %vm684
    %vm2605 = vmand %vm2477, %vm685
    %vm2606 = vmand %vm2478, %vm686
    %vm2607 = vmand %vm2479, %vm687
    %vm2608 = vmand %vm2480, %vm688
    %vm2609 = vmand %vm2481, %vm689
    %vm2610 = vmand %vm2482, %vm690
    %vm2611 = vmand %vm2483, %vm691
    %vm2612 = vmand %vm2484, %vm692
    %vm2613 = vmand %vm2485, %vm693
    %vm2614 = vmand %vm2486, %vm694
    %vm2615 = vmand %vm2487, %vm695
    %vm2616 = vmand %vm2488, %vm696
    %vm2617 = vmand %vm2489, %vm697
    %vm2618 = vmand %vm2490, %vm698
    %vm2619 = vmand %vm2491, %vm699
    %vm2620 = vmand %vm2492, %vm700
    %vm2621 = vmand %vm2493, %vm701
    %vm2622 = vmand %vm2494, %vm702
    %vm2623 = vmand %vm2495, %vm703
    %vm2624 = vmand %vm2496, %vm704
    %vm2625 = vmand %vm2497, %vm705
    %vm2626 = vmand %vm2498, %vm706
    %vm2627 = vmand %vm2499, %vm707
    %vm2628 = vmand %vm2500, %vm708
    %vm2629 = vmand %vm2501, %vm709
    %vm2630 = vmand %vm2502, %vm710
    %vm2631 = vmand %vm2503, %vm711
    %vm2632 = vmand %vm2504, %vm712
    %vm2633 = vmand %vm2505, %vm713
    %vm2634 = vmand %vm2506, %vm714
    %vm2635 = vmand %vm2507, %vm715
    %vm2636 = vmand %vm2508, %vm716
    %vm2637 = vmand %vm2509, %vm717
    %vm2638 = vmand %vm2510, %vm718
    %vm2639 = vmand %vm2511, %vm719
    %vm2640 = vmand %vm2512, %vm720
    %vm2641 = vmand %vm2513, %vm721
    %vm2642 = vmand %vm2514, %vm722
    %vm2643 = vmand %vm2515, %vm723
    %vm2644 = vmand %vm2516, %vm724
    %vm2645 = vmand %vm2517, %vm725
    %vm2646 = vmand %vm2518, %vm726
    %vm2647 = vmand %vm2519, %vm727
    %vm2648 = vmand %vm2520, %vm728
    %vm2649 = vmand %vm2521, %vm729
    %vm2650 = vmand %vm2522, %vm730
    %vm2651 = vmand %vm2523, %vm731
    %vm2652 = vmand %vm2524, %vm732
    %vm2653 = vmand %vm2525, %vm733
    %vm2654 = vmand %vm2526, %vm734
    %vm2655 = vmand %vm2527, %vm735
    %vm2656 = vmand %vm2528, %vm736
    %vm2657 = vmand %vm2529, %vm737
    %vm2658 = vmand %vm2530, %vm738
    %vm2659 = vmand %vm2531, %vm739
    %vm2660 = vmand %vm2532, %vm740
    %vm2661 = vmand %vm2533, %vm741
    %vm2662 = vmand %vm2534, %vm742
    %vm2663 = vmand %vm2535, %vm743
    %vm2664 = vmand %vm2536, %vm744
    %vm2665 = vmand %vm2537, %vm745
    %vm2666 = vmand %vm2538, %vm746
    %vm2667 = vmand %vm2539, %vm747
    %vm2668 = vmand %vm2540, %vm748
    %vm2669 = vmand %vm2541, %vm749
    %vm2670 = vmand %vm2542, %vm750
    %vm2671 = vmand %vm2543, %vm751
    %vm2672 = vmand %vm2544, %vm752
    %vm2673 = vmand %vm2545, %vm753
    %vm2674 = vmand %vm2546, %vm754
    %vm2675 = vmand %vm2547, %vm755
    %vm2676 = vmand %vm2548, %vm756
    %vm2677 = vmand %vm2549, %vm757
    %vm2678 = vmand %vm2550, %vm758
    %vm2679 = vmand %vm2551, %vm759
    %vm2680 = vmand %vm2552, %vm760
    %vm2681 = vmand %vm2553, %vm761
    %vm2682 = vmand %vm2554, %vm762
    %vm2683 = vmand %vm2555, %vm763
    %vm2684 = vmand %vm2556, %vm764
    %vm2685 = vmand %vm2557, %vm765
    %vm2686 = vmand %vm2558, %vm766
    %vm2687 = vmand %vm2559, %vm767
    %vm2688 = vmand %vm2560, %vm768
    %vm2689 = vmand %vm2561, %vm769
    %vm2690 = vmand %vm2562, %vm770
    %vm2691 = vmand %vm2563, %vm771
    %vm2692 = vmand %vm2564, %vm772
    %vm2693 = vmand %vm2565, %vm773
    %vm2694 = vmand %vm2566, %vm774
    %vm2695 = vmand %vm2567, %vm775
    %vm2696 = vmand %vm2568, %vm776
    %vm2697 = vmand %vm2569, %vm777
    %vm2698 = vmand %vm2570, %vm778
    %v2699 = vsub.f32 %v1931, %v138
    %v2700 = vsub.f32 %v1932, %v139
    %v2701 = vsub.f32 %v1933, %v140
    %v2702 = vsub.f32 %v1934, %v141
    %v2703 = vsub.f32 %v1935, %v142
    %v2704 = vsub.f32 %v1936, %v143
    %v2705 = vsub.f32 %v1937, %v144
    %v2706 = vsub.f32 %v1938, %v145
    %v2707 = vsub.f32 %v1939, %v146
    %v2708 = vsub.f32 %v1940, %v147
    %v2709 = vsub.f32 %v1941, %v148
    %v2710 = vsub.f32 %v1942, %v149
    %v2711 = vsub.f32 %v1943, %v150
    %v2712 = vsub.f32 %v1944, %v151
    %v2713 = vsub.f32 %v1945, %v152
    %v2714 = vsub.f32 %v1946, %v153
    %v2715 = vsub.f32 %v1947, %v154
    %v2716 = vsub.f32 %v1948, %v155
    %v2717 = vsub.f32 %v1949, %v156
    %v2718 = vsub.f32 %v1950, %v157
    %v2719 = vsub.f32 %v1951, %v158
    %v2720 = vsub.f32 %v1952, %v159
    %v2721 = vsub.f32 %v1953, %v160
    %v2722 = vsub.f32 %v1954, %v161
    %v2723 = vsub.f32 %v1955, %v162
    %v2724 = vsub.f32 %v1956, %v163
    %v2725 = vsub.f32 %v1957, %v164
    %v2726 = vsub.f32 %v1958, %v165
    %v2727 = vsub.f32 %v1959, %v166
    %v2728 = vsub.f32 %v1960, %v167
    %v2729 = vsub.f32 %v1961, %v168
    %v2730 = vsub.f32 %v1962, %v169
    %v2731 = vsub.f32 %v1963, %v170
    %v2732 = vsub.f32 %v1964, %v171
    %v2733 = vsub.f32 %v1965, %v172
    %v2734 = vsub.f32 %v1966, %v173
    %v2735 = vsub.f32 %v1967, %v174
    %v2736 = vsub.f32 %v1968, %v175
    %v2737 = vsub.f32 %v1969, %v176
    %v2738 = vsub.f32 %v1970, %v177
    %v2739 = vsub.f32 %v1971, %v178
    %v2740 = vsub.f32 %v1972, %v179
    %v2741 = vsub.f32 %v1973, %v180
    %v2742 = vsub.f32 %v1974, %v181
    %v2743 = vsub.f32 %v1975, %v182
    %v2744 = vsub.f32 %v1976, %v183
    %v2745 = vsub.f32 %v1977, %v184
    %v2746 = vsub.f32 %v1978, %v185
    %v2747 = vsub.f32 %v1979, %v186
    %v2748 = vsub.f32 %v1980, %v187
    %v2749 = vsub.f32 %v1981, %v188
    %v2750 = vsub.f32 %v1982, %v189
    %v2751 = vsub.f32 %v1983, %v190
    %v2752 = vsub.f32 %v1984, %v191
    %v2753 = vsub.f32 %v1985, %v192
    %v2754 = vsub.f32 %v1986, %v193
    %v2755 = vsub.f32 %v1987, %v194
    %v2756 = vsub.f32 %v1988, %v195
    %v2757 = vsub.f32 %v1989, %v196
    %v2758 = vsub.f32 %v1990, %v197
    %v2759 = vsub.f32 %v1991, %v198
    %v2760 = vsub.f32 %v1992, %v199
    %v2761 = vsub.f32 %v1993, %v200
    %v2762 = vsub.f32 %v1994, %v201
    %v2763 = vsub.f32 %v1995, %v202
    %v2764 = vsub.f32 %v1996, %v203
    %v2765 = vsub.f32 %v1997, %v204
    %v2766 = vsub.f32 %v1998, %v205
    %v2767 = vsub.f32 %v1999, %v206
    %v2768 = vsub.f32 %v2000, %v207
    %v2769 = vsub.f32 %v2001, %v208
    %v2770 = vsub.f32 %v2002, %v209
    %v2771 = vsub.f32 %v2003, %v210
    %v2772 = vsub.f32 %v2004, %v211
    %v2773 = vsub.f32 %v2005, %v212
    %v2774 = vsub.f32 %v2006, %v213
    %v2775 = vsub.f32 %v2007, %v214
    %v2776 = vsub.f32 %v2008, %v215
    %v2777 = vsub.f32 %v2009, %v216
    %v2778 = vsub.f32 %v2010, %v217
    %v2779 = vsub.f32 %v2011, %v218
    %v2780 = vsub.f32 %v2012, %v219
    %v2781 = vsub.f32 %v2013, %v220
    %v2782 = vsub.f32 %v2014, %v221
    %v2783 = vsub.f32 %v2015, %v222
    %v2784 = vsub.f32 %v2016, %v223
    %v2785 = vsub.f32 %v2017, %v224
    %v2786 = vsub.f32 %v2018, %v225
    %v2787 = vsub.f32 %v2019, %v226
    %v2788 = vsub.f32 %v2020, %v227
    %v2789 = vsub.f32 %v2021, %v228
    %v2790 = vsub.f32 %v2022, %v229
    %v2791 = vsub.f32 %v2023, %v230
    %v2792 = vsub.f32 %v2024, %v231
    %v2793 = vsub.f32 %v2025, %v232
    %v2794 = vsub.f32 %v2026, %v233
    %v2795 = vsub.f32 %v2027, %v234
    %v2796 = vsub.f32 %v2028, %v235
    %v2797 = vsub.f32 %v2029, %v236
    %v2798 = vsub.f32 %v2030, %v237
    %v2799 = vsub.f32 %v2031, %v238
    %v2800 = vsub.f32 %v2032, %v239
    %v2801 = vsub.f32 %v2033, %v240
    %v2802 = vsub.f32 %v2034, %v241
    %v2803 = vsub.f32 %v2035, %v242
    %v2804 = vsub.f32 %v2036, %v243
    %v2805 = vsub.f32 %v2037, %v244
    %v2806 = vsub.f32 %v2038, %v245
    %v2807 = vsub.f32 %v2039, %v246
    %v2808 = vsub.f32 %v2040, %v247
    %v2809 = vsub.f32 %v2041, %v248
    %v2810 = vsub.f32 %v2042, %v249
    %v2811 = vsub.f32 %v2043, %v250
    %v2812 = vsub.f32 %v2044, %v251
    %v2813 = vsub.f32 %v2045, %v252
    %v2814 = vsub.f32 %v2046, %v253
    %v2815 = vsub.f32 %v2047, %v254
    %v2816 = vsub.f32 %v2048, %v255
    %v2817 = vsub.f32 %v2049, %v256
    %v2818 = vsub.f32 %v2050, %v257
    %v2819 = vsub.f32 %v2051, %v258
    %v2820 = vsub.f32 %v2052, %v259
    %v2821 = vsub.f32 %v2053, %v260
    %v2822 = vsub.f32 %v2054, %v261
    %v2823 = vsub.f32 %v2055, %v262
    %v2824 = vsub.f32 %v2056, %v263
    %v2825 = vsub.f32 %v2057, %v264
    %v2826 = vsub.f32 %v2058, %v265
    %v2827 = vsel %vm2571, %v2699, 0.0
    %v2828 = vsel %vm2572, %v2700, 0.0
    %v2829 = vsel %vm2573, %v2701, 0.0
    %v2830 = vsel %vm2574, %v2702, 0.0
    %v2831 = vsel %vm2575, %v2703, 0.0
    %v2832 = vsel %vm2576, %v2704, 0.0
    %v2833 = vsel %vm2577, %v2705, 0.0
    %v2834 = vsel %vm2578, %v2706, 0.0
    %v2835 = vsel %vm2579, %v2707, 0.0
    %v2836 = vsel %vm2580, %v2708, 0.0
    %v2837 = vsel %vm2581, %v2709, 0.0
    %v2838 = vsel %vm2582, %v2710, 0.0
    %v2839 = vsel %vm2583, %v2711, 0.0
    %v2840 = vsel %vm2584, %v2712, 0.0
    %v2841 = vsel %vm2585, %v2713, 0.0
    %v2842 = vsel %vm2586, %v2714, 0.0
    %v2843 = vsel %vm2587, %v2715, 0.0
    %v2844 = vsel %vm2588, %v2716, 0.0
    %v2845 = vsel %vm2589, %v2717, 0.0
    %v2846 = vsel %vm2590, %v2718, 0.0
    %v2847 = vsel %vm2591, %v2719, 0.0
    %v2848 = vsel %vm2592, %v2720, 0.0
    %v2849 = vsel %vm2593, %v2721, 0.0
    %v2850 = vsel %vm2594, %v2722, 0.0
    %v2851 = vsel %vm2595, %v2723, 0.0
    %v2852 = vsel %vm2596, %v2724, 0.0
    %v2853 = vsel %vm2597, %v2725, 0.0
    %v2854 = vsel %vm2598, %v2726, 0.0
    %v2855 = vsel %vm2599, %v2727, 0.0
    %v2856 = vsel %vm2600, %v2728, 0.0
    %v2857 = vsel %vm2601, %v2729, 0.0
    %v2858 = vsel %vm2602, %v2730, 0.0
    %v2859 = vsel %vm2603, %v2731, 0.0
    %v2860 = vsel %vm2604, %v2732, 0.0
    %v2861 = vsel %vm2605, %v2733, 0.0
    %v2862 = vsel %vm2606, %v2734, 0.0
    %v2863 = vsel %vm2607, %v2735, 0.0
    %v2864 = vsel %vm2608, %v2736, 0.0
    %v2865 = vsel %vm2609, %v2737, 0.0
    %v2866 = vsel %vm2610, %v2738, 0.0
    %v2867 = vsel %vm2611, %v2739, 0.0
    %v2868 = vsel %vm2612, %v2740, 0.0
    %v2869 = vsel %vm2613, %v2741, 0.0
    %v2870 = vsel %vm2614, %v2742, 0.0
    %v2871 = vsel %vm2615, %v2743, 0.0
    %v2872 = vsel %vm2616, %v2744, 0.0
    %v2873 = vsel %vm2617, %v2745, 0.0
    %v2874 = vsel %vm2618, %v2746, 0.0
    %v2875 = vsel %vm2619, %v2747, 0.0
    %v2876 = vsel %vm2620, %v2748, 0.0
    %v2877 = vsel %vm2621, %v2749, 0.0
    %v2878 = vsel %vm2622, %v2750, 0.0
    %v2879 = vsel %vm2623, %v2751, 0.0
    %v2880 = vsel %vm2624, %v2752, 0.0
    %v2881 = vsel %vm2625, %v2753, 0.0
    %v2882 = vsel %vm2626, %v2754, 0.0
    %v2883 = vsel %vm2627, %v2755, 0.0
    %v2884 = vsel %vm2628, %v2756, 0.0
    %v2885 = vsel %vm2629, %v2757, 0.0
    %v2886 = vsel %vm2630, %v2758, 0.0
    %v2887 = vsel %vm2631, %v2759, 0.0
    %v2888 = vsel %vm2632, %v2760, 0.0
    %v2889 = vsel %vm2633, %v2761, 0.0
    %v2890 = vsel %vm2634, %v2762, 0.0
    %v2891 = vsel %vm2635, %v2763, 0.0
    %v2892 = vsel %vm2636, %v2764, 0.0
    %v2893 = vsel %vm2637, %v2765, 0.0
    %v2894 = vsel %vm2638, %v2766, 0.0
    %v2895 = vsel %vm2639, %v2767, 0.0
    %v2896 = vsel %vm2640, %v2768, 0.0
    %v2897 = vsel %vm2641, %v2769, 0.0
    %v2898 = vsel %vm2642, %v2770, 0.0
    %v2899 = vsel %vm2643, %v2771, 0.0
    %v2900 = vsel %vm2644, %v2772, 0.0
    %v2901 = vsel %vm2645, %v2773, 0.0
    %v2902 = vsel %vm2646, %v2774, 0.0
    %v2903 = vsel %vm2647, %v2775, 0.0
    %v2904 = vsel %vm2648, %v2776, 0.0
    %v2905 = vsel %vm2649, %v2777, 0.0
    %v2906 = vsel %vm2650, %v2778, 0.0
    %v2907 = vsel %vm2651, %v2779, 0.0
    %v2908 = vsel %vm2652, %v2780, 0.0
    %v2909 = vsel %vm2653, %v2781, 0.0
    %v2910 = vsel %vm2654, %v2782, 0.0
    %v2911 = vsel %vm2655, %v2783, 0.0
    %v2912 = vsel %vm2656, %v2784, 0.0
    %v2913 = vsel %vm2657, %v2785, 0.0
    %v2914 = vsel %vm2658, %v2786, 0.0
    %v2915 = vsel %vm2659, %v2787, 0.0
    %v2916 = vsel %vm2660, %v2788, 0.0
    %v2917 = vsel %vm2661, %v2789, 0.0
    %v2918 = vsel %vm2662, %v2790, 0.0
    %v2919 = vsel %vm2663, %v2791, 0.0
    %v2920 = vsel %vm2664, %v2792, 0.0
    %v2921 = vsel %vm2665, %v2793, 0.0
    %v2922 = vsel %vm2666, %v2794, 0.0
    %v2923 = vsel %vm2667, %v2795, 0.0
    %v2924 = vsel %vm2668, %v2796, 0.0
    %v2925 = vsel %vm2669, %v2797, 0.0
    %v2926 = vsel %vm2670, %v2798, 0.0
    %v2927 = vsel %vm2671, %v2799, 0.0
    %v2928 = vsel %vm2672, %v2800, 0.0
    %v2929 = vsel %vm2673, %v2801, 0.0
    %v2930 = vsel %vm2674, %v2802, 0.0
    %v2931 = vsel %vm2675, %v2803, 0.0
    %v2932 = vsel %vm2676, %v2804, 0.0
    %v2933 = vsel %vm2677, %v2805, 0.0
    %v2934 = vsel %vm2678, %v2806, 0.0
    %v2935 = vsel %vm2679, %v2807, 0.0
    %v2936 = vsel %vm2680, %v2808, 0.0
    %v2937 = vsel %vm2681, %v2809, 0.0
    %v2938 = vsel %vm2682, %v2810, 0.0
    %v2939 = vsel %vm2683, %v2811, 0.0
    %v2940 = vsel %vm2684, %v2812, 0.0
    %v2941 = vsel %vm2685, %v2813, 0.0
    %v2942 = vsel %vm2686, %v2814, 0.0
    %v2943 = vsel %vm2687, %v2815, 0.0
    %v2944 = vsel %vm2688, %v2816, 0.0
    %v2945 = vsel %vm2689, %v2817, 0.0
    %v2946 = vsel %vm2690, %v2818, 0.0
    %v2947 = vsel %vm2691, %v2819, 0.0
    %v2948 = vsel %vm2692, %v2820, 0.0
    %v2949 = vsel %vm2693, %v2821, 0.0
    %v2950 = vsel %vm2694, %v2822, 0.0
    %v2951 = vsel %vm2695, %v2823, 0.0
    %v2952 = vsel %vm2696, %v2824, 0.0
    %v2953 = vsel %vm2697, %v2825, 0.0
    %v2954 = vsel %vm2698, %v2826, 0.0
    %v2955 = vadd.f32 %v2827, %v2828
    %v2956 = vadd.f32 %v2955, %v2829
    %v2957 = vadd.f32 %v2956, %v2830
    %v2958 = vadd.f32 %v2957, %v2831
    %v2959 = vadd.f32 %v2958, %v2832
    %v2960 = vadd.f32 %v2959, %v2833
    %v2961 = vadd.f32 %v2960, %v2834
    %v2962 = vadd.f32 %v2961, %v2835
    %v2963 = vadd.f32 %v2962, %v2836
    %v2964 = vadd.f32 %v2963, %v2837
    %v2965 = vadd.f32 %v2964, %v2838
    %v2966 = vadd.f32 %v2965, %v2839
    %v2967 = vadd.f32 %v2966, %v2840
    %v2968 = vadd.f32 %v2967, %v2841
    %v2969 = vadd.f32 %v2968, %v2842
    %v2970 = vadd.f32 %v2969, %v2843
    %v2971 = vadd.f32 %v2970, %v2844
    %v2972 = vadd.f32 %v2971, %v2845
    %v2973 = vadd.f32 %v2972, %v2846
    %v2974 = vadd.f32 %v2973, %v2847
    %v2975 = vadd.f32 %v2974, %v2848
    %v2976 = vadd.f32 %v2975, %v2849
    %v2977 = vadd.f32 %v2976, %v2850
    %v2978 = vadd.f32 %v2977, %v2851
    %v2979 = vadd.f32 %v2978, %v2852
    %v2980 = vadd.f32 %v2979, %v2853
    %v2981 = vadd.f32 %v2980, %v2854
    %v2982 = vadd.f32 %v2981, %v2855
    %v2983 = vadd.f32 %v2982, %v2856
    %v2984 = vadd.f32 %v2983, %v2857
    %v2985 = vadd.f32 %v2984, %v2858
    %v2986 = vadd.f32 %v2985, %v2859
    %v2987 = vadd.f32 %v2986, %v2860
    %v2988 = vadd.f32 %v2987, %v2861
    %v2989 = vadd.f32 %v2988, %v2862
    %v2990 = vadd.f32 %v2989, %v2863
    %v2991 = vadd.f32 %v2990, %v2864
    %v2992 = vadd.f32 %v2991, %v2865
    %v2993 = vadd.f32 %v2992, %v2866
    %v2994 = vadd.f32 %v2993, %v2867
    %v2995 = vadd.f32 %v2994, %v2868
    %v2996 = vadd.f32 %v2995, %v2869
    %v2997 = vadd.f32 %v2996, %v2870
    %v2998 = vadd.f32 %v2997, %v2871
    %v2999 = vadd.f32 %v2998, %v2872
    %v3000 = vadd.f32 %v2999, %v2873
    %v3001 = vadd.f32 %v3000, %v2874
    %v3002 = vadd.f32 %v3001, %v2875
    %v3003 = vadd.f32 %v3002, %v2876
    %v3004 = vadd.f32 %v3003, %v2877
    %v3005 = vadd.f32 %v3004, %v2878
    %v3006 = vadd.f32 %v3005, %v2879
    %v3007 = vadd.f32 %v3006, %v2880
    %v3008 = vadd.f32 %v3007, %v2881
    %v3009 = vadd.f32 %v3008, %v2882
    %v3010 = vadd.f32 %v3009, %v2883
    %v3011 = vadd.f32 %v3010, %v2884
    %v3012 = vadd.f32 %v3011, %v2885
    %v3013 = vadd.f32 %v3012, %v2886
    %v3014 = vadd.f32 %v3013, %v2887
    %v3015 = vadd.f32 %v3014, %v2888
    %v3016 = vadd.f32 %v3015, %v2889
    %v3017 = vadd.f32 %v3016, %v2890
    %v3018 = vadd.f32 %v3017, %v2891
    %v3019 = vadd.f32 %v3018, %v2892
    %v3020 = vadd.f32 %v3019, %v2893
    %v3021 = vadd.f32 %v3020, %v2894
    %v3022 = vadd.f32 %v3021, %v2895
    %v3023 = vadd.f32 %v3022, %v2896
    %v3024 = vadd.f32 %v3023, %v2897
    %v3025 = vadd.f32 %v3024, %v2898
    %v3026 = vadd.f32 %v3025, %v2899
    %v3027 = vadd.f32 %v3026, %v2900
    %v3028 = vadd.f32 %v3027, %v2901
    %v3029 = vadd.f32 %v3028, %v2902
    %v3030 = vadd.f32 %v3029, %v2903
    %v3031 = vadd.f32 %v3030, %v2904
    %v3032 = vadd.f32 %v3031, %v2905
    %v3033 = vadd.f32 %v3032, %v2906
    %v3034 = vadd.f32 %v3033, %v2907
    %v3035 = vadd.f32 %v3034, %v2908
    %v3036 = vadd.f32 %v3035, %v2909
    %v3037 = vadd.f32 %v3036, %v2910
    %v3038 = vadd.f32 %v3037, %v2911
    %v3039 = vadd.f32 %v3038, %v2912
    %v3040 = vadd.f32 %v3039, %v2913
    %v3041 = vadd.f32 %v3040, %v2914
    %v3042 = vadd.f32 %v3041, %v2915
    %v3043 = vadd.f32 %v3042, %v2916
    %v3044 = vadd.f32 %v3043, %v2917
    %v3045 = vadd.f32 %v3044, %v2918
    %v3046 = vadd.f32 %v3045, %v2919
    %v3047 = vadd.f32 %v3046, %v2920
    %v3048 = vadd.f32 %v3047, %v2921
    %v3049 = vadd.f32 %v3048, %v2922
    %v3050 = vadd.f32 %v3049, %v2923
    %v3051 = vadd.f32 %v3050, %v2924
    %v3052 = vadd.f32 %v3051, %v2925
    %v3053 = vadd.f32 %v3052, %v2926
    %v3054 = vadd.f32 %v3053, %v2927
    %v3055 = vadd.f32 %v3054, %v2928
    %v3056 = vadd.f32 %v3055, %v2929
    %v3057 = vadd.f32 %v3056, %v2930
    %v3058 = vadd.f32 %v3057, %v2931
    %v3059 = vadd.f32 %v3058, %v2932
    %v3060 = vadd.f32 %v3059, %v2933
    %v3061 = vadd.f32 %v3060, %v2934
    %v3062 = vadd.f32 %v3061, %v2935
    %v3063 = vadd.f32 %v3062, %v2936
    %v3064 = vadd.f32 %v3063, %v2937
    %v3065 = vadd.f32 %v3064, %v2938
    %v3066 = vadd.f32 %v3065, %v2939
    %v3067 = vadd.f32 %v3066, %v2940
    %v3068 = vadd.f32 %v3067, %v2941
    %v3069 = vadd.f32 %v3068, %v2942
    %v3070 = vadd.f32 %v3069, %v2943
    %v3071 = vadd.f32 %v3070, %v2944
    %v3072 = vadd.f32 %v3071, %v2945
    %v3073 = vadd.f32 %v3072, %v2946
    %v3074 = vadd.f32 %v3073, %v2947
    %v3075 = vadd.f32 %v3074, %v2948
    %v3076 = vadd.f32 %v3075, %v2949
    %v3077 = vadd.f32 %v3076, %v2950
    %v3078 = vadd.f32 %v3077, %v2951
    %v3079 = vadd.f32 %v3078, %v2952
    %v3080 = vadd.f32 %v3079, %v2953
    %v3081 = vadd.f32 %v3080, %v2954
    %v3082 = vadd.f32 %v3081, 0.0
    %v3083 = vld [vmem:[#allocation3] sm:$0xff]
    %v3084 = vadd.f32 %v3083, %v3082
    %3085 = vst [vmem:[#allocation3] sm:$0xff] %v3084
    // Predicated region
    $region26: #{tpu_custom_call.1} parent=1 // pred_check
      %p3086 = pneg %p98
    $region27: #{tpu_custom_call.1} parent=1 // pred_check_branch
      %3088 = sbr.rel (%p3086) target = $region29
    $region28: #{tpu_custom_call.1} parent=1 // pred_region
      %v3089 = vld [vmem:[#allocation2] sm:$0xff]
      %3090 = vadd.xlane.f32.xlu0 %v3089
      %v3091 = vpop.xlane.xlu0 %3090
      %v3092 = vrot.slane %v3091, 4
      %v3093 = vadd.f32 %v3091, %v3092
      %v3094 = vrot.slane %v3093, 2
      %v3095 = vadd.f32 %v3093, %v3094
      %v3096 = vrot.slane %v3095, 1
      %v3097 = vadd.f32 %v3095, %v3096
      %s3098 = vtos %v3097
      %s3099 = smul.f32 %s3098, 0.125
      %vm3100 = vcmp.eq.s32.totalorder %v105, 0
      %vm3101 = vcmp.eq.s32.totalorder %v107, 0
      %vm3102 = vmand %vm3100, %vm3101
      %v3103 = vstv %s3099
      %v3104 = vsel %vm3102, %v3103, 0.0
      %s3105 = sadd.f32 %s3099, 0.0
      %v3106 = vld [vmem:[#allocation3] sm:$0xff]
      %3107 = vadd.xlane.f32.xlu0 %v3106
      %v3108 = vpop.xlane.xlu0 %3107
      %v3109 = vrot.slane %v3108, 4
      %v3110 = vadd.f32 %v3108, %v3109
      %v3111 = vrot.slane %v3110, 2
      %v3112 = vadd.f32 %v3110, %v3111
      %v3113 = vrot.slane %v3112, 1
      %v3114 = vadd.f32 %v3112, %v3113
      %s3115 = vtos %v3114
      %s3116 = smul.f32 %s3115, 0.125
      %vm3117 = vcmp.eq.s32.totalorder %v107, 1
      %vm3118 = vmand %vm3100, %vm3117
      %v3119 = vstv %s3116
      %v3120 = vsel %vm3118, %v3119, %v3104
      %s3121 = smul.f32 %s3116, 0.5
      %s3122 = sadd.f32 %s3105, %s3121
      %vm3123 = vcmp.eq.s32.totalorder %v107, 2
      %vm3124 = vmand %vm3100, %vm3123
      %v3125 = vstv %s3122
      %v3126 = vsel %vm3124, %v3125, %v3120
      %3127 = vst [vmem:[#allocation7] sm:$0xff] %v3126
    $region29: #{tpu_custom_call.1} parent=1 // pred_fallthru
      _
    // Predicated region
    $region30: #{tpu_custom_call.1} parent=1 // pred_check
      _
    $region31: #{tpu_custom_call.1} parent=1 // pred_check_branch
      %3129 = sbr.rel (0) target = $region33
    $region32: #{tpu_custom_call.1} parent=1 // pred_region
      %3131 = vsyncadd [#allocation6], 0
      %s3133 = sshll.u32 [#allocation7], 4
      %s3134 = int_to_ptr.vmem [resolvable:$true] %s3133
      %s3135 = sshll.u32 %s4, 4
      %s3136 = int_to_ptr.hbm [resolvable:$true] %s3135
      %3138 = dma.vmem_to_hbm [thread:$0]  %s3134, 128, %s3136, [#allocation6]
    $region33: #{tpu_custom_call.1} parent=1 // pred_fallthru
      _
    // Predicated region
    $region34: #{tpu_custom_call.1} parent=1 // pred_check
      _
    $region35: #{tpu_custom_call.1} parent=1 // pred_check_branch
      %3140 = sbr.rel (0) target = $region37
    $region36: #{tpu_custom_call.1} parent=1 // pred_region
      %3142 = dma.done [#allocation6], 128
    $region37: #{tpu_custom_call.1} parent=1 // pred_fallthru
      _
    %3143 = vsyncpa [#allocation5], 1
    %3144 = vsyncpa [#allocation6], 1

</llo_original>
